<compile_context>
chip_gen: v7x
topology: tpu7x:2x2x1
jax: 0.10.0
libtpu: 0.0.40
codegen_flags: <defaults>
</compile_context>

<pallas_src>
import math

import jax
import jax.numpy as jnp
from jax.experimental import pallas as pl
from jax.experimental.pallas import tpu as pltpu

_SQRT_HALF = 0.7071067811865476
_GELU_C = 0.7978845608028654          # sqrt(2/pi)
_BN_EPS = 1e-5


def _gelu_tanh(x):
    # tanh-form GELU: 0.5*x*(1 + tanh(sqrt(2/pi)*(x + 0.044715*x^3))).
    # One EUP tanh (free slot) + ~5 VALU ops; |err| vs exact erf-GELU ~1e-3.
    # TODO(synk): on v6e/v7x this polynomial could run in packed bf16 for 2x VALU
    # throughput (v5e has no bf16 VPU), kept in f32 for portability.
    return 0.5 * x * (1.0 + jnp.tanh(_GELU_C * (x + 0.044715 * x * x * x)))


def _round_up(x, m):
    return (x + m - 1) // m * m


def _encode(p_ref, w1_ref, b1_ref):
    # bf16 x bf16 -> f32 accumulate on the MXU, then GELU on the VPU/EUP.
    h = jnp.dot(p_ref[...].astype(jnp.bfloat16), w1_ref[...],
                preferred_element_type=jnp.float32)
    return _gelu_tanh(h + b1_ref[...])


def _make_stats_kernel(row_tile, n_valid, grid):
    """Stats-only pass: per-block BN partial sums; h never leaves VMEM."""
    rows_last = n_valid - (grid - 1) * row_tile
    needs_mask = rows_last != row_tile

    def kernel(p_ref, w1_ref, b1_ref, stats_ref):
        h = _encode(p_ref, w1_ref, b1_ref)

        def write_stats(hv):
            s = jnp.sum(hv, axis=0, keepdims=True)        # (1, H) sum
            q = jnp.sum(hv * hv, axis=0, keepdims=True)   # (1, H) sum of squares
            ridx = jax.lax.broadcasted_iota(jnp.int32, (8, hv.shape[1]), 0)
            stats_ref[...] = jnp.where(ridx == 0, s,
                                       jnp.where(ridx == 1, q, 0.0))[None]

        if needs_mask:
            # Only the (partial) last block pays for the row mask.
            is_last = pl.program_id(0) == grid - 1

            @pl.when(is_last)
            def _():
                row = jax.lax.broadcasted_iota(jnp.int32, h.shape, 0)
                write_stats(jnp.where(row < rows_last, h, 0.0))

            @pl.when(jnp.logical_not(is_last))
            def _():
                write_stats(h)
        else:
            write_stats(h)

    return kernel


def _fused_kernel(p_ref, w1_ref, b1_ref, w2_ref, b2_ref, o_ref):
    """Fused encode + BN-folded pointwise projection; output written directly."""
    h = _encode(p_ref, w1_ref, b1_ref)
    o_ref[...] = (jnp.dot(h.astype(jnp.bfloat16), w2_ref[...],
                          preferred_element_type=jnp.float32)
                  + b2_ref[...])


def audio_tokenizer_forward(x, params, *, kernel_size=16, row_tile=1024):
    """x: (B, L, C_in) float32  ->  (B, L // kernel_size, C_out) float32."""
    w1, b1, gamma, beta, w2, b2 = (params[k] for k in
                                   ("w1", "b1", "gamma", "beta", "w2", "b2"))
    B, L, C = x.shape
    K = kernel_size
    assert L % K == 0, "seq length must be a multiple of kernel_size"
    T = L // K
    N = B * T
    H = w1.shape[1]       # 2 * out_channels
    O = w2.shape[1]       # out_channels

    # Large row tiles keep the MXU M-dim and HBM bursts long; shrink only if the
    # whole problem is smaller than one tile.  No padding: Pallas handles the
    # partial last block (OOB output rows dropped; stats mask the OOB input rows).
    row_tile = max(8, min(row_tile, _round_up(N, 8)))
    assert row_tile % 8 == 0
    grid = pl.cdiv(N, row_tile)

    # Patchify (metadata-only reshape). Row (b*T + t), column (k*C + c) holds
    # x[b, t*K + k, c] == x_permuted[b, c, t*K + k] (matches Conv1d taps;
    # torch weight w[o, c, k] corresponds to w1[k*C + c, o]).
    patches = x.reshape(N, K * C).astype(jnp.float32)
    w1_bf = w1.astype(jnp.bfloat16)

    cparams = pltpu.CompilerParams(
        dimension_semantics=("parallel",),
        vmem_limit_bytes=32 * 1024 * 1024,
    )

    # ---- Pass A: BN partial statistics only (no h write). ----
    stats = pl.pallas_call(
        _make_stats_kernel(row_tile, N, grid),
        grid=(grid,),
        in_specs=[
            pl.BlockSpec((row_tile, K * C), lambda i: (i, 0)),
            pl.BlockSpec((K * C, H), lambda i: (0, 0)),
            pl.BlockSpec((1, H), lambda i: (0, 0)),
        ],
        out_specs=pl.BlockSpec((1, 8, H), lambda i: (i, 0, 0)),
        out_shape=jax.ShapeDtypeStruct((grid, 8, H), jnp.float32),
        compiler_params=cparams,
    )(patches, w1_bf, b1)

    # ---- Tiny XLA glue: finalize training-mode BN stats, fold into w2/b2. ----
    ssum = jnp.sum(stats[:, 0, :], axis=0)                  # (H,)
    ssq = jnp.sum(stats[:, 1, :], axis=0)                   # (H,)
    mean = ssum / N
    var = jnp.maximum(ssq / N - mean * mean, 0.0)           # biased var
    inv = jax.lax.rsqrt(var + _BN_EPS)
    scale = gamma.reshape(-1) * inv                         # (H,)
    w2f = scale[:, None] * w2                               # (H, O) f32
    b2f = (b2.reshape(-1) + (beta.reshape(-1) - mean * scale) @ w2).reshape(1, O)
    w2_bf = w2f.astype(jnp.bfloat16)

    # ---- Pass B: fused encode (recomputed) + projection, direct (N, O) output. ----
    out = pl.pallas_call(
        _fused_kernel,
        grid=(grid,),
        in_specs=[
            pl.BlockSpec((row_tile, K * C), lambda i: (i, 0)),
            pl.BlockSpec((K * C, H), lambda i: (0, 0)),
            pl.BlockSpec((1, H), lambda i: (0, 0)),
            pl.BlockSpec((H, O), lambda i: (0, 0)),
            pl.BlockSpec((1, O), lambda i: (0, 0)),
        ],
        out_specs=pl.BlockSpec((row_tile, O), lambda i: (i, 0)),
        out_shape=jax.ShapeDtypeStruct((N, O), jnp.float32),
        compiler_params=cparams,
    )(patches, w1_bf, b1, w2_bf, b2f)

    return out.reshape(B, T, O)


def init_params(key, in_channels=1, out_channels=64, kernel_size=16):
    """Deterministic synthetic init mirroring the module's parameter shapes."""
    C, K, O = in_channels, kernel_size, out_channels
    H = 2 * out_channels
    ks = jax.random.split(key, 4)
    # PyTorch Conv1d default init: U(-1/sqrt(fan_in), 1/sqrt(fan_in))
    bound1 = 1.0 / math.sqrt(C * K)
    w1 = jax.random.uniform(ks[0], (K * C, H), jnp.float32, -bound1, bound1)
    b1 = jax.random.uniform(ks[1], (1, H), jnp.float32, -bound1, bound1)
    bound2 = 1.0 / math.sqrt(H)
    w2 = jax.random.uniform(ks[2], (H, O), jnp.float32, -bound2, bound2)
    b2 = jax.random.uniform(ks[3], (1, O), jnp.float32, -bound2, bound2)
    # BatchNorm1d default affine init: weight=1, bias=0
    gamma = jnp.ones((1, H), jnp.float32)
    beta = jnp.zeros((1, H), jnp.float32)
    return dict(w1=w1, b1=b1, gamma=gamma, beta=beta, w2=w2, b2=b2)


def _reference_forward(x, params, kernel_size):
    """Pure-JAX f32 reference (exact-erf GELU, training-mode BN)."""
    w1, b1, gamma, beta, w2, b2 = (params[k] for k in
                                   ("w1", "b1", "gamma", "beta", "w2", "b2"))
    B, L, C = x.shape
    K = kernel_size
    T = L // K
    hp = jax.lax.Precision.HIGHEST
    patches = x.reshape(B * T, K * C)
    h = jnp.dot(patches, w1, precision=hp) + b1
    h = 0.5 * h * (1.0 + jax.scipy.special.erf(h * _SQRT_HALF))
    mean = h.mean(axis=0)
    var = ((h - mean) ** 2).mean(axis=0)              # biased (training-mode BN)
    hn = (h - mean) * jax.lax.rsqrt(var + _BN_EPS) * gamma.reshape(-1) + beta.reshape(-1)
    out = jnp.dot(hn, w2, precision=hp) + b2
    return out.reshape(B, T, -1)


if __name__ == "__main__":
    key = jax.random.PRNGKey(0)
    pkey, xkey = jax.random.split(key)

    # Small demo shape that still exercises a multi-step grid with a partial
    # last block: N = B*T = 5*256 = 1280 token rows -> 2 steps of 1024.
    B, L, C_in, C_out, K = 5, 4096, 1, 64, 16        # -> output (5, 256, 64)
    params = init_params(pkey, in_channels=C_in, out_channels=C_out, kernel_size=K)
    x = jax.random.normal(xkey, (B, L, C_in), jnp.float32)

    y = audio_tokenizer_forward(x, params, kernel_size=K, row_tile=1024)
    y = jax.block_until_ready(y)

    assert y.shape == (B, L // K, C_out), y.shape
    assert y.dtype == jnp.float32
    assert bool(jnp.all(jnp.isfinite(y)))

    # Loose tolerance: tanh-GELU and bf16 MXU operands by design.
    y_ref = _reference_forward(x, params, K)
    assert bool(jnp.allclose(y, y_ref, atol=0.1, rtol=0.0)), float(
        jnp.max(jnp.abs(y - y_ref)))

    print("KERNEL_OK")
</pallas_src>

<mosaic_0001>
module attributes {stable_mosaic.version = 11 : i64} {
  func.func @kernel(%arg0: i32, %arg1: memref<1024x16xf32, #tpu.memory_space<vmem>>, %arg2: memref<16x128xbf16, #tpu.memory_space<vmem>>, %arg3: memref<1x128xf32, #tpu.memory_space<vmem>>, %arg4: memref<1x8x128xf32, #tpu.memory_space<vmem>>) attributes {dimension_semantics = [#tpu.dimension_semantics<parallel>], iteration_bounds = array<i64: 2>, scalar_prefetch = 0 : i64, scratch_operands = 0 : i64, tpu.core_type = #tpu.core_type<tc>, window_params = [{transform_indices = @transform_0, window_bounds = array<i64: 1024, 16>}, {pipeline_mode = #tpu.pipeline_mode<synchronous>, transform_indices = @transform_1, window_bounds = array<i64: 16, 128>}, {pipeline_mode = #tpu.pipeline_mode<synchronous>, transform_indices = @transform_2, window_bounds = array<i64: 1, 128>}, {transform_indices = @transform_3, window_bounds = array<i64: 1, 8, 128>}]} {
    %c0 = arith.constant 0 : index
    %c0_0 = arith.constant 0 : index
    %0 = vector.load %arg1[%c0, %c0_0] : memref<1024x16xf32, #tpu.memory_space<vmem>>, vector<1024x16xf32>
    %1 = arith.truncf %0 : vector<1024x16xf32> to vector<1024x16xbf16>
    %c0_1 = arith.constant 0 : index
    %c0_2 = arith.constant 0 : index
    %2 = vector.load %arg2[%c0_1, %c0_2] : memref<16x128xbf16, #tpu.memory_space<vmem>>, vector<16x128xbf16>
    %cst = arith.constant dense<0.000000e+00> : vector<1024x128xf32>
    %3 = tpu.matmul %1, %2, %cst {dimension_numbers = #tpu.dot_dimension_numbers<[1], [0], [0], [1], [0, 0, 1, 1], [], []>} : vector<1024x16xbf16>, vector<16x128xbf16>, vector<1024x128xf32> -> vector<1024x128xf32>
    %c0_3 = arith.constant 0 : index
    %c0_4 = arith.constant 0 : index
    %4 = vector.load %arg3[%c0_3, %c0_4] : memref<1x128xf32, #tpu.memory_space<vmem>>, vector<1x128xf32>
    %5 = vector.broadcast %4 : vector<1x128xf32> to vector<1024x128xf32>
    %6 = arith.addf %3, %5 : vector<1024x128xf32>
    %cst_5 = arith.constant 5.000000e-01 : f32
    %7 = vector.broadcast %cst_5 : f32 to vector<1024x128xf32>
    %8 = arith.mulf %7, %6 : vector<1024x128xf32>
    %cst_6 = arith.constant 4.471500e-02 : f32
    %9 = vector.broadcast %cst_6 : f32 to vector<1024x128xf32>
    %10 = arith.mulf %9, %6 : vector<1024x128xf32>
    %11 = arith.mulf %10, %6 : vector<1024x128xf32>
    %12 = arith.mulf %11, %6 : vector<1024x128xf32>
    %13 = arith.addf %6, %12 : vector<1024x128xf32>
    %cst_7 = arith.constant 0.797884583 : f32
    %14 = vector.broadcast %cst_7 : f32 to vector<1024x128xf32>
    %15 = arith.mulf %14, %13 : vector<1024x128xf32>
    %16 = math.tanh %15 : vector<1024x128xf32>
    %cst_8 = arith.constant 1.000000e+00 : f32
    %17 = vector.broadcast %cst_8 : f32 to vector<1024x128xf32>
    %18 = arith.addf %17, %16 : vector<1024x128xf32>
    %19 = arith.mulf %8, %18 : vector<1024x128xf32>
    %c1_i32 = arith.constant 1 : i32
    %20 = arith.cmpi eq, %arg0, %c1_i32 : i32
    %21 = arith.extui %20 : i1 to i32
    %c0_i32 = arith.constant 0 : i32
    %22 = arith.cmpi ne, %21, %c0_i32 : i32
    scf.if %22 {
      %26 = tpu.iota {dimensions = array<i32: 0>} : vector<1024x128xi32>
      %c256_i32 = arith.constant 256 : i32
      %27 = vector.broadcast %c256_i32 : i32 to vector<1024x128xi32>
      %28 = arith.cmpi slt, %26, %27 : vector<1024x128xi32>
      %cst_10 = arith.constant 0.000000e+00 : f32
      %29 = vector.broadcast %cst_10 : f32 to vector<1024x128xf32>
      %30 = arith.select %28, %19, %29 : vector<1024x128xi1>, vector<1024x128xf32>
      %cst_11 = arith.constant dense<0.000000e+00> : vector<128xf32>
      %31 = vector.multi_reduction <add>, %30, %cst_11 [0] : vector<1024x128xf32> to vector<128xf32>
      %32 = vector.shape_cast %31 : vector<128xf32> to vector<1x128xf32>
      %33 = arith.mulf %30, %30 : vector<1024x128xf32>
      %cst_12 = arith.constant dense<0.000000e+00> : vector<128xf32>
      %34 = vector.multi_reduction <add>, %33, %cst_12 [0] : vector<1024x128xf32> to vector<128xf32>
      %35 = vector.shape_cast %34 : vector<128xf32> to vector<1x128xf32>
      %36 = tpu.iota {dimensions = array<i32: 0>} : vector<8x128xi32>
      %c0_i32_13 = arith.constant 0 : i32
      %37 = vector.broadcast %c0_i32_13 : i32 to vector<8x128xi32>
      %38 = arith.cmpi eq, %36, %37 : vector<8x128xi32>
      %c1_i32_14 = arith.constant 1 : i32
      %39 = vector.broadcast %c1_i32_14 : i32 to vector<8x128xi32>
      %40 = arith.cmpi eq, %36, %39 : vector<8x128xi32>
      %cst_15 = arith.constant 0.000000e+00 : f32
      %41 = vector.shape_cast %35 : vector<1x128xf32> to vector<1x128xf32>
      %42 = vector.broadcast %41 : vector<1x128xf32> to vector<8x128xf32>
      %43 = vector.broadcast %cst_15 : f32 to vector<8x128xf32>
      %44 = arith.select %40, %42, %43 : vector<8x128xi1>, vector<8x128xf32>
      %45 = vector.shape_cast %32 : vector<1x128xf32> to vector<1x128xf32>
      %46 = vector.broadcast %45 : vector<1x128xf32> to vector<8x128xf32>
      %47 = arith.select %38, %46, %44 : vector<8x128xi1>, vector<8x128xf32>
      %48 = vector.shape_cast %47 : vector<8x128xf32> to vector<1x8x128xf32>
      %c0_16 = arith.constant 0 : index
      %c0_17 = arith.constant 0 : index
      %c0_18 = arith.constant 0 : index
      %49 = vector.load %arg4[%c0_16, %c0_17, %c0_18] : memref<1x8x128xf32, #tpu.memory_space<vmem>>, vector<1x8x128xf32>
      tpu.vector_store %arg4[%c0_16, %c0_17, %c0_18], %48 {strides = array<i32>} : memref<1x8x128xf32, #tpu.memory_space<vmem>>, vector<1x8x128xf32>,
    } else {
    }
    %true = arith.constant true
    %23 = arith.xori %20, %true : i1
    %24 = arith.extui %23 : i1 to i32
    %c0_i32_9 = arith.constant 0 : i32
    %25 = arith.cmpi ne, %24, %c0_i32_9 : i32
    scf.if %25 {
      %cst_10 = arith.constant dense<0.000000e+00> : vector<128xf32>
      %26 = vector.multi_reduction <add>, %19, %cst_10 [0] : vector<1024x128xf32> to vector<128xf32>
      %27 = vector.shape_cast %26 : vector<128xf32> to vector<1x128xf32>
      %28 = arith.mulf %19, %19 : vector<1024x128xf32>
      %cst_11 = arith.constant dense<0.000000e+00> : vector<128xf32>
      %29 = vector.multi_reduction <add>, %28, %cst_11 [0] : vector<1024x128xf32> to vector<128xf32>
      %30 = vector.shape_cast %29 : vector<128xf32> to vector<1x128xf32>
      %31 = tpu.iota {dimensions = array<i32: 0>} : vector<8x128xi32>
      %c0_i32_12 = arith.constant 0 : i32
      %32 = vector.broadcast %c0_i32_12 : i32 to vector<8x128xi32>
      %33 = arith.cmpi eq, %31, %32 : vector<8x128xi32>
      %c1_i32_13 = arith.constant 1 : i32
      %34 = vector.broadcast %c1_i32_13 : i32 to vector<8x128xi32>
      %35 = arith.cmpi eq, %31, %34 : vector<8x128xi32>
      %cst_14 = arith.constant 0.000000e+00 : f32
      %36 = vector.shape_cast %30 : vector<1x128xf32> to vector<1x128xf32>
      %37 = vector.broadcast %36 : vector<1x128xf32> to vector<8x128xf32>
      %38 = vector.broadcast %cst_14 : f32 to vector<8x128xf32>
      %39 = arith.select %35, %37, %38 : vector<8x128xi1>, vector<8x128xf32>
      %40 = vector.shape_cast %27 : vector<1x128xf32> to vector<1x128xf32>
      %41 = vector.broadcast %40 : vector<1x128xf32> to vector<8x128xf32>
      %42 = arith.select %33, %41, %39 : vector<8x128xi1>, vector<8x128xf32>
      %43 = vector.shape_cast %42 : vector<8x128xf32> to vector<1x8x128xf32>
      %c0_15 = arith.constant 0 : index
      %c0_16 = arith.constant 0 : index
      %c0_17 = arith.constant 0 : index
      %44 = vector.load %arg4[%c0_15, %c0_16, %c0_17] : memref<1x8x128xf32, #tpu.memory_space<vmem>>, vector<1x8x128xf32>
      tpu.vector_store %arg4[%c0_15, %c0_16, %c0_17], %43 {strides = array<i32>} : memref<1x8x128xf32, #tpu.memory_space<vmem>>, vector<1x8x128xf32>,
    } else {
    }
    return
  }
  func.func @transform_0(%arg0: i32) -> (i32, i32) {
    %c0_i32 = arith.constant 0 : i32
    %c0_i32_0 = arith.constant 0 : i32
    return %arg0, %c0_i32 : i32, i32
  }
  func.func @transform_1(%arg0: i32) -> (i32, i32) {
    %c0_i32 = arith.constant 0 : i32
    %c0_i32_0 = arith.constant 0 : i32
    %c0_i32_1 = arith.constant 0 : i32
    return %c0_i32, %c0_i32_0 : i32, i32
  }
  func.func @transform_2(%arg0: i32) -> (i32, i32) {
    %c0_i32 = arith.constant 0 : i32
    %c0_i32_0 = arith.constant 0 : i32
    %c0_i32_1 = arith.constant 0 : i32
    return %c0_i32, %c0_i32_0 : i32, i32
  }
  func.func @transform_3(%arg0: i32) -> (i32, i32, i32) {
    %c0_i32 = arith.constant 0 : i32
    %c0_i32_0 = arith.constant 0 : i32
    %c0_i32_1 = arith.constant 0 : i32
    return %arg0, %c0_i32, %c0_i32_0 : i32, i32, i32
  }
}

</mosaic_0001>

<llo_original>
// kernel: tpu_custom_call.1
$region0: #{tpu_custom_call.1}
  #allocation0 [shape = 'u32[]', space=smem, size = 0x4, offset = 0x4, fixed_abs, tag = 'smem constant byte address 0x4 - core index']
  #allocation1 [shape = 'u32[144,128]{1,0:T(1,128)}', space=vmem, size = 0x12000, scoped, tag = 'internal scratch']
  %s0 = inlined_call_operand.vmem [shape: f32[1280,16], index: 0, kind: input, shape index: {}]
  %s1 = inlined_call_operand.vmem [shape: bf16[16,128], index: 1, kind: input, shape index: {}]
  %s2 = inlined_call_operand.vmem [shape: f32[1,128], index: 2, kind: input, shape index: {}]
  %s3 = inlined_call_operand.hbm [shape: f32[2,8,128], index: 3, kind: output, shape index: {}]
  %s4 = sld [smem:[#allocation0]]
  $region53: #{tpu_custom_call.1} parent=0
    _
  %s6 = ssub.s32 1, %s4
  %s7 = scalar_select 0, %s6, %s4
  $region1: #{tpu_custom_call.1} parent=0
    #allocation2 [shape = 'u8[8192]{0}', space=vmem, size = 0x2000, scoped, tag = 'output window, operand 0']
    #allocation3 [shape = 's32[2]{0}', space=sflag, size = 0x8, scoped, tag = 'scoped memory for tpu_custom_call.1']
    %8 = vsyncpa [#allocation3], 0
    %s9 = scalar_lea.sflag [#allocation3], 1
    %10 = vsyncpa %s9, 0
    loop: start=0, step=1, limit=4
    $region2: #{tpu_custom_call.1} parent=1 // loop_pre_header
      _
    $region3: #{tpu_custom_call.1} parent=1 // loop_header
      %s12 = sphi 0, %s16
      %p13 = scmp.ge.s32.totalorder %s12, 4
      %s22 = sphi 0, %s24
      %s25 = sphi 0, %s22
      %s26 = sphi 0, %s25
      %s42 = sphi 0, %s26
      %s46 = sphi 0, %s46
      %s48 = sphi 0, %s46
      %s49 = sphi 0, %s48
      %s63 = sphi 0, %s49
      %s67 = sphi 0, %s67
      %s69 = sphi 0, %s67
      %s70 = sphi 0, %s69
      %s84 = sphi 0, %s70
      %s90 = sphi 0, %s92
      %s93 = sphi 0, %s90
      %s94 = sphi 0, %s93
      %s110 = sphi 0, %s94
    $region4: #{tpu_custom_call.1} parent=1 // loop_header_branch
      %15 = sbr.rel (%p13) target = $region8
    $region5: #{tpu_custom_call.1} parent=1 // loop_body
      %s17 = ssub.s32 %s12, 1
      %s18 = ssub.s32 %s12, 2
      %s19 = sadd.s32 %s12, 1
      %s20 = ssub.s32 %s12, %s19
      %p21 = scmp.eq.s32.totalorder %s20, 0
      %s23 = sadd.s32 %s22, 1
      %s24 = scalar_select %p21, %s22, %s23
      %p27 = pneg %p21
      %p28 = scmp.eq.s32.totalorder %s12, 1
      %p29 = por %p27, %p28
      %p30 = scmp.ne.s32.totalorder %s22, %s25
      %p31 = scmp.eq.s32.totalorder %s12, 0
      %p32 = por %p30, %p31
      %p33 = scmp.ne.s32.totalorder %s22, %s25
      %p34 = scmp.eq.s32.totalorder %s17, 1
      %p35 = por %p33, %p34
      %p36 = scmp.ne.s32.totalorder %s25, %s26
      %p37 = scmp.eq.s32.totalorder %s17, 0
      %p38 = por %p36, %p37
      %p39 = scmp.ne.s32.totalorder %s25, %s26
      %p40 = scmp.eq.s32.totalorder %s18, 1
      %p41 = por %p39, %p40
      %p43 = scmp.ne.s32.totalorder %s26, %s42
      %p44 = scmp.eq.s32.totalorder %s18, 0
      %p45 = por %p43, %p44
      %s47 = sadd.s32 %s46, 1
      %p50 = scmp.eq.s32.totalorder %s12, 1
      %p51 = scmp.ne.s32.totalorder %s46, %s48
      %p52 = scmp.eq.s32.totalorder %s12, 0
      %p53 = por %p51, %p52
      %p54 = scmp.ne.s32.totalorder %s46, %s48
      %p55 = scmp.eq.s32.totalorder %s17, 1
      %p56 = por %p54, %p55
      %p57 = scmp.ne.s32.totalorder %s48, %s49
      %p58 = scmp.eq.s32.totalorder %s17, 0
      %p59 = por %p57, %p58
      %p60 = scmp.ne.s32.totalorder %s48, %s49
      %p61 = scmp.eq.s32.totalorder %s18, 1
      %p62 = por %p60, %p61
      %p64 = scmp.ne.s32.totalorder %s49, %s63
      %p65 = scmp.eq.s32.totalorder %s18, 0
      %p66 = por %p64, %p65
      %s68 = sadd.s32 %s67, 1
      %p71 = scmp.eq.s32.totalorder %s12, 1
      %p72 = scmp.ne.s32.totalorder %s67, %s69
      %p73 = scmp.eq.s32.totalorder %s12, 0
      %p74 = por %p72, %p73
      %p75 = scmp.ne.s32.totalorder %s67, %s69
      %p76 = scmp.eq.s32.totalorder %s17, 1
      %p77 = por %p75, %p76
      %p78 = scmp.ne.s32.totalorder %s69, %s70
      %p79 = scmp.eq.s32.totalorder %s17, 0
      %p80 = por %p78, %p79
      %p81 = scmp.ne.s32.totalorder %s69, %s70
      %p82 = scmp.eq.s32.totalorder %s18, 1
      %p83 = por %p81, %p82
      %p85 = scmp.ne.s32.totalorder %s70, %s84
      %p86 = scmp.eq.s32.totalorder %s18, 0
      %p87 = por %p85, %p86
      %s88 = ssub.s32 %s12, %s19
      %p89 = scmp.eq.s32.totalorder %s88, 0
      %s91 = sadd.s32 %s90, 1
      %s92 = scalar_select %p89, %s90, %s91
      %p95 = pneg %p89
      %p96 = scmp.eq.s32.totalorder %s12, 1
      %p97 = por %p95, %p96
      %p98 = scmp.ne.s32.totalorder %s90, %s93
      %p99 = scmp.eq.s32.totalorder %s12, 0
      %p100 = por %p98, %p99
      %p101 = scmp.ne.s32.totalorder %s90, %s93
      %p102 = scmp.eq.s32.totalorder %s17, 1
      %p103 = por %p101, %p102
      %p104 = scmp.ne.s32.totalorder %s93, %s94
      %p105 = scmp.eq.s32.totalorder %s17, 0
      %p106 = por %p104, %p105
      %p107 = scmp.ne.s32.totalorder %s93, %s94
      %p108 = scmp.eq.s32.totalorder %s18, 1
      %p109 = por %p107, %p108
      %p111 = scmp.ne.s32.totalorder %s94, %s110
      %p112 = scmp.eq.s32.totalorder %s18, 0
      %p113 = por %p111, %p112
      %p114 = scmp.le.s32.totalorder 1, %s12
      %p115 = scmp.lt.s32.totalorder %s12, 3
      %p116 = pnand %p114, %p115
      %p117 = pneg %p116
      // Predicated region
      $region9: #{tpu_custom_call.1} parent=5 // pred_check
        _
      $region10: #{tpu_custom_call.1} parent=5 // pred_check_branch
        %119 = sbr.rel (%p116) target = $region12
      $region11: #{tpu_custom_call.1} parent=5 // pred_region
        %s120 = ssub.s32 %s12, 1
        // Predicated region
        $region13: #{tpu_custom_call.1} parent=11 // pred_check
          %p121 = pneg %p59
        $region14: #{tpu_custom_call.1} parent=11 // pred_check_branch
          %123 = sbr.rel (%p121) target = $region16
        $region15: #{tpu_custom_call.1} parent=11 // pred_region
          _
        $region16: #{tpu_custom_call.1} parent=11 // pred_fallthru
          _
        // Predicated region
        $region17: #{tpu_custom_call.1} parent=11 // pred_check
          %p124 = pneg %p80
        $region18: #{tpu_custom_call.1} parent=11 // pred_check_branch
          %126 = sbr.rel (%p124) target = $region20
        $region19: #{tpu_custom_call.1} parent=11 // pred_region
          _
        $region20: #{tpu_custom_call.1} parent=11 // pred_fallthru
          _
      $region12: #{tpu_custom_call.1} parent=5 // pred_fallthru
        _
      %p127 = scmp.lt.s32.totalorder %s12, 2
      // Predicated region
      $region21: #{tpu_custom_call.1} parent=5 // pred_check
        %p128 = pneg %p127
      $region22: #{tpu_custom_call.1} parent=5 // pred_check_branch
        %130 = sbr.rel (%p128) target = $region24
      $region23: #{tpu_custom_call.1} parent=5 // pred_region
        // Predicated region
        $region25: #{tpu_custom_call.1} parent=23 // pred_check
          %p131 = pneg %p32
        $region26: #{tpu_custom_call.1} parent=23 // pred_check_branch
          %133 = sbr.rel (%p131) target = $region28
        $region27: #{tpu_custom_call.1} parent=23 // pred_region
          %s134 = smul.u32 128, %s12
          %s135 = ssub.s32 160, %s134
          %p136 = scmp.lt.s32.totalorder %s135, 128
          %s137 = scalar_select %p136, %s135, 128
          %s138 = smul.u32 128, %s137
          %p139 = scmp.lt.s32.totalorder %s134, 159
          %s140 = scalar_select %p139, %s134, 159
          %s141 = smul.addr %s140, 8
          %s142 = scalar_lea.vmem %s0, %s141
          %s143 = smul.u32 128, %s12
          %s144 = ssub.s32 160, %s143
          %p145 = scmp.lt.s32.totalorder %s144, 128
          %s146 = scalar_select %p145, %s144, 128
          %s147 = smul.u32 128, %s146
        $region28: #{tpu_custom_call.1} parent=23 // pred_fallthru
          _
      $region24: #{tpu_custom_call.1} parent=5 // pred_fallthru
        _
      %p148 = scmp.le.s32.totalorder 1, %s12
      %p149 = scmp.lt.s32.totalorder %s12, 3
      %p150 = pnand %p148, %p149
      %p151 = pneg %p150
      // Predicated region
      $region29: #{tpu_custom_call.1} parent=5 // pred_check
        _
      $region30: #{tpu_custom_call.1} parent=5 // pred_check_branch
        %153 = sbr.rel (%p150) target = $region32
      $region31: #{tpu_custom_call.1} parent=5 // pred_region
        %s154 = ssub.s32 %s12, 1
        %s155 = smul.u32 128, %s17
        %s156 = ssub.s32 160, %s155
        %p157 = scmp.lt.s32.totalorder %s156, 128
        %s158 = scalar_select %p157, %s156, 128
        %s159 = smul.u32 128, %s158
        %p160 = scmp.lt.s32.totalorder %s155, 159
        %s161 = scalar_select %p160, %s155, 159
        %s162 = smul.addr %s161, 8
        %s163 = scalar_lea.vmem %s0, %s162
        %p164 = pneg %p38
        %p165 = pneg %p35
        %p166 = pneg %p59
        %p167 = pneg %p56
        %p168 = pneg %p80
        %p169 = pneg %p77
        %p170 = pneg %p106
        %p171 = pneg %p103
        %s172 = sand.u32 %s93, 1
        %s173 = scalar_lea.sflag [#allocation3], %s172
        %s174 = sand.u32 %s93, 1
        %s175 = smul.addr %s174, 8
        %s176 = scalar_lea.vmem [#allocation2], %s175
        %s177 = smul.u32 128, %s17
        %s178 = ssub.s32 160, %s177
        %p179 = scmp.lt.s32.totalorder %s178, 128
        %s180 = scalar_select %p179, %s178, 128
        %s181 = smul.u32 128, %s180
        %p182 = scmp.lt.s32.totalorder %s177, 159
        %s183 = scalar_select %p182, %s177, 159
        %s184 = smul.addr %s183, 8
        %s185 = scalar_lea.vmem %s0, %s184
        %s186 = smul.u32 128, %s17
        %s187 = ssub.s32 160, %s186
        %p188 = scmp.lt.s32.totalorder %s187, 128
        %s189 = scalar_select %p188, %s187, 128
        %s190 = smul.u32 128, %s189
        %v192 = vld [vmem:[%s185] sm:$0xff]
        %v193 = vld [vmem:[%s185 + $0x8] sm:$0xff]
        %v194 = vld [vmem:[%s185 + $0x10] sm:$0xff]
        %v195 = vld [vmem:[%s185 + $0x18] sm:$0xff]
        %v196 = vld [vmem:[%s185 + $0x20] sm:$0xff]
        %v197 = vld [vmem:[%s185 + $0x28] sm:$0xff]
        %v198 = vld [vmem:[%s185 + $0x30] sm:$0xff]
        %v199 = vld [vmem:[%s185 + $0x38] sm:$0xff]
        %v200 = vld [vmem:[%s185 + $0x40] sm:$0xff]
        %v201 = vld [vmem:[%s185 + $0x48] sm:$0xff]
        %v202 = vld [vmem:[%s185 + $0x50] sm:$0xff]
        %v203 = vld [vmem:[%s185 + $0x58] sm:$0xff]
        %v204 = vld [vmem:[%s185 + $0x60] sm:$0xff]
        %v205 = vld [vmem:[%s185 + $0x68] sm:$0xff]
        %v206 = vld [vmem:[%s185 + $0x70] sm:$0xff]
        %v207 = vld [vmem:[%s185 + $0x78] sm:$0xff]
        %v208 = vld [vmem:[%s185 + $0x80] sm:$0xff]
        %v209 = vld [vmem:[%s185 + $0x88] sm:$0xff]
        %v210 = vld [vmem:[%s185 + $0x90] sm:$0xff]
        %v211 = vld [vmem:[%s185 + $0x98] sm:$0xff]
        %v212 = vld [vmem:[%s185 + $0xa0] sm:$0xff]
        %v213 = vld [vmem:[%s185 + $0xa8] sm:$0xff]
        %v214 = vld [vmem:[%s185 + $0xb0] sm:$0xff]
        %v215 = vld [vmem:[%s185 + $0xb8] sm:$0xff]
        %v216 = vld [vmem:[%s185 + $0xc0] sm:$0xff]
        %v217 = vld [vmem:[%s185 + $0xc8] sm:$0xff]
        %v218 = vld [vmem:[%s185 + $0xd0] sm:$0xff]
        %v219 = vld [vmem:[%s185 + $0xd8] sm:$0xff]
        %v220 = vld [vmem:[%s185 + $0xe0] sm:$0xff]
        %v221 = vld [vmem:[%s185 + $0xe8] sm:$0xff]
        %v222 = vld [vmem:[%s185 + $0xf0] sm:$0xff]
        %v223 = vld [vmem:[%s185 + $0xf8] sm:$0xff]
        %v224 = vld [vmem:[%s185 + $0x100] sm:$0xff]
        %v225 = vld [vmem:[%s185 + $0x108] sm:$0xff]
        %v226 = vld [vmem:[%s185 + $0x110] sm:$0xff]
        %v227 = vld [vmem:[%s185 + $0x118] sm:$0xff]
        %v228 = vld [vmem:[%s185 + $0x120] sm:$0xff]
        %v229 = vld [vmem:[%s185 + $0x128] sm:$0xff]
        %v230 = vld [vmem:[%s185 + $0x130] sm:$0xff]
        %v231 = vld [vmem:[%s185 + $0x138] sm:$0xff]
        %v232 = vld [vmem:[%s185 + $0x140] sm:$0xff]
        %v233 = vld [vmem:[%s185 + $0x148] sm:$0xff]
        %v234 = vld [vmem:[%s185 + $0x150] sm:$0xff]
        %v235 = vld [vmem:[%s185 + $0x158] sm:$0xff]
        %v236 = vld [vmem:[%s185 + $0x160] sm:$0xff]
        %v237 = vld [vmem:[%s185 + $0x168] sm:$0xff]
        %v238 = vld [vmem:[%s185 + $0x170] sm:$0xff]
        %v239 = vld [vmem:[%s185 + $0x178] sm:$0xff]
        %v240 = vld [vmem:[%s185 + $0x180] sm:$0xff]
        %v241 = vld [vmem:[%s185 + $0x188] sm:$0xff]
        %v242 = vld [vmem:[%s185 + $0x190] sm:$0xff]
        %v243 = vld [vmem:[%s185 + $0x198] sm:$0xff]
        %v244 = vld [vmem:[%s185 + $0x1a0] sm:$0xff]
        %v245 = vld [vmem:[%s185 + $0x1a8] sm:$0xff]
        %v246 = vld [vmem:[%s185 + $0x1b0] sm:$0xff]
        %v247 = vld [vmem:[%s185 + $0x1b8] sm:$0xff]
        %v248 = vld [vmem:[%s185 + $0x1c0] sm:$0xff]
        %v249 = vld [vmem:[%s185 + $0x1c8] sm:$0xff]
        %v250 = vld [vmem:[%s185 + $0x1d0] sm:$0xff]
        %v251 = vld [vmem:[%s185 + $0x1d8] sm:$0xff]
        %v252 = vld [vmem:[%s185 + $0x1e0] sm:$0xff]
        %v253 = vld [vmem:[%s185 + $0x1e8] sm:$0xff]
        %v254 = vld [vmem:[%s185 + $0x1f0] sm:$0xff]
        %v255 = vld [vmem:[%s185 + $0x1f8] sm:$0xff]
        %v256 = vld [vmem:[%s185 + $0x200] sm:$0xff]
        %v257 = vld [vmem:[%s185 + $0x208] sm:$0xff]
        %v258 = vld [vmem:[%s185 + $0x210] sm:$0xff]
        %v259 = vld [vmem:[%s185 + $0x218] sm:$0xff]
        %v260 = vld [vmem:[%s185 + $0x220] sm:$0xff]
        %v261 = vld [vmem:[%s185 + $0x228] sm:$0xff]
        %v262 = vld [vmem:[%s185 + $0x230] sm:$0xff]
        %v263 = vld [vmem:[%s185 + $0x238] sm:$0xff]
        %v264 = vld [vmem:[%s185 + $0x240] sm:$0xff]
        %v265 = vld [vmem:[%s185 + $0x248] sm:$0xff]
        %v266 = vld [vmem:[%s185 + $0x250] sm:$0xff]
        %v267 = vld [vmem:[%s185 + $0x258] sm:$0xff]
        %v268 = vld [vmem:[%s185 + $0x260] sm:$0xff]
        %v269 = vld [vmem:[%s185 + $0x268] sm:$0xff]
        %v270 = vld [vmem:[%s185 + $0x270] sm:$0xff]
        %v271 = vld [vmem:[%s185 + $0x278] sm:$0xff]
        %v272 = vld [vmem:[%s185 + $0x280] sm:$0xff]
        %v273 = vld [vmem:[%s185 + $0x288] sm:$0xff]
        %v274 = vld [vmem:[%s185 + $0x290] sm:$0xff]
        %v275 = vld [vmem:[%s185 + $0x298] sm:$0xff]
        %v276 = vld [vmem:[%s185 + $0x2a0] sm:$0xff]
        %v277 = vld [vmem:[%s185 + $0x2a8] sm:$0xff]
        %v278 = vld [vmem:[%s185 + $0x2b0] sm:$0xff]
        %v279 = vld [vmem:[%s185 + $0x2b8] sm:$0xff]
        %v280 = vld [vmem:[%s185 + $0x2c0] sm:$0xff]
        %v281 = vld [vmem:[%s185 + $0x2c8] sm:$0xff]
        %v282 = vld [vmem:[%s185 + $0x2d0] sm:$0xff]
        %v283 = vld [vmem:[%s185 + $0x2d8] sm:$0xff]
        %v284 = vld [vmem:[%s185 + $0x2e0] sm:$0xff]
        %v285 = vld [vmem:[%s185 + $0x2e8] sm:$0xff]
        %v286 = vld [vmem:[%s185 + $0x2f0] sm:$0xff]
        %v287 = vld [vmem:[%s185 + $0x2f8] sm:$0xff]
        %v288 = vld [vmem:[%s185 + $0x300] sm:$0xff]
        %v289 = vld [vmem:[%s185 + $0x308] sm:$0xff]
        %v290 = vld [vmem:[%s185 + $0x310] sm:$0xff]
        %v291 = vld [vmem:[%s185 + $0x318] sm:$0xff]
        %v292 = vld [vmem:[%s185 + $0x320] sm:$0xff]
        %v293 = vld [vmem:[%s185 + $0x328] sm:$0xff]
        %v294 = vld [vmem:[%s185 + $0x330] sm:$0xff]
        %v295 = vld [vmem:[%s185 + $0x338] sm:$0xff]
        %v296 = vld [vmem:[%s185 + $0x340] sm:$0xff]
        %v297 = vld [vmem:[%s185 + $0x348] sm:$0xff]
        %v298 = vld [vmem:[%s185 + $0x350] sm:$0xff]
        %v299 = vld [vmem:[%s185 + $0x358] sm:$0xff]
        %v300 = vld [vmem:[%s185 + $0x360] sm:$0xff]
        %v301 = vld [vmem:[%s185 + $0x368] sm:$0xff]
        %v302 = vld [vmem:[%s185 + $0x370] sm:$0xff]
        %v303 = vld [vmem:[%s185 + $0x378] sm:$0xff]
        %v304 = vld [vmem:[%s185 + $0x380] sm:$0xff]
        %v305 = vld [vmem:[%s185 + $0x388] sm:$0xff]
        %v306 = vld [vmem:[%s185 + $0x390] sm:$0xff]
        %v307 = vld [vmem:[%s185 + $0x398] sm:$0xff]
        %v308 = vld [vmem:[%s185 + $0x3a0] sm:$0xff]
        %v309 = vld [vmem:[%s185 + $0x3a8] sm:$0xff]
        %v310 = vld [vmem:[%s185 + $0x3b0] sm:$0xff]
        %v311 = vld [vmem:[%s185 + $0x3b8] sm:$0xff]
        %v312 = vld [vmem:[%s185 + $0x3c0] sm:$0xff]
        %v313 = vld [vmem:[%s185 + $0x3c8] sm:$0xff]
        %v314 = vld [vmem:[%s185 + $0x3d0] sm:$0xff]
        %v315 = vld [vmem:[%s185 + $0x3d8] sm:$0xff]
        %v316 = vld [vmem:[%s185 + $0x3e0] sm:$0xff]
        %v317 = vld [vmem:[%s185 + $0x3e8] sm:$0xff]
        %v318 = vld [vmem:[%s185 + $0x3f0] sm:$0xff]
        %v319 = vld [vmem:[%s185 + $0x3f8] sm:$0xff]
        %v320 = vpack.c.bf16 %v193, %v192
        %v321 = vpack.c.bf16 %v195, %v194
        %v322 = vpack.c.bf16 %v197, %v196
        %v323 = vpack.c.bf16 %v199, %v198
        %v324 = vpack.c.bf16 %v201, %v200
        %v325 = vpack.c.bf16 %v203, %v202
        %v326 = vpack.c.bf16 %v205, %v204
        %v327 = vpack.c.bf16 %v207, %v206
        %v328 = vpack.c.bf16 %v209, %v208
        %v329 = vpack.c.bf16 %v211, %v210
        %v330 = vpack.c.bf16 %v213, %v212
        %v331 = vpack.c.bf16 %v215, %v214
        %v332 = vpack.c.bf16 %v217, %v216
        %v333 = vpack.c.bf16 %v219, %v218
        %v334 = vpack.c.bf16 %v221, %v220
        %v335 = vpack.c.bf16 %v223, %v222
        %v336 = vpack.c.bf16 %v225, %v224
        %v337 = vpack.c.bf16 %v227, %v226
        %v338 = vpack.c.bf16 %v229, %v228
        %v339 = vpack.c.bf16 %v231, %v230
        %v340 = vpack.c.bf16 %v233, %v232
        %v341 = vpack.c.bf16 %v235, %v234
        %v342 = vpack.c.bf16 %v237, %v236
        %v343 = vpack.c.bf16 %v239, %v238
        %v344 = vpack.c.bf16 %v241, %v240
        %v345 = vpack.c.bf16 %v243, %v242
        %v346 = vpack.c.bf16 %v245, %v244
        %v347 = vpack.c.bf16 %v247, %v246
        %v348 = vpack.c.bf16 %v249, %v248
        %v349 = vpack.c.bf16 %v251, %v250
        %v350 = vpack.c.bf16 %v253, %v252
        %v351 = vpack.c.bf16 %v255, %v254
        %v352 = vpack.c.bf16 %v257, %v256
        %v353 = vpack.c.bf16 %v259, %v258
        %v354 = vpack.c.bf16 %v261, %v260
        %v355 = vpack.c.bf16 %v263, %v262
        %v356 = vpack.c.bf16 %v265, %v264
        %v357 = vpack.c.bf16 %v267, %v266
        %v358 = vpack.c.bf16 %v269, %v268
        %v359 = vpack.c.bf16 %v271, %v270
        %v360 = vpack.c.bf16 %v273, %v272
        %v361 = vpack.c.bf16 %v275, %v274
        %v362 = vpack.c.bf16 %v277, %v276
        %v363 = vpack.c.bf16 %v279, %v278
        %v364 = vpack.c.bf16 %v281, %v280
        %v365 = vpack.c.bf16 %v283, %v282
        %v366 = vpack.c.bf16 %v285, %v284
        %v367 = vpack.c.bf16 %v287, %v286
        %v368 = vpack.c.bf16 %v289, %v288
        %v369 = vpack.c.bf16 %v291, %v290
        %v370 = vpack.c.bf16 %v293, %v292
        %v371 = vpack.c.bf16 %v295, %v294
        %v372 = vpack.c.bf16 %v297, %v296
        %v373 = vpack.c.bf16 %v299, %v298
        %v374 = vpack.c.bf16 %v301, %v300
        %v375 = vpack.c.bf16 %v303, %v302
        %v376 = vpack.c.bf16 %v305, %v304
        %v377 = vpack.c.bf16 %v307, %v306
        %v378 = vpack.c.bf16 %v309, %v308
        %v379 = vpack.c.bf16 %v311, %v310
        %v380 = vpack.c.bf16 %v313, %v312
        %v381 = vpack.c.bf16 %v315, %v314
        %v382 = vpack.c.bf16 %v317, %v316
        %v383 = vpack.c.bf16 %v319, %v318
        %v384 = vld [vmem:[%s1] sm:$0xf]
        %v385 = vld [vmem:[%s1 + $0x4] sm:$0xf]
        %v386 = vld [vmem:[%s2] sm:$0x1]
        %v388 = vlaneseq
        %v389 = vshrl.u32 %v388, 7
        %v390 = vsub.s32 0, %v389
        %v391 = vrot.slane %v386, %v390
        %v395 = vunpack.c.l.b16 %v384
        %v396 = vunpack.c.l.b16 %v385
        %v397 = vpack.c.b16 %v396, %v395
        %vm399 = vcmask 130048
        %v401 = vsel %vm399, %v320, 0
        %v404 = vsel %vm399, %v321, 0
        %v407 = vsel %vm399, %v322, 0
        %v410 = vsel %vm399, %v323, 0
        %v413 = vsel %vm399, %v324, 0
        %v416 = vsel %vm399, %v325, 0
        %v419 = vsel %vm399, %v326, 0
        %v422 = vsel %vm399, %v327, 0
        %v425 = vsel %vm399, %v328, 0
        %v428 = vsel %vm399, %v329, 0
        %v431 = vsel %vm399, %v330, 0
        %v434 = vsel %vm399, %v331, 0
        %v437 = vsel %vm399, %v332, 0
        %v440 = vsel %vm399, %v333, 0
        %v443 = vsel %vm399, %v334, 0
        %v446 = vsel %vm399, %v335, 0
        %v449 = vsel %vm399, %v336, 0
        %v452 = vsel %vm399, %v337, 0
        %v455 = vsel %vm399, %v338, 0
        %v458 = vsel %vm399, %v339, 0
        %v461 = vsel %vm399, %v340, 0
        %v464 = vsel %vm399, %v341, 0
        %v467 = vsel %vm399, %v342, 0
        %v470 = vsel %vm399, %v343, 0
        %v473 = vsel %vm399, %v344, 0
        %v476 = vsel %vm399, %v345, 0
        %v479 = vsel %vm399, %v346, 0
        %v482 = vsel %vm399, %v347, 0
        %v485 = vsel %vm399, %v348, 0
        %v488 = vsel %vm399, %v349, 0
        %v491 = vsel %vm399, %v350, 0
        %v494 = vsel %vm399, %v351, 0
        %v497 = vsel %vm399, %v352, 0
        %v500 = vsel %vm399, %v353, 0
        %v503 = vsel %vm399, %v354, 0
        %v506 = vsel %vm399, %v355, 0
        %v509 = vsel %vm399, %v356, 0
        %v512 = vsel %vm399, %v357, 0
        %v515 = vsel %vm399, %v358, 0
        %v518 = vsel %vm399, %v359, 0
        %v521 = vsel %vm399, %v360, 0
        %v524 = vsel %vm399, %v361, 0
        %v527 = vsel %vm399, %v362, 0
        %v530 = vsel %vm399, %v363, 0
        %v533 = vsel %vm399, %v364, 0
        %v536 = vsel %vm399, %v365, 0
        %v539 = vsel %vm399, %v366, 0
        %v542 = vsel %vm399, %v367, 0
        %v545 = vsel %vm399, %v368, 0
        %v548 = vsel %vm399, %v369, 0
        %v551 = vsel %vm399, %v370, 0
        %v554 = vsel %vm399, %v371, 0
        %v557 = vsel %vm399, %v372, 0
        %v560 = vsel %vm399, %v373, 0
        %v563 = vsel %vm399, %v374, 0
        %v566 = vsel %vm399, %v375, 0
        %v569 = vsel %vm399, %v376, 0
        %v572 = vsel %vm399, %v377, 0
        %v575 = vsel %vm399, %v378, 0
        %v578 = vsel %vm399, %v379, 0
        %v581 = vsel %vm399, %v380, 0
        %v584 = vsel %vm399, %v381, 0
        %v587 = vsel %vm399, %v382, 0
        %v590 = vsel %vm399, %v383, 0
        %592 = vmatprep.subr.bf16.mxu0 0
        %593 = vmatpush1.bf16.msra.mxu0 %v397
        %594 = vmatprep.subr.bf16.mxu0 0
        %595 = vmatpush1.bf16.msra.mxu0 0
        %596 = vmatprep.subr.bf16.mxu0 0
        %597 = vmatpush1.bf16.msra.mxu0 0
        %598 = vmatprep.subr.bf16.mxu0 0
        %599 = vmatpush1.bf16.msra.mxu0 0
        %600 = vmatprep.subr.bf16.mxu0 0
        %601 = vmatpush1.bf16.msra.mxu0 0
        %602 = vmatprep.subr.bf16.mxu0 0
        %603 = vmatpush1.bf16.msra.mxu0 0
        %604 = vmatprep.subr.bf16.mxu0 0
        %605 = vmatpush1.bf16.msra.mxu0 0
        %606 = vmatprep.subr.bf16.mxu0 0
        %607 = vmatpush1.bf16.msra.mxu0 0
        %608 = vmatprep.subr.bf16.mxu0 0
        %609 = vmatpush1.bf16.msra.mxu0 0
        %610 = vmatprep.subr.bf16.mxu0 0
        %611 = vmatpush1.bf16.msra.mxu0 0
        %612 = vmatprep.subr.bf16.mxu0 0
        %613 = vmatpush1.bf16.msra.mxu0 0
        %614 = vmatprep.subr.bf16.mxu0 0
        %615 = vmatpush1.bf16.msra.mxu0 0
        %616 = vmatprep.subr.bf16.mxu0 0
        %617 = vmatpush1.bf16.msra.mxu0 0
        %618 = vmatprep.subr.bf16.mxu0 0
        %619 = vmatpush1.bf16.msra.mxu0 0
        %620 = vmatprep.subr.bf16.mxu0 0
        %621 = vmatpush1.bf16.msra.mxu0 0
        %622 = vmatprep.subr.bf16.mxu0 0
        %623 = vmatpush1.bf16.msra.mxu0 0
        %624 = vmatprep.mubr.bf16.mxu0 0
        %625 = vmatmul.mubr.bf16.gmra.mrb[0].mxu0 %v401
        %v626 = vpop.f32.mrb[0].mxu0
        %v627 = vadd.f32 %v391, %v626
        %v628 = vpop.f32.mrb[0].mxu0
        %v629 = vpop.f32.mrb[0].mxu0
        %v630 = vadd.f32 %v391, %v629
        %v631 = vpop.f32.mrb[0].mxu0
        %632 = vmatprep.mubr.bf16.mxu0 0
        %633 = vmatmul.mubr.bf16.gmra.mrb[0].mxu0 %v404
        %v634 = vpop.f32.mrb[0].mxu0
        %v635 = vadd.f32 %v391, %v634
        %v636 = vpop.f32.mrb[0].mxu0
        %v637 = vpop.f32.mrb[0].mxu0
        %v638 = vadd.f32 %v391, %v637
        %v639 = vpop.f32.mrb[0].mxu0
        %640 = vmatprep.mubr.bf16.mxu0 0
        %641 = vmatmul.mubr.bf16.gmra.mrb[0].mxu0 %v407
        %v642 = vpop.f32.mrb[0].mxu0
        %v643 = vadd.f32 %v391, %v642
        %v644 = vpop.f32.mrb[0].mxu0
        %v645 = vpop.f32.mrb[0].mxu0
        %v646 = vadd.f32 %v391, %v645
        %v647 = vpop.f32.mrb[0].mxu0
        %648 = vmatprep.mubr.bf16.mxu0 0
        %649 = vmatmul.mubr.bf16.gmra.mrb[0].mxu0 %v410
        %v650 = vpop.f32.mrb[0].mxu0
        %v651 = vadd.f32 %v391, %v650
        %v652 = vpop.f32.mrb[0].mxu0
        %v653 = vpop.f32.mrb[0].mxu0
        %v654 = vadd.f32 %v391, %v653
        %v655 = vpop.f32.mrb[0].mxu0
        %656 = vmatprep.mubr.bf16.mxu0 0
        %657 = vmatmul.mubr.bf16.gmra.mrb[0].mxu0 %v413
        %v658 = vpop.f32.mrb[0].mxu0
        %v659 = vadd.f32 %v391, %v658
        %v660 = vpop.f32.mrb[0].mxu0
        %v661 = vpop.f32.mrb[0].mxu0
        %v662 = vadd.f32 %v391, %v661
        %v663 = vpop.f32.mrb[0].mxu0
        %664 = vmatprep.mubr.bf16.mxu0 0
        %665 = vmatmul.mubr.bf16.gmra.mrb[0].mxu0 %v416
        %v666 = vpop.f32.mrb[0].mxu0
        %v667 = vadd.f32 %v391, %v666
        %v668 = vpop.f32.mrb[0].mxu0
        %v669 = vpop.f32.mrb[0].mxu0
        %v670 = vadd.f32 %v391, %v669
        %v671 = vpop.f32.mrb[0].mxu0
        %672 = vmatprep.mubr.bf16.mxu0 0
        %673 = vmatmul.mubr.bf16.gmra.mrb[0].mxu0 %v419
        %v674 = vpop.f32.mrb[0].mxu0
        %v675 = vadd.f32 %v391, %v674
        %v676 = vpop.f32.mrb[0].mxu0
        %v677 = vpop.f32.mrb[0].mxu0
        %v678 = vadd.f32 %v391, %v677
        %v679 = vpop.f32.mrb[0].mxu0
        %680 = vmatprep.mubr.bf16.mxu0 0
        %681 = vmatmul.mubr.bf16.gmra.mrb[0].mxu0 %v422
        %v682 = vpop.f32.mrb[0].mxu0
        %v683 = vadd.f32 %v391, %v682
        %v684 = vpop.f32.mrb[0].mxu0
        %v685 = vpop.f32.mrb[0].mxu0
        %v686 = vadd.f32 %v391, %v685
        %v687 = vpop.f32.mrb[0].mxu0
        %688 = vmatprep.mubr.bf16.mxu0 0
        %689 = vmatmul.mubr.bf16.gmra.mrb[0].mxu0 %v425
        %v690 = vpop.f32.mrb[0].mxu0
        %v691 = vadd.f32 %v391, %v690
        %v692 = vpop.f32.mrb[0].mxu0
        %v693 = vpop.f32.mrb[0].mxu0
        %v694 = vadd.f32 %v391, %v693
        %v695 = vpop.f32.mrb[0].mxu0
        %696 = vmatprep.mubr.bf16.mxu0 0
        %697 = vmatmul.mubr.bf16.gmra.mrb[0].mxu0 %v428
        %v698 = vpop.f32.mrb[0].mxu0
        %v699 = vadd.f32 %v391, %v698
        %v700 = vpop.f32.mrb[0].mxu0
        %v701 = vpop.f32.mrb[0].mxu0
        %v702 = vadd.f32 %v391, %v701
        %v703 = vpop.f32.mrb[0].mxu0
        %704 = vmatprep.mubr.bf16.mxu0 0
        %705 = vmatmul.mubr.bf16.gmra.mrb[0].mxu0 %v431
        %v706 = vpop.f32.mrb[0].mxu0
        %v707 = vadd.f32 %v391, %v706
        %v708 = vpop.f32.mrb[0].mxu0
        %v709 = vpop.f32.mrb[0].mxu0
        %v710 = vadd.f32 %v391, %v709
        %v711 = vpop.f32.mrb[0].mxu0
        %712 = vmatprep.mubr.bf16.mxu0 0
        %713 = vmatmul.mubr.bf16.gmra.mrb[0].mxu0 %v434
        %v714 = vpop.f32.mrb[0].mxu0
        %v715 = vadd.f32 %v391, %v714
        %v716 = vpop.f32.mrb[0].mxu0
        %v717 = vpop.f32.mrb[0].mxu0
        %v718 = vadd.f32 %v391, %v717
        %v719 = vpop.f32.mrb[0].mxu0
        %720 = vmatprep.mubr.bf16.mxu0 0
        %721 = vmatmul.mubr.bf16.gmra.mrb[0].mxu0 %v437
        %v722 = vpop.f32.mrb[0].mxu0
        %v723 = vadd.f32 %v391, %v722
        %v724 = vpop.f32.mrb[0].mxu0
        %v725 = vpop.f32.mrb[0].mxu0
        %v726 = vadd.f32 %v391, %v725
        %v727 = vpop.f32.mrb[0].mxu0
        %728 = vmatprep.mubr.bf16.mxu0 0
        %729 = vmatmul.mubr.bf16.gmra.mrb[0].mxu0 %v440
        %v730 = vpop.f32.mrb[0].mxu0
        %v731 = vadd.f32 %v391, %v730
        %v732 = vpop.f32.mrb[0].mxu0
        %v733 = vpop.f32.mrb[0].mxu0
        %v734 = vadd.f32 %v391, %v733
        %v735 = vpop.f32.mrb[0].mxu0
        %736 = vmatprep.mubr.bf16.mxu0 0
        %737 = vmatmul.mubr.bf16.gmra.mrb[0].mxu0 %v443
        %v738 = vpop.f32.mrb[0].mxu0
        %v739 = vadd.f32 %v391, %v738
        %v740 = vpop.f32.mrb[0].mxu0
        %v741 = vpop.f32.mrb[0].mxu0
        %v742 = vadd.f32 %v391, %v741
        %v743 = vpop.f32.mrb[0].mxu0
        %744 = vmatprep.mubr.bf16.mxu0 0
        %745 = vmatmul.mubr.bf16.gmra.mrb[0].mxu0 %v446
        %v746 = vpop.f32.mrb[0].mxu0
        %v747 = vadd.f32 %v391, %v746
        %v748 = vpop.f32.mrb[0].mxu0
        %v749 = vpop.f32.mrb[0].mxu0
        %v750 = vadd.f32 %v391, %v749
        %v751 = vpop.f32.mrb[0].mxu0
        %752 = vmatprep.mubr.bf16.mxu0 0
        %753 = vmatmul.mubr.bf16.gmra.mrb[0].mxu0 %v449
        %v754 = vpop.f32.mrb[0].mxu0
        %v755 = vadd.f32 %v391, %v754
        %v756 = vpop.f32.mrb[0].mxu0
        %v757 = vpop.f32.mrb[0].mxu0
        %v758 = vadd.f32 %v391, %v757
        %v759 = vpop.f32.mrb[0].mxu0
        %760 = vmatprep.mubr.bf16.mxu0 0
        %761 = vmatmul.mubr.bf16.gmra.mrb[0].mxu0 %v452
        %v762 = vpop.f32.mrb[0].mxu0
        %v763 = vadd.f32 %v391, %v762
        %v764 = vpop.f32.mrb[0].mxu0
        %v765 = vpop.f32.mrb[0].mxu0
        %v766 = vadd.f32 %v391, %v765
        %v767 = vpop.f32.mrb[0].mxu0
        %768 = vmatprep.mubr.bf16.mxu0 0
        %769 = vmatmul.mubr.bf16.gmra.mrb[0].mxu0 %v455
        %v770 = vpop.f32.mrb[0].mxu0
        %v771 = vadd.f32 %v391, %v770
        %v772 = vpop.f32.mrb[0].mxu0
        %v773 = vpop.f32.mrb[0].mxu0
        %v774 = vadd.f32 %v391, %v773
        %v775 = vpop.f32.mrb[0].mxu0
        %776 = vmatprep.mubr.bf16.mxu0 0
        %777 = vmatmul.mubr.bf16.gmra.mrb[0].mxu0 %v458
        %v778 = vpop.f32.mrb[0].mxu0
        %v779 = vadd.f32 %v391, %v778
        %v780 = vpop.f32.mrb[0].mxu0
        %v781 = vpop.f32.mrb[0].mxu0
        %v782 = vadd.f32 %v391, %v781
        %v783 = vpop.f32.mrb[0].mxu0
        %784 = vmatprep.mubr.bf16.mxu0 0
        %785 = vmatmul.mubr.bf16.gmra.mrb[0].mxu0 %v461
        %v786 = vpop.f32.mrb[0].mxu0
        %v787 = vadd.f32 %v391, %v786
        %v788 = vpop.f32.mrb[0].mxu0
        %v789 = vpop.f32.mrb[0].mxu0
        %v790 = vadd.f32 %v391, %v789
        %v791 = vpop.f32.mrb[0].mxu0
        %792 = vmatprep.mubr.bf16.mxu0 0
        %793 = vmatmul.mubr.bf16.gmra.mrb[0].mxu0 %v464
        %v794 = vpop.f32.mrb[0].mxu0
        %v795 = vadd.f32 %v391, %v794
        %v796 = vpop.f32.mrb[0].mxu0
        %v797 = vpop.f32.mrb[0].mxu0
        %v798 = vadd.f32 %v391, %v797
        %v799 = vpop.f32.mrb[0].mxu0
        %800 = vmatprep.mubr.bf16.mxu0 0
        %801 = vmatmul.mubr.bf16.gmra.mrb[0].mxu0 %v467
        %v802 = vpop.f32.mrb[0].mxu0
        %v803 = vadd.f32 %v391, %v802
        %v804 = vpop.f32.mrb[0].mxu0
        %v805 = vpop.f32.mrb[0].mxu0
        %v806 = vadd.f32 %v391, %v805
        %v807 = vpop.f32.mrb[0].mxu0
        %808 = vmatprep.mubr.bf16.mxu0 0
        %809 = vmatmul.mubr.bf16.gmra.mrb[0].mxu0 %v470
        %v810 = vpop.f32.mrb[0].mxu0
        %v811 = vadd.f32 %v391, %v810
        %v812 = vpop.f32.mrb[0].mxu0
        %v813 = vpop.f32.mrb[0].mxu0
        %v814 = vadd.f32 %v391, %v813
        %v815 = vpop.f32.mrb[0].mxu0
        %816 = vmatprep.mubr.bf16.mxu0 0
        %817 = vmatmul.mubr.bf16.gmra.mrb[0].mxu0 %v473
        %v818 = vpop.f32.mrb[0].mxu0
        %v819 = vadd.f32 %v391, %v818
        %v820 = vpop.f32.mrb[0].mxu0
        %v821 = vpop.f32.mrb[0].mxu0
        %v822 = vadd.f32 %v391, %v821
        %v823 = vpop.f32.mrb[0].mxu0
        %824 = vmatprep.mubr.bf16.mxu0 0
        %825 = vmatmul.mubr.bf16.gmra.mrb[0].mxu0 %v476
        %v826 = vpop.f32.mrb[0].mxu0
        %v827 = vadd.f32 %v391, %v826
        %v828 = vpop.f32.mrb[0].mxu0
        %v829 = vpop.f32.mrb[0].mxu0
        %v830 = vadd.f32 %v391, %v829
        %v831 = vpop.f32.mrb[0].mxu0
        %832 = vmatprep.mubr.bf16.mxu0 0
        %833 = vmatmul.mubr.bf16.gmra.mrb[0].mxu0 %v479
        %v834 = vpop.f32.mrb[0].mxu0
        %v835 = vadd.f32 %v391, %v834
        %v836 = vpop.f32.mrb[0].mxu0
        %v837 = vpop.f32.mrb[0].mxu0
        %v838 = vadd.f32 %v391, %v837
        %v839 = vpop.f32.mrb[0].mxu0
        %840 = vmatprep.mubr.bf16.mxu0 0
        %841 = vmatmul.mubr.bf16.gmra.mrb[0].mxu0 %v482
        %v842 = vpop.f32.mrb[0].mxu0
        %v843 = vadd.f32 %v391, %v842
        %v844 = vpop.f32.mrb[0].mxu0
        %v845 = vpop.f32.mrb[0].mxu0
        %v846 = vadd.f32 %v391, %v845
        %v847 = vpop.f32.mrb[0].mxu0
        %848 = vmatprep.mubr.bf16.mxu0 0
        %849 = vmatmul.mubr.bf16.gmra.mrb[0].mxu0 %v485
        %v850 = vpop.f32.mrb[0].mxu0
        %v851 = vadd.f32 %v391, %v850
        %v852 = vpop.f32.mrb[0].mxu0
        %v853 = vpop.f32.mrb[0].mxu0
        %v854 = vadd.f32 %v391, %v853
        %v855 = vpop.f32.mrb[0].mxu0
        %856 = vmatprep.mubr.bf16.mxu0 0
        %857 = vmatmul.mubr.bf16.gmra.mrb[0].mxu0 %v488
        %v858 = vpop.f32.mrb[0].mxu0
        %v859 = vadd.f32 %v391, %v858
        %v860 = vpop.f32.mrb[0].mxu0
        %v861 = vpop.f32.mrb[0].mxu0
        %v862 = vadd.f32 %v391, %v861
        %v863 = vpop.f32.mrb[0].mxu0
        %864 = vmatprep.mubr.bf16.mxu0 0
        %865 = vmatmul.mubr.bf16.gmra.mrb[0].mxu0 %v491
        %v866 = vpop.f32.mrb[0].mxu0
        %v867 = vadd.f32 %v391, %v866
        %v868 = vpop.f32.mrb[0].mxu0
        %v869 = vpop.f32.mrb[0].mxu0
        %v870 = vadd.f32 %v391, %v869
        %v871 = vpop.f32.mrb[0].mxu0
        %872 = vmatprep.mubr.bf16.mxu0 0
        %873 = vmatmul.mubr.bf16.gmra.mrb[0].mxu0 %v494
        %v874 = vpop.f32.mrb[0].mxu0
        %v875 = vadd.f32 %v391, %v874
        %v876 = vpop.f32.mrb[0].mxu0
        %v877 = vpop.f32.mrb[0].mxu0
        %v878 = vadd.f32 %v391, %v877
        %v879 = vpop.f32.mrb[0].mxu0
        %880 = vmatprep.mubr.bf16.mxu0 0
        %881 = vmatmul.mubr.bf16.gmra.mrb[0].mxu0 %v497
        %v882 = vpop.f32.mrb[0].mxu0
        %v883 = vadd.f32 %v391, %v882
        %v884 = vpop.f32.mrb[0].mxu0
        %v885 = vpop.f32.mrb[0].mxu0
        %v886 = vadd.f32 %v391, %v885
        %v887 = vpop.f32.mrb[0].mxu0
        %888 = vmatprep.mubr.bf16.mxu0 0
        %889 = vmatmul.mubr.bf16.gmra.mrb[0].mxu0 %v500
        %v890 = vpop.f32.mrb[0].mxu0
        %v891 = vadd.f32 %v391, %v890
        %v892 = vpop.f32.mrb[0].mxu0
        %v893 = vpop.f32.mrb[0].mxu0
        %v894 = vadd.f32 %v391, %v893
        %v895 = vpop.f32.mrb[0].mxu0
        %896 = vmatprep.mubr.bf16.mxu0 0
        %897 = vmatmul.mubr.bf16.gmra.mrb[0].mxu0 %v503
        %v898 = vpop.f32.mrb[0].mxu0
        %v899 = vadd.f32 %v391, %v898
        %v900 = vpop.f32.mrb[0].mxu0
        %v901 = vpop.f32.mrb[0].mxu0
        %v902 = vadd.f32 %v391, %v901
        %v903 = vpop.f32.mrb[0].mxu0
        %904 = vmatprep.mubr.bf16.mxu0 0
        %905 = vmatmul.mubr.bf16.gmra.mrb[0].mxu0 %v506
        %v906 = vpop.f32.mrb[0].mxu0
        %v907 = vadd.f32 %v391, %v906
        %v908 = vpop.f32.mrb[0].mxu0
        %v909 = vpop.f32.mrb[0].mxu0
        %v910 = vadd.f32 %v391, %v909
        %v911 = vpop.f32.mrb[0].mxu0
        %912 = vmatprep.mubr.bf16.mxu0 0
        %913 = vmatmul.mubr.bf16.gmra.mrb[0].mxu0 %v509
        %v914 = vpop.f32.mrb[0].mxu0
        %v915 = vadd.f32 %v391, %v914
        %v916 = vpop.f32.mrb[0].mxu0
        %v917 = vpop.f32.mrb[0].mxu0
        %v918 = vadd.f32 %v391, %v917
        %v919 = vpop.f32.mrb[0].mxu0
        %920 = vmatprep.mubr.bf16.mxu0 0
        %921 = vmatmul.mubr.bf16.gmra.mrb[0].mxu0 %v512
        %v922 = vpop.f32.mrb[0].mxu0
        %v923 = vadd.f32 %v391, %v922
        %v924 = vpop.f32.mrb[0].mxu0
        %v925 = vpop.f32.mrb[0].mxu0
        %v926 = vadd.f32 %v391, %v925
        %v927 = vpop.f32.mrb[0].mxu0
        %928 = vmatprep.mubr.bf16.mxu0 0
        %929 = vmatmul.mubr.bf16.gmra.mrb[0].mxu0 %v515
        %v930 = vpop.f32.mrb[0].mxu0
        %v931 = vadd.f32 %v391, %v930
        %v932 = vpop.f32.mrb[0].mxu0
        %v933 = vpop.f32.mrb[0].mxu0
        %v934 = vadd.f32 %v391, %v933
        %v935 = vpop.f32.mrb[0].mxu0
        %936 = vmatprep.mubr.bf16.mxu0 0
        %937 = vmatmul.mubr.bf16.gmra.mrb[0].mxu0 %v518
        %v938 = vpop.f32.mrb[0].mxu0
        %v939 = vadd.f32 %v391, %v938
        %v940 = vpop.f32.mrb[0].mxu0
        %v941 = vpop.f32.mrb[0].mxu0
        %v942 = vadd.f32 %v391, %v941
        %v943 = vpop.f32.mrb[0].mxu0
        %944 = vmatprep.mubr.bf16.mxu0 0
        %945 = vmatmul.mubr.bf16.gmra.mrb[0].mxu0 %v521
        %v946 = vpop.f32.mrb[0].mxu0
        %v947 = vadd.f32 %v391, %v946
        %v948 = vpop.f32.mrb[0].mxu0
        %v949 = vpop.f32.mrb[0].mxu0
        %v950 = vadd.f32 %v391, %v949
        %v951 = vpop.f32.mrb[0].mxu0
        %952 = vmatprep.mubr.bf16.mxu0 0
        %953 = vmatmul.mubr.bf16.gmra.mrb[0].mxu0 %v524
        %v954 = vpop.f32.mrb[0].mxu0
        %v955 = vadd.f32 %v391, %v954
        %v956 = vpop.f32.mrb[0].mxu0
        %v957 = vpop.f32.mrb[0].mxu0
        %v958 = vadd.f32 %v391, %v957
        %v959 = vpop.f32.mrb[0].mxu0
        %960 = vmatprep.mubr.bf16.mxu0 0
        %961 = vmatmul.mubr.bf16.gmra.mrb[0].mxu0 %v527
        %v962 = vpop.f32.mrb[0].mxu0
        %v963 = vadd.f32 %v391, %v962
        %v964 = vpop.f32.mrb[0].mxu0
        %v965 = vpop.f32.mrb[0].mxu0
        %v966 = vadd.f32 %v391, %v965
        %v967 = vpop.f32.mrb[0].mxu0
        %968 = vmatprep.mubr.bf16.mxu0 0
        %969 = vmatmul.mubr.bf16.gmra.mrb[0].mxu0 %v530
        %v970 = vpop.f32.mrb[0].mxu0
        %v971 = vadd.f32 %v391, %v970
        %v972 = vpop.f32.mrb[0].mxu0
        %v973 = vpop.f32.mrb[0].mxu0
        %v974 = vadd.f32 %v391, %v973
        %v975 = vpop.f32.mrb[0].mxu0
        %976 = vmatprep.mubr.bf16.mxu0 0
        %977 = vmatmul.mubr.bf16.gmra.mrb[0].mxu0 %v533
        %v978 = vpop.f32.mrb[0].mxu0
        %v979 = vadd.f32 %v391, %v978
        %v980 = vpop.f32.mrb[0].mxu0
        %v981 = vpop.f32.mrb[0].mxu0
        %v982 = vadd.f32 %v391, %v981
        %v983 = vpop.f32.mrb[0].mxu0
        %984 = vmatprep.mubr.bf16.mxu0 0
        %985 = vmatmul.mubr.bf16.gmra.mrb[0].mxu0 %v536
        %v986 = vpop.f32.mrb[0].mxu0
        %v987 = vadd.f32 %v391, %v986
        %v988 = vpop.f32.mrb[0].mxu0
        %v989 = vpop.f32.mrb[0].mxu0
        %v990 = vadd.f32 %v391, %v989
        %v991 = vpop.f32.mrb[0].mxu0
        %992 = vmatprep.mubr.bf16.mxu0 0
        %993 = vmatmul.mubr.bf16.gmra.mrb[0].mxu0 %v539
        %v994 = vpop.f32.mrb[0].mxu0
        %v995 = vadd.f32 %v391, %v994
        %v996 = vpop.f32.mrb[0].mxu0
        %v997 = vpop.f32.mrb[0].mxu0
        %v998 = vadd.f32 %v391, %v997
        %v999 = vpop.f32.mrb[0].mxu0
        %1000 = vmatprep.mubr.bf16.mxu0 0
        %1001 = vmatmul.mubr.bf16.gmra.mrb[0].mxu0 %v542
        %v1002 = vpop.f32.mrb[0].mxu0
        %v1003 = vadd.f32 %v391, %v1002
        %v1004 = vpop.f32.mrb[0].mxu0
        %v1005 = vpop.f32.mrb[0].mxu0
        %v1006 = vadd.f32 %v391, %v1005
        %v1007 = vpop.f32.mrb[0].mxu0
        %1008 = vmatprep.mubr.bf16.mxu0 0
        %1009 = vmatmul.mubr.bf16.gmra.mrb[0].mxu0 %v545
        %v1010 = vpop.f32.mrb[0].mxu0
        %v1011 = vadd.f32 %v391, %v1010
        %v1012 = vpop.f32.mrb[0].mxu0
        %v1013 = vpop.f32.mrb[0].mxu0
        %v1014 = vadd.f32 %v391, %v1013
        %v1015 = vpop.f32.mrb[0].mxu0
        %1016 = vmatprep.mubr.bf16.mxu0 0
        %1017 = vmatmul.mubr.bf16.gmra.mrb[0].mxu0 %v548
        %v1018 = vpop.f32.mrb[0].mxu0
        %v1019 = vadd.f32 %v391, %v1018
        %v1020 = vpop.f32.mrb[0].mxu0
        %v1021 = vpop.f32.mrb[0].mxu0
        %v1022 = vadd.f32 %v391, %v1021
        %v1023 = vpop.f32.mrb[0].mxu0
        %1024 = vmatprep.mubr.bf16.mxu0 0
        %1025 = vmatmul.mubr.bf16.gmra.mrb[0].mxu0 %v551
        %v1026 = vpop.f32.mrb[0].mxu0
        %v1027 = vadd.f32 %v391, %v1026
        %v1028 = vpop.f32.mrb[0].mxu0
        %v1029 = vpop.f32.mrb[0].mxu0
        %v1030 = vadd.f32 %v391, %v1029
        %v1031 = vpop.f32.mrb[0].mxu0
        %1032 = vmatprep.mubr.bf16.mxu0 0
        %1033 = vmatmul.mubr.bf16.gmra.mrb[0].mxu0 %v554
        %v1034 = vpop.f32.mrb[0].mxu0
        %v1035 = vadd.f32 %v391, %v1034
        %v1036 = vpop.f32.mrb[0].mxu0
        %v1037 = vpop.f32.mrb[0].mxu0
        %v1038 = vadd.f32 %v391, %v1037
        %v1039 = vpop.f32.mrb[0].mxu0
        %1040 = vmatprep.mubr.bf16.mxu0 0
        %1041 = vmatmul.mubr.bf16.gmra.mrb[0].mxu0 %v557
        %v1042 = vpop.f32.mrb[0].mxu0
        %v1043 = vadd.f32 %v391, %v1042
        %v1044 = vpop.f32.mrb[0].mxu0
        %v1045 = vpop.f32.mrb[0].mxu0
        %v1046 = vadd.f32 %v391, %v1045
        %v1047 = vpop.f32.mrb[0].mxu0
        %1048 = vmatprep.mubr.bf16.mxu0 0
        %1049 = vmatmul.mubr.bf16.gmra.mrb[0].mxu0 %v560
        %v1050 = vpop.f32.mrb[0].mxu0
        %v1051 = vadd.f32 %v391, %v1050
        %v1052 = vpop.f32.mrb[0].mxu0
        %v1053 = vpop.f32.mrb[0].mxu0
        %v1054 = vadd.f32 %v391, %v1053
        %v1055 = vpop.f32.mrb[0].mxu0
        %1056 = vmatprep.mubr.bf16.mxu0 0
        %1057 = vmatmul.mubr.bf16.gmra.mrb[0].mxu0 %v563
        %v1058 = vpop.f32.mrb[0].mxu0
        %v1059 = vadd.f32 %v391, %v1058
        %v1060 = vpop.f32.mrb[0].mxu0
        %v1061 = vpop.f32.mrb[0].mxu0
        %v1062 = vadd.f32 %v391, %v1061
        %v1063 = vpop.f32.mrb[0].mxu0
        %1064 = vmatprep.mubr.bf16.mxu0 0
        %1065 = vmatmul.mubr.bf16.gmra.mrb[0].mxu0 %v566
        %v1066 = vpop.f32.mrb[0].mxu0
        %v1067 = vadd.f32 %v391, %v1066
        %v1068 = vpop.f32.mrb[0].mxu0
        %v1069 = vpop.f32.mrb[0].mxu0
        %v1070 = vadd.f32 %v391, %v1069
        %v1071 = vpop.f32.mrb[0].mxu0
        %1072 = vmatprep.mubr.bf16.mxu0 0
        %1073 = vmatmul.mubr.bf16.gmra.mrb[0].mxu0 %v569
        %v1074 = vpop.f32.mrb[0].mxu0
        %v1075 = vadd.f32 %v391, %v1074
        %v1076 = vpop.f32.mrb[0].mxu0
        %v1077 = vpop.f32.mrb[0].mxu0
        %v1078 = vadd.f32 %v391, %v1077
        %v1079 = vpop.f32.mrb[0].mxu0
        %1080 = vmatprep.mubr.bf16.mxu0 0
        %1081 = vmatmul.mubr.bf16.gmra.mrb[0].mxu0 %v572
        %v1082 = vpop.f32.mrb[0].mxu0
        %v1083 = vadd.f32 %v391, %v1082
        %v1084 = vpop.f32.mrb[0].mxu0
        %v1085 = vpop.f32.mrb[0].mxu0
        %v1086 = vadd.f32 %v391, %v1085
        %v1087 = vpop.f32.mrb[0].mxu0
        %1088 = vmatprep.mubr.bf16.mxu0 0
        %1089 = vmatmul.mubr.bf16.gmra.mrb[0].mxu0 %v575
        %v1090 = vpop.f32.mrb[0].mxu0
        %v1091 = vadd.f32 %v391, %v1090
        %v1092 = vpop.f32.mrb[0].mxu0
        %v1093 = vpop.f32.mrb[0].mxu0
        %v1094 = vadd.f32 %v391, %v1093
        %v1095 = vpop.f32.mrb[0].mxu0
        %1096 = vmatprep.mubr.bf16.mxu0 0
        %1097 = vmatmul.mubr.bf16.gmra.mrb[0].mxu0 %v578
        %v1098 = vpop.f32.mrb[0].mxu0
        %v1099 = vadd.f32 %v391, %v1098
        %v1100 = vpop.f32.mrb[0].mxu0
        %v1101 = vpop.f32.mrb[0].mxu0
        %v1102 = vadd.f32 %v391, %v1101
        %v1103 = vpop.f32.mrb[0].mxu0
        %1104 = vmatprep.mubr.bf16.mxu0 0
        %1105 = vmatmul.mubr.bf16.gmra.mrb[0].mxu0 %v581
        %v1106 = vpop.f32.mrb[0].mxu0
        %v1107 = vadd.f32 %v391, %v1106
        %v1108 = vpop.f32.mrb[0].mxu0
        %v1109 = vpop.f32.mrb[0].mxu0
        %v1110 = vadd.f32 %v391, %v1109
        %v1111 = vpop.f32.mrb[0].mxu0
        %1112 = vmatprep.mubr.bf16.mxu0 0
        %1113 = vmatmul.mubr.bf16.gmra.mrb[0].mxu0 %v584
        %v1114 = vpop.f32.mrb[0].mxu0
        %v1115 = vadd.f32 %v391, %v1114
        %v1116 = vpop.f32.mrb[0].mxu0
        %v1117 = vpop.f32.mrb[0].mxu0
        %v1118 = vadd.f32 %v391, %v1117
        %v1119 = vpop.f32.mrb[0].mxu0
        %1120 = vmatprep.mubr.bf16.mxu0 0
        %1121 = vmatmul.mubr.bf16.gmra.mrb[0].mxu0 %v587
        %v1122 = vpop.f32.mrb[0].mxu0
        %v1123 = vadd.f32 %v391, %v1122
        %v1124 = vpop.f32.mrb[0].mxu0
        %v1125 = vpop.f32.mrb[0].mxu0
        %v1126 = vadd.f32 %v391, %v1125
        %v1127 = vpop.f32.mrb[0].mxu0
        %1128 = vmatprep.mubr.bf16.mxu0 0
        %1129 = vmatmul.mubr.bf16.gmra.mrb[0].mxu0 %v590
        %v1130 = vpop.f32.mrb[0].mxu0
        %v1131 = vadd.f32 %v391, %v1130
        %v1132 = vpop.f32.mrb[0].mxu0
        %v1133 = vpop.f32.mrb[0].mxu0
        %v1134 = vadd.f32 %v391, %v1133
        %v1135 = vpop.f32.mrb[0].mxu0
        %1136 = vdwg.mxu0
        %v1137 = vmul.f32 %v627, 0.5
        %v1138 = vmul.f32 %v630, 0.5
        %v1139 = vmul.f32 %v635, 0.5
        %v1140 = vmul.f32 %v638, 0.5
        %v1141 = vmul.f32 %v643, 0.5
        %v1142 = vmul.f32 %v646, 0.5
        %v1143 = vmul.f32 %v651, 0.5
        %v1144 = vmul.f32 %v654, 0.5
        %v1145 = vmul.f32 %v659, 0.5
        %v1146 = vmul.f32 %v662, 0.5
        %v1147 = vmul.f32 %v667, 0.5
        %v1148 = vmul.f32 %v670, 0.5
        %v1149 = vmul.f32 %v675, 0.5
        %v1150 = vmul.f32 %v678, 0.5
        %v1151 = vmul.f32 %v683, 0.5
        %v1152 = vmul.f32 %v686, 0.5
        %v1153 = vmul.f32 %v691, 0.5
        %v1154 = vmul.f32 %v694, 0.5
        %v1155 = vmul.f32 %v699, 0.5
        %v1156 = vmul.f32 %v702, 0.5
        %v1157 = vmul.f32 %v707, 0.5
        %v1158 = vmul.f32 %v710, 0.5
        %v1159 = vmul.f32 %v715, 0.5
        %v1160 = vmul.f32 %v718, 0.5
        %v1161 = vmul.f32 %v723, 0.5
        %v1162 = vmul.f32 %v726, 0.5
        %v1163 = vmul.f32 %v731, 0.5
        %v1164 = vmul.f32 %v734, 0.5
        %v1165 = vmul.f32 %v739, 0.5
        %v1166 = vmul.f32 %v742, 0.5
        %v1167 = vmul.f32 %v747, 0.5
        %v1168 = vmul.f32 %v750, 0.5
        %v1169 = vmul.f32 %v755, 0.5
        %v1170 = vmul.f32 %v758, 0.5
        %v1171 = vmul.f32 %v763, 0.5
        %v1172 = vmul.f32 %v766, 0.5
        %v1173 = vmul.f32 %v771, 0.5
        %v1174 = vmul.f32 %v774, 0.5
        %v1175 = vmul.f32 %v779, 0.5
        %v1176 = vmul.f32 %v782, 0.5
        %v1177 = vmul.f32 %v787, 0.5
        %v1178 = vmul.f32 %v790, 0.5
        %v1179 = vmul.f32 %v795, 0.5
        %v1180 = vmul.f32 %v798, 0.5
        %v1181 = vmul.f32 %v803, 0.5
        %v1182 = vmul.f32 %v806, 0.5
        %v1183 = vmul.f32 %v811, 0.5
        %v1184 = vmul.f32 %v814, 0.5
        %v1185 = vmul.f32 %v819, 0.5
        %v1186 = vmul.f32 %v822, 0.5
        %v1187 = vmul.f32 %v827, 0.5
        %v1188 = vmul.f32 %v830, 0.5
        %v1189 = vmul.f32 %v835, 0.5
        %v1190 = vmul.f32 %v838, 0.5
        %v1191 = vmul.f32 %v843, 0.5
        %v1192 = vmul.f32 %v846, 0.5
        %v1193 = vmul.f32 %v851, 0.5
        %v1194 = vmul.f32 %v854, 0.5
        %v1195 = vmul.f32 %v859, 0.5
        %v1196 = vmul.f32 %v862, 0.5
        %v1197 = vmul.f32 %v867, 0.5
        %v1198 = vmul.f32 %v870, 0.5
        %v1199 = vmul.f32 %v875, 0.5
        %v1200 = vmul.f32 %v878, 0.5
        %v1201 = vmul.f32 %v883, 0.5
        %v1202 = vmul.f32 %v886, 0.5
        %v1203 = vmul.f32 %v891, 0.5
        %v1204 = vmul.f32 %v894, 0.5
        %v1205 = vmul.f32 %v899, 0.5
        %v1206 = vmul.f32 %v902, 0.5
        %v1207 = vmul.f32 %v907, 0.5
        %v1208 = vmul.f32 %v910, 0.5
        %v1209 = vmul.f32 %v915, 0.5
        %v1210 = vmul.f32 %v918, 0.5
        %v1211 = vmul.f32 %v923, 0.5
        %v1212 = vmul.f32 %v926, 0.5
        %v1213 = vmul.f32 %v931, 0.5
        %v1214 = vmul.f32 %v934, 0.5
        %v1215 = vmul.f32 %v939, 0.5
        %v1216 = vmul.f32 %v942, 0.5
        %v1217 = vmul.f32 %v947, 0.5
        %v1218 = vmul.f32 %v950, 0.5
        %v1219 = vmul.f32 %v955, 0.5
        %v1220 = vmul.f32 %v958, 0.5
        %v1221 = vmul.f32 %v963, 0.5
        %v1222 = vmul.f32 %v966, 0.5
        %v1223 = vmul.f32 %v971, 0.5
        %v1224 = vmul.f32 %v974, 0.5
        %v1225 = vmul.f32 %v979, 0.5
        %v1226 = vmul.f32 %v982, 0.5
        %v1227 = vmul.f32 %v987, 0.5
        %v1228 = vmul.f32 %v990, 0.5
        %v1229 = vmul.f32 %v995, 0.5
        %v1230 = vmul.f32 %v998, 0.5
        %v1231 = vmul.f32 %v1003, 0.5
        %v1232 = vmul.f32 %v1006, 0.5
        %v1233 = vmul.f32 %v1011, 0.5
        %v1234 = vmul.f32 %v1014, 0.5
        %v1235 = vmul.f32 %v1019, 0.5
        %v1236 = vmul.f32 %v1022, 0.5
        %v1237 = vmul.f32 %v1027, 0.5
        %v1238 = vmul.f32 %v1030, 0.5
        %v1239 = vmul.f32 %v1035, 0.5
        %v1240 = vmul.f32 %v1038, 0.5
        %v1241 = vmul.f32 %v1043, 0.5
        %v1242 = vmul.f32 %v1046, 0.5
        %v1243 = vmul.f32 %v1051, 0.5
        %v1244 = vmul.f32 %v1054, 0.5
        %v1245 = vmul.f32 %v1059, 0.5
        %v1246 = vmul.f32 %v1062, 0.5
        %v1247 = vmul.f32 %v1067, 0.5
        %v1248 = vmul.f32 %v1070, 0.5
        %v1249 = vmul.f32 %v1075, 0.5
        %v1250 = vmul.f32 %v1078, 0.5
        %v1251 = vmul.f32 %v1083, 0.5
        %v1252 = vmul.f32 %v1086, 0.5
        %v1253 = vmul.f32 %v1091, 0.5
        %v1254 = vmul.f32 %v1094, 0.5
        %v1255 = vmul.f32 %v1099, 0.5
        %v1256 = vmul.f32 %v1102, 0.5
        %v1257 = vmul.f32 %v1107, 0.5
        %v1258 = vmul.f32 %v1110, 0.5
        %v1259 = vmul.f32 %v1115, 0.5
        %v1260 = vmul.f32 %v1118, 0.5
        %v1261 = vmul.f32 %v1123, 0.5
        %v1262 = vmul.f32 %v1126, 0.5
        %v1263 = vmul.f32 %v1131, 0.5
        %v1264 = vmul.f32 %v1134, 0.5
        %v1265 = vmul.f32 %v627, 0.044715
        %v1266 = vmul.f32 %v630, 0.044715
        %v1267 = vmul.f32 %v635, 0.044715
        %v1268 = vmul.f32 %v638, 0.044715
        %v1269 = vmul.f32 %v643, 0.044715
        %v1270 = vmul.f32 %v646, 0.044715
        %v1271 = vmul.f32 %v651, 0.044715
        %v1272 = vmul.f32 %v654, 0.044715
        %v1273 = vmul.f32 %v659, 0.044715
        %v1274 = vmul.f32 %v662, 0.044715
        %v1275 = vmul.f32 %v667, 0.044715
        %v1276 = vmul.f32 %v670, 0.044715
        %v1277 = vmul.f32 %v675, 0.044715
        %v1278 = vmul.f32 %v678, 0.044715
        %v1279 = vmul.f32 %v683, 0.044715
        %v1280 = vmul.f32 %v686, 0.044715
        %v1281 = vmul.f32 %v691, 0.044715
        %v1282 = vmul.f32 %v694, 0.044715
        %v1283 = vmul.f32 %v699, 0.044715
        %v1284 = vmul.f32 %v702, 0.044715
        %v1285 = vmul.f32 %v707, 0.044715
        %v1286 = vmul.f32 %v710, 0.044715
        %v1287 = vmul.f32 %v715, 0.044715
        %v1288 = vmul.f32 %v718, 0.044715
        %v1289 = vmul.f32 %v723, 0.044715
        %v1290 = vmul.f32 %v726, 0.044715
        %v1291 = vmul.f32 %v731, 0.044715
        %v1292 = vmul.f32 %v734, 0.044715
        %v1293 = vmul.f32 %v739, 0.044715
        %v1294 = vmul.f32 %v742, 0.044715
        %v1295 = vmul.f32 %v747, 0.044715
        %v1296 = vmul.f32 %v750, 0.044715
        %v1297 = vmul.f32 %v755, 0.044715
        %v1298 = vmul.f32 %v758, 0.044715
        %v1299 = vmul.f32 %v763, 0.044715
        %v1300 = vmul.f32 %v766, 0.044715
        %v1301 = vmul.f32 %v771, 0.044715
        %v1302 = vmul.f32 %v774, 0.044715
        %v1303 = vmul.f32 %v779, 0.044715
        %v1304 = vmul.f32 %v782, 0.044715
        %v1305 = vmul.f32 %v787, 0.044715
        %v1306 = vmul.f32 %v790, 0.044715
        %v1307 = vmul.f32 %v795, 0.044715
        %v1308 = vmul.f32 %v798, 0.044715
        %v1309 = vmul.f32 %v803, 0.044715
        %v1310 = vmul.f32 %v806, 0.044715
        %v1311 = vmul.f32 %v811, 0.044715
        %v1312 = vmul.f32 %v814, 0.044715
        %v1313 = vmul.f32 %v819, 0.044715
        %v1314 = vmul.f32 %v822, 0.044715
        %v1315 = vmul.f32 %v827, 0.044715
        %v1316 = vmul.f32 %v830, 0.044715
        %v1317 = vmul.f32 %v835, 0.044715
        %v1318 = vmul.f32 %v838, 0.044715
        %v1319 = vmul.f32 %v843, 0.044715
        %v1320 = vmul.f32 %v846, 0.044715
        %v1321 = vmul.f32 %v851, 0.044715
        %v1322 = vmul.f32 %v854, 0.044715
        %v1323 = vmul.f32 %v859, 0.044715
        %v1324 = vmul.f32 %v862, 0.044715
        %v1325 = vmul.f32 %v867, 0.044715
        %v1326 = vmul.f32 %v870, 0.044715
        %v1327 = vmul.f32 %v875, 0.044715
        %v1328 = vmul.f32 %v878, 0.044715
        %v1329 = vmul.f32 %v883, 0.044715
        %v1330 = vmul.f32 %v886, 0.044715
        %v1331 = vmul.f32 %v891, 0.044715
        %v1332 = vmul.f32 %v894, 0.044715
        %v1333 = vmul.f32 %v899, 0.044715
        %v1334 = vmul.f32 %v902, 0.044715
        %v1335 = vmul.f32 %v907, 0.044715
        %v1336 = vmul.f32 %v910, 0.044715
        %v1337 = vmul.f32 %v915, 0.044715
        %v1338 = vmul.f32 %v918, 0.044715
        %v1339 = vmul.f32 %v923, 0.044715
        %v1340 = vmul.f32 %v926, 0.044715
        %v1341 = vmul.f32 %v931, 0.044715
        %v1342 = vmul.f32 %v934, 0.044715
        %v1343 = vmul.f32 %v939, 0.044715
        %v1344 = vmul.f32 %v942, 0.044715
        %v1345 = vmul.f32 %v947, 0.044715
        %v1346 = vmul.f32 %v950, 0.044715
        %v1347 = vmul.f32 %v955, 0.044715
        %v1348 = vmul.f32 %v958, 0.044715
        %v1349 = vmul.f32 %v963, 0.044715
        %v1350 = vmul.f32 %v966, 0.044715
        %v1351 = vmul.f32 %v971, 0.044715
        %v1352 = vmul.f32 %v974, 0.044715
        %v1353 = vmul.f32 %v979, 0.044715
        %v1354 = vmul.f32 %v982, 0.044715
        %v1355 = vmul.f32 %v987, 0.044715
        %v1356 = vmul.f32 %v990, 0.044715
        %v1357 = vmul.f32 %v995, 0.044715
        %v1358 = vmul.f32 %v998, 0.044715
        %v1359 = vmul.f32 %v1003, 0.044715
        %v1360 = vmul.f32 %v1006, 0.044715
        %v1361 = vmul.f32 %v1011, 0.044715
        %v1362 = vmul.f32 %v1014, 0.044715
        %v1363 = vmul.f32 %v1019, 0.044715
        %v1364 = vmul.f32 %v1022, 0.044715
        %v1365 = vmul.f32 %v1027, 0.044715
        %v1366 = vmul.f32 %v1030, 0.044715
        %v1367 = vmul.f32 %v1035, 0.044715
        %v1368 = vmul.f32 %v1038, 0.044715
        %v1369 = vmul.f32 %v1043, 0.044715
        %v1370 = vmul.f32 %v1046, 0.044715
        %v1371 = vmul.f32 %v1051, 0.044715
        %v1372 = vmul.f32 %v1054, 0.044715
        %v1373 = vmul.f32 %v1059, 0.044715
        %v1374 = vmul.f32 %v1062, 0.044715
        %v1375 = vmul.f32 %v1067, 0.044715
        %v1376 = vmul.f32 %v1070, 0.044715
        %v1377 = vmul.f32 %v1075, 0.044715
        %v1378 = vmul.f32 %v1078, 0.044715
        %v1379 = vmul.f32 %v1083, 0.044715
        %v1380 = vmul.f32 %v1086, 0.044715
        %v1381 = vmul.f32 %v1091, 0.044715
        %v1382 = vmul.f32 %v1094, 0.044715
        %v1383 = vmul.f32 %v1099, 0.044715
        %v1384 = vmul.f32 %v1102, 0.044715
        %v1385 = vmul.f32 %v1107, 0.044715
        %v1386 = vmul.f32 %v1110, 0.044715
        %v1387 = vmul.f32 %v1115, 0.044715
        %v1388 = vmul.f32 %v1118, 0.044715
        %v1389 = vmul.f32 %v1123, 0.044715
        %v1390 = vmul.f32 %v1126, 0.044715
        %v1391 = vmul.f32 %v1131, 0.044715
        %v1392 = vmul.f32 %v1134, 0.044715
        %v1393 = vmul.f32 %v1265, %v627
        %v1394 = vmul.f32 %v1266, %v630
        %v1395 = vmul.f32 %v1267, %v635
        %v1396 = vmul.f32 %v1268, %v638
        %v1397 = vmul.f32 %v1269, %v643
        %v1398 = vmul.f32 %v1270, %v646
        %v1399 = vmul.f32 %v1271, %v651
        %v1400 = vmul.f32 %v1272, %v654
        %v1401 = vmul.f32 %v1273, %v659
        %v1402 = vmul.f32 %v1274, %v662
        %v1403 = vmul.f32 %v1275, %v667
        %v1404 = vmul.f32 %v1276, %v670
        %v1405 = vmul.f32 %v1277, %v675
        %v1406 = vmul.f32 %v1278, %v678
        %v1407 = vmul.f32 %v1279, %v683
        %v1408 = vmul.f32 %v1280, %v686
        %v1409 = vmul.f32 %v1281, %v691
        %v1410 = vmul.f32 %v1282, %v694
        %v1411 = vmul.f32 %v1283, %v699
        %v1412 = vmul.f32 %v1284, %v702
        %v1413 = vmul.f32 %v1285, %v707
        %v1414 = vmul.f32 %v1286, %v710
        %v1415 = vmul.f32 %v1287, %v715
        %v1416 = vmul.f32 %v1288, %v718
        %v1417 = vmul.f32 %v1289, %v723
        %v1418 = vmul.f32 %v1290, %v726
        %v1419 = vmul.f32 %v1291, %v731
        %v1420 = vmul.f32 %v1292, %v734
        %v1421 = vmul.f32 %v1293, %v739
        %v1422 = vmul.f32 %v1294, %v742
        %v1423 = vmul.f32 %v1295, %v747
        %v1424 = vmul.f32 %v1296, %v750
        %v1425 = vmul.f32 %v1297, %v755
        %v1426 = vmul.f32 %v1298, %v758
        %v1427 = vmul.f32 %v1299, %v763
        %v1428 = vmul.f32 %v1300, %v766
        %v1429 = vmul.f32 %v1301, %v771
        %v1430 = vmul.f32 %v1302, %v774
        %v1431 = vmul.f32 %v1303, %v779
        %v1432 = vmul.f32 %v1304, %v782
        %v1433 = vmul.f32 %v1305, %v787
        %v1434 = vmul.f32 %v1306, %v790
        %v1435 = vmul.f32 %v1307, %v795
        %v1436 = vmul.f32 %v1308, %v798
        %v1437 = vmul.f32 %v1309, %v803
        %v1438 = vmul.f32 %v1310, %v806
        %v1439 = vmul.f32 %v1311, %v811
        %v1440 = vmul.f32 %v1312, %v814
        %v1441 = vmul.f32 %v1313, %v819
        %v1442 = vmul.f32 %v1314, %v822
        %v1443 = vmul.f32 %v1315, %v827
        %v1444 = vmul.f32 %v1316, %v830
        %v1445 = vmul.f32 %v1317, %v835
        %v1446 = vmul.f32 %v1318, %v838
        %v1447 = vmul.f32 %v1319, %v843
        %v1448 = vmul.f32 %v1320, %v846
        %v1449 = vmul.f32 %v1321, %v851
        %v1450 = vmul.f32 %v1322, %v854
        %v1451 = vmul.f32 %v1323, %v859
        %v1452 = vmul.f32 %v1324, %v862
        %v1453 = vmul.f32 %v1325, %v867
        %v1454 = vmul.f32 %v1326, %v870
        %v1455 = vmul.f32 %v1327, %v875
        %v1456 = vmul.f32 %v1328, %v878
        %v1457 = vmul.f32 %v1329, %v883
        %v1458 = vmul.f32 %v1330, %v886
        %v1459 = vmul.f32 %v1331, %v891
        %v1460 = vmul.f32 %v1332, %v894
        %v1461 = vmul.f32 %v1333, %v899
        %v1462 = vmul.f32 %v1334, %v902
        %v1463 = vmul.f32 %v1335, %v907
        %v1464 = vmul.f32 %v1336, %v910
        %v1465 = vmul.f32 %v1337, %v915
        %v1466 = vmul.f32 %v1338, %v918
        %v1467 = vmul.f32 %v1339, %v923
        %v1468 = vmul.f32 %v1340, %v926
        %v1469 = vmul.f32 %v1341, %v931
        %v1470 = vmul.f32 %v1342, %v934
        %v1471 = vmul.f32 %v1343, %v939
        %v1472 = vmul.f32 %v1344, %v942
        %v1473 = vmul.f32 %v1345, %v947
        %v1474 = vmul.f32 %v1346, %v950
        %v1475 = vmul.f32 %v1347, %v955
        %v1476 = vmul.f32 %v1348, %v958
        %v1477 = vmul.f32 %v1349, %v963
        %v1478 = vmul.f32 %v1350, %v966
        %v1479 = vmul.f32 %v1351, %v971
        %v1480 = vmul.f32 %v1352, %v974
        %v1481 = vmul.f32 %v1353, %v979
        %v1482 = vmul.f32 %v1354, %v982
        %v1483 = vmul.f32 %v1355, %v987
        %v1484 = vmul.f32 %v1356, %v990
        %v1485 = vmul.f32 %v1357, %v995
        %v1486 = vmul.f32 %v1358, %v998
        %v1487 = vmul.f32 %v1359, %v1003
        %v1488 = vmul.f32 %v1360, %v1006
        %v1489 = vmul.f32 %v1361, %v1011
        %v1490 = vmul.f32 %v1362, %v1014
        %v1491 = vmul.f32 %v1363, %v1019
        %v1492 = vmul.f32 %v1364, %v1022
        %v1493 = vmul.f32 %v1365, %v1027
        %v1494 = vmul.f32 %v1366, %v1030
        %v1495 = vmul.f32 %v1367, %v1035
        %v1496 = vmul.f32 %v1368, %v1038
        %v1497 = vmul.f32 %v1369, %v1043
        %v1498 = vmul.f32 %v1370, %v1046
        %v1499 = vmul.f32 %v1371, %v1051
        %v1500 = vmul.f32 %v1372, %v1054
        %v1501 = vmul.f32 %v1373, %v1059
        %v1502 = vmul.f32 %v1374, %v1062
        %v1503 = vmul.f32 %v1375, %v1067
        %v1504 = vmul.f32 %v1376, %v1070
        %v1505 = vmul.f32 %v1377, %v1075
        %v1506 = vmul.f32 %v1378, %v1078
        %v1507 = vmul.f32 %v1379, %v1083
        %v1508 = vmul.f32 %v1380, %v1086
        %v1509 = vmul.f32 %v1381, %v1091
        %v1510 = vmul.f32 %v1382, %v1094
        %v1511 = vmul.f32 %v1383, %v1099
        %v1512 = vmul.f32 %v1384, %v1102
        %v1513 = vmul.f32 %v1385, %v1107
        %v1514 = vmul.f32 %v1386, %v1110
        %v1515 = vmul.f32 %v1387, %v1115
        %v1516 = vmul.f32 %v1388, %v1118
        %v1517 = vmul.f32 %v1389, %v1123
        %v1518 = vmul.f32 %v1390, %v1126
        %v1519 = vmul.f32 %v1391, %v1131
        %v1520 = vmul.f32 %v1392, %v1134
        %v1521 = vmul.f32 %v1393, %v627
        %v1522 = vmul.f32 %v1394, %v630
        %v1523 = vmul.f32 %v1395, %v635
        %v1524 = vmul.f32 %v1396, %v638
        %v1525 = vmul.f32 %v1397, %v643
        %v1526 = vmul.f32 %v1398, %v646
        %v1527 = vmul.f32 %v1399, %v651
        %v1528 = vmul.f32 %v1400, %v654
        %v1529 = vmul.f32 %v1401, %v659
        %v1530 = vmul.f32 %v1402, %v662
        %v1531 = vmul.f32 %v1403, %v667
        %v1532 = vmul.f32 %v1404, %v670
        %v1533 = vmul.f32 %v1405, %v675
        %v1534 = vmul.f32 %v1406, %v678
        %v1535 = vmul.f32 %v1407, %v683
        %v1536 = vmul.f32 %v1408, %v686
        %v1537 = vmul.f32 %v1409, %v691
        %v1538 = vmul.f32 %v1410, %v694
        %v1539 = vmul.f32 %v1411, %v699
        %v1540 = vmul.f32 %v1412, %v702
        %v1541 = vmul.f32 %v1413, %v707
        %v1542 = vmul.f32 %v1414, %v710
        %v1543 = vmul.f32 %v1415, %v715
        %v1544 = vmul.f32 %v1416, %v718
        %v1545 = vmul.f32 %v1417, %v723
        %v1546 = vmul.f32 %v1418, %v726
        %v1547 = vmul.f32 %v1419, %v731
        %v1548 = vmul.f32 %v1420, %v734
        %v1549 = vmul.f32 %v1421, %v739
        %v1550 = vmul.f32 %v1422, %v742
        %v1551 = vmul.f32 %v1423, %v747
        %v1552 = vmul.f32 %v1424, %v750
        %v1553 = vmul.f32 %v1425, %v755
        %v1554 = vmul.f32 %v1426, %v758
        %v1555 = vmul.f32 %v1427, %v763
        %v1556 = vmul.f32 %v1428, %v766
        %v1557 = vmul.f32 %v1429, %v771
        %v1558 = vmul.f32 %v1430, %v774
        %v1559 = vmul.f32 %v1431, %v779
        %v1560 = vmul.f32 %v1432, %v782
        %v1561 = vmul.f32 %v1433, %v787
        %v1562 = vmul.f32 %v1434, %v790
        %v1563 = vmul.f32 %v1435, %v795
        %v1564 = vmul.f32 %v1436, %v798
        %v1565 = vmul.f32 %v1437, %v803
        %v1566 = vmul.f32 %v1438, %v806
        %v1567 = vmul.f32 %v1439, %v811
        %v1568 = vmul.f32 %v1440, %v814
        %v1569 = vmul.f32 %v1441, %v819
        %v1570 = vmul.f32 %v1442, %v822
        %v1571 = vmul.f32 %v1443, %v827
        %v1572 = vmul.f32 %v1444, %v830
        %v1573 = vmul.f32 %v1445, %v835
        %v1574 = vmul.f32 %v1446, %v838
        %v1575 = vmul.f32 %v1447, %v843
        %v1576 = vmul.f32 %v1448, %v846
        %v1577 = vmul.f32 %v1449, %v851
        %v1578 = vmul.f32 %v1450, %v854
        %v1579 = vmul.f32 %v1451, %v859
        %v1580 = vmul.f32 %v1452, %v862
        %v1581 = vmul.f32 %v1453, %v867
        %v1582 = vmul.f32 %v1454, %v870
        %v1583 = vmul.f32 %v1455, %v875
        %v1584 = vmul.f32 %v1456, %v878
        %v1585 = vmul.f32 %v1457, %v883
        %v1586 = vmul.f32 %v1458, %v886
        %v1587 = vmul.f32 %v1459, %v891
        %v1588 = vmul.f32 %v1460, %v894
        %v1589 = vmul.f32 %v1461, %v899
        %v1590 = vmul.f32 %v1462, %v902
        %v1591 = vmul.f32 %v1463, %v907
        %v1592 = vmul.f32 %v1464, %v910
        %v1593 = vmul.f32 %v1465, %v915
        %v1594 = vmul.f32 %v1466, %v918
        %v1595 = vmul.f32 %v1467, %v923
        %v1596 = vmul.f32 %v1468, %v926
        %v1597 = vmul.f32 %v1469, %v931
        %v1598 = vmul.f32 %v1470, %v934
        %v1599 = vmul.f32 %v1471, %v939
        %v1600 = vmul.f32 %v1472, %v942
        %v1601 = vmul.f32 %v1473, %v947
        %v1602 = vmul.f32 %v1474, %v950
        %v1603 = vmul.f32 %v1475, %v955
        %v1604 = vmul.f32 %v1476, %v958
        %v1605 = vmul.f32 %v1477, %v963
        %v1606 = vmul.f32 %v1478, %v966
        %v1607 = vmul.f32 %v1479, %v971
        %v1608 = vmul.f32 %v1480, %v974
        %v1609 = vmul.f32 %v1481, %v979
        %v1610 = vmul.f32 %v1482, %v982
        %v1611 = vmul.f32 %v1483, %v987
        %v1612 = vmul.f32 %v1484, %v990
        %v1613 = vmul.f32 %v1485, %v995
        %v1614 = vmul.f32 %v1486, %v998
        %v1615 = vmul.f32 %v1487, %v1003
        %v1616 = vmul.f32 %v1488, %v1006
        %v1617 = vmul.f32 %v1489, %v1011
        %v1618 = vmul.f32 %v1490, %v1014
        %v1619 = vmul.f32 %v1491, %v1019
        %v1620 = vmul.f32 %v1492, %v1022
        %v1621 = vmul.f32 %v1493, %v1027
        %v1622 = vmul.f32 %v1494, %v1030
        %v1623 = vmul.f32 %v1495, %v1035
        %v1624 = vmul.f32 %v1496, %v1038
        %v1625 = vmul.f32 %v1497, %v1043
        %v1626 = vmul.f32 %v1498, %v1046
        %v1627 = vmul.f32 %v1499, %v1051
        %v1628 = vmul.f32 %v1500, %v1054
        %v1629 = vmul.f32 %v1501, %v1059
        %v1630 = vmul.f32 %v1502, %v1062
        %v1631 = vmul.f32 %v1503, %v1067
        %v1632 = vmul.f32 %v1504, %v1070
        %v1633 = vmul.f32 %v1505, %v1075
        %v1634 = vmul.f32 %v1506, %v1078
        %v1635 = vmul.f32 %v1507, %v1083
        %v1636 = vmul.f32 %v1508, %v1086
        %v1637 = vmul.f32 %v1509, %v1091
        %v1638 = vmul.f32 %v1510, %v1094
        %v1639 = vmul.f32 %v1511, %v1099
        %v1640 = vmul.f32 %v1512, %v1102
        %v1641 = vmul.f32 %v1513, %v1107
        %v1642 = vmul.f32 %v1514, %v1110
        %v1643 = vmul.f32 %v1515, %v1115
        %v1644 = vmul.f32 %v1516, %v1118
        %v1645 = vmul.f32 %v1517, %v1123
        %v1646 = vmul.f32 %v1518, %v1126
        %v1647 = vmul.f32 %v1519, %v1131
        %v1648 = vmul.f32 %v1520, %v1134
        %v1649 = vadd.f32 %v627, %v1521
        %v1650 = vadd.f32 %v630, %v1522
        %v1651 = vadd.f32 %v635, %v1523
        %v1652 = vadd.f32 %v638, %v1524
        %v1653 = vadd.f32 %v643, %v1525
        %v1654 = vadd.f32 %v646, %v1526
        %v1655 = vadd.f32 %v651, %v1527
        %v1656 = vadd.f32 %v654, %v1528
        %v1657 = vadd.f32 %v659, %v1529
        %v1658 = vadd.f32 %v662, %v1530
        %v1659 = vadd.f32 %v667, %v1531
        %v1660 = vadd.f32 %v670, %v1532
        %v1661 = vadd.f32 %v675, %v1533
        %v1662 = vadd.f32 %v678, %v1534
        %v1663 = vadd.f32 %v683, %v1535
        %v1664 = vadd.f32 %v686, %v1536
        %v1665 = vadd.f32 %v691, %v1537
        %v1666 = vadd.f32 %v694, %v1538
        %v1667 = vadd.f32 %v699, %v1539
        %v1668 = vadd.f32 %v702, %v1540
        %v1669 = vadd.f32 %v707, %v1541
        %v1670 = vadd.f32 %v710, %v1542
        %v1671 = vadd.f32 %v715, %v1543
        %v1672 = vadd.f32 %v718, %v1544
        %v1673 = vadd.f32 %v723, %v1545
        %v1674 = vadd.f32 %v726, %v1546
        %v1675 = vadd.f32 %v731, %v1547
        %v1676 = vadd.f32 %v734, %v1548
        %v1677 = vadd.f32 %v739, %v1549
        %v1678 = vadd.f32 %v742, %v1550
        %v1679 = vadd.f32 %v747, %v1551
        %v1680 = vadd.f32 %v750, %v1552
        %v1681 = vadd.f32 %v755, %v1553
        %v1682 = vadd.f32 %v758, %v1554
        %v1683 = vadd.f32 %v763, %v1555
        %v1684 = vadd.f32 %v766, %v1556
        %v1685 = vadd.f32 %v771, %v1557
        %v1686 = vadd.f32 %v774, %v1558
        %v1687 = vadd.f32 %v779, %v1559
        %v1688 = vadd.f32 %v782, %v1560
        %v1689 = vadd.f32 %v787, %v1561
        %v1690 = vadd.f32 %v790, %v1562
        %v1691 = vadd.f32 %v795, %v1563
        %v1692 = vadd.f32 %v798, %v1564
        %v1693 = vadd.f32 %v803, %v1565
        %v1694 = vadd.f32 %v806, %v1566
        %v1695 = vadd.f32 %v811, %v1567
        %v1696 = vadd.f32 %v814, %v1568
        %v1697 = vadd.f32 %v819, %v1569
        %v1698 = vadd.f32 %v822, %v1570
        %v1699 = vadd.f32 %v827, %v1571
        %v1700 = vadd.f32 %v830, %v1572
        %v1701 = vadd.f32 %v835, %v1573
        %v1702 = vadd.f32 %v838, %v1574
        %v1703 = vadd.f32 %v843, %v1575
        %v1704 = vadd.f32 %v846, %v1576
        %v1705 = vadd.f32 %v851, %v1577
        %v1706 = vadd.f32 %v854, %v1578
        %v1707 = vadd.f32 %v859, %v1579
        %v1708 = vadd.f32 %v862, %v1580
        %v1709 = vadd.f32 %v867, %v1581
        %v1710 = vadd.f32 %v870, %v1582
        %v1711 = vadd.f32 %v875, %v1583
        %v1712 = vadd.f32 %v878, %v1584
        %v1713 = vadd.f32 %v883, %v1585
        %v1714 = vadd.f32 %v886, %v1586
        %v1715 = vadd.f32 %v891, %v1587
        %v1716 = vadd.f32 %v894, %v1588
        %v1717 = vadd.f32 %v899, %v1589
        %v1718 = vadd.f32 %v902, %v1590
        %v1719 = vadd.f32 %v907, %v1591
        %v1720 = vadd.f32 %v910, %v1592
        %v1721 = vadd.f32 %v915, %v1593
        %v1722 = vadd.f32 %v918, %v1594
        %v1723 = vadd.f32 %v923, %v1595
        %v1724 = vadd.f32 %v926, %v1596
        %v1725 = vadd.f32 %v931, %v1597
        %v1726 = vadd.f32 %v934, %v1598
        %v1727 = vadd.f32 %v939, %v1599
        %v1728 = vadd.f32 %v942, %v1600
        %v1729 = vadd.f32 %v947, %v1601
        %v1730 = vadd.f32 %v950, %v1602
        %v1731 = vadd.f32 %v955, %v1603
        %v1732 = vadd.f32 %v958, %v1604
        %v1733 = vadd.f32 %v963, %v1605
        %v1734 = vadd.f32 %v966, %v1606
        %v1735 = vadd.f32 %v971, %v1607
        %v1736 = vadd.f32 %v974, %v1608
        %v1737 = vadd.f32 %v979, %v1609
        %v1738 = vadd.f32 %v982, %v1610
        %v1739 = vadd.f32 %v987, %v1611
        %v1740 = vadd.f32 %v990, %v1612
        %v1741 = vadd.f32 %v995, %v1613
        %v1742 = vadd.f32 %v998, %v1614
        %v1743 = vadd.f32 %v1003, %v1615
        %v1744 = vadd.f32 %v1006, %v1616
        %v1745 = vadd.f32 %v1011, %v1617
        %v1746 = vadd.f32 %v1014, %v1618
        %v1747 = vadd.f32 %v1019, %v1619
        %v1748 = vadd.f32 %v1022, %v1620
        %v1749 = vadd.f32 %v1027, %v1621
        %v1750 = vadd.f32 %v1030, %v1622
        %v1751 = vadd.f32 %v1035, %v1623
        %v1752 = vadd.f32 %v1038, %v1624
        %v1753 = vadd.f32 %v1043, %v1625
        %v1754 = vadd.f32 %v1046, %v1626
        %v1755 = vadd.f32 %v1051, %v1627
        %v1756 = vadd.f32 %v1054, %v1628
        %v1757 = vadd.f32 %v1059, %v1629
        %v1758 = vadd.f32 %v1062, %v1630
        %v1759 = vadd.f32 %v1067, %v1631
        %v1760 = vadd.f32 %v1070, %v1632
        %v1761 = vadd.f32 %v1075, %v1633
        %v1762 = vadd.f32 %v1078, %v1634
        %v1763 = vadd.f32 %v1083, %v1635
        %v1764 = vadd.f32 %v1086, %v1636
        %v1765 = vadd.f32 %v1091, %v1637
        %v1766 = vadd.f32 %v1094, %v1638
        %v1767 = vadd.f32 %v1099, %v1639
        %v1768 = vadd.f32 %v1102, %v1640
        %v1769 = vadd.f32 %v1107, %v1641
        %v1770 = vadd.f32 %v1110, %v1642
        %v1771 = vadd.f32 %v1115, %v1643
        %v1772 = vadd.f32 %v1118, %v1644
        %v1773 = vadd.f32 %v1123, %v1645
        %v1774 = vadd.f32 %v1126, %v1646
        %v1775 = vadd.f32 %v1131, %v1647
        %v1776 = vadd.f32 %v1134, %v1648
        %v1777 = vmul.f32 %v1649, 0.7978846
        %v1778 = vmul.f32 %v1650, 0.7978846
        %v1779 = vmul.f32 %v1651, 0.7978846
        %v1780 = vmul.f32 %v1652, 0.7978846
        %v1781 = vmul.f32 %v1653, 0.7978846
        %v1782 = vmul.f32 %v1654, 0.7978846
        %v1783 = vmul.f32 %v1655, 0.7978846
        %v1784 = vmul.f32 %v1656, 0.7978846
        %v1785 = vmul.f32 %v1657, 0.7978846
        %v1786 = vmul.f32 %v1658, 0.7978846
        %v1787 = vmul.f32 %v1659, 0.7978846
        %v1788 = vmul.f32 %v1660, 0.7978846
        %v1789 = vmul.f32 %v1661, 0.7978846
        %v1790 = vmul.f32 %v1662, 0.7978846
        %v1791 = vmul.f32 %v1663, 0.7978846
        %v1792 = vmul.f32 %v1664, 0.7978846
        %v1793 = vmul.f32 %v1665, 0.7978846
        %v1794 = vmul.f32 %v1666, 0.7978846
        %v1795 = vmul.f32 %v1667, 0.7978846
        %v1796 = vmul.f32 %v1668, 0.7978846
        %v1797 = vmul.f32 %v1669, 0.7978846
        %v1798 = vmul.f32 %v1670, 0.7978846
        %v1799 = vmul.f32 %v1671, 0.7978846
        %v1800 = vmul.f32 %v1672, 0.7978846
        %v1801 = vmul.f32 %v1673, 0.7978846
        %v1802 = vmul.f32 %v1674, 0.7978846
        %v1803 = vmul.f32 %v1675, 0.7978846
        %v1804 = vmul.f32 %v1676, 0.7978846
        %v1805 = vmul.f32 %v1677, 0.7978846
        %v1806 = vmul.f32 %v1678, 0.7978846
        %v1807 = vmul.f32 %v1679, 0.7978846
        %v1808 = vmul.f32 %v1680, 0.7978846
        %v1809 = vmul.f32 %v1681, 0.7978846
        %v1810 = vmul.f32 %v1682, 0.7978846
        %v1811 = vmul.f32 %v1683, 0.7978846
        %v1812 = vmul.f32 %v1684, 0.7978846
        %v1813 = vmul.f32 %v1685, 0.7978846
        %v1814 = vmul.f32 %v1686, 0.7978846
        %v1815 = vmul.f32 %v1687, 0.7978846
        %v1816 = vmul.f32 %v1688, 0.7978846
        %v1817 = vmul.f32 %v1689, 0.7978846
        %v1818 = vmul.f32 %v1690, 0.7978846
        %v1819 = vmul.f32 %v1691, 0.7978846
        %v1820 = vmul.f32 %v1692, 0.7978846
        %v1821 = vmul.f32 %v1693, 0.7978846
        %v1822 = vmul.f32 %v1694, 0.7978846
        %v1823 = vmul.f32 %v1695, 0.7978846
        %v1824 = vmul.f32 %v1696, 0.7978846
        %v1825 = vmul.f32 %v1697, 0.7978846
        %v1826 = vmul.f32 %v1698, 0.7978846
        %v1827 = vmul.f32 %v1699, 0.7978846
        %v1828 = vmul.f32 %v1700, 0.7978846
        %v1829 = vmul.f32 %v1701, 0.7978846
        %v1830 = vmul.f32 %v1702, 0.7978846
        %v1831 = vmul.f32 %v1703, 0.7978846
        %v1832 = vmul.f32 %v1704, 0.7978846
        %v1833 = vmul.f32 %v1705, 0.7978846
        %v1834 = vmul.f32 %v1706, 0.7978846
        %v1835 = vmul.f32 %v1707, 0.7978846
        %v1836 = vmul.f32 %v1708, 0.7978846
        %v1837 = vmul.f32 %v1709, 0.7978846
        %v1838 = vmul.f32 %v1710, 0.7978846
        %v1839 = vmul.f32 %v1711, 0.7978846
        %v1840 = vmul.f32 %v1712, 0.7978846
        %v1841 = vmul.f32 %v1713, 0.7978846
        %v1842 = vmul.f32 %v1714, 0.7978846
        %v1843 = vmul.f32 %v1715, 0.7978846
        %v1844 = vmul.f32 %v1716, 0.7978846
        %v1845 = vmul.f32 %v1717, 0.7978846
        %v1846 = vmul.f32 %v1718, 0.7978846
        %v1847 = vmul.f32 %v1719, 0.7978846
        %v1848 = vmul.f32 %v1720, 0.7978846
        %v1849 = vmul.f32 %v1721, 0.7978846
        %v1850 = vmul.f32 %v1722, 0.7978846
        %v1851 = vmul.f32 %v1723, 0.7978846
        %v1852 = vmul.f32 %v1724, 0.7978846
        %v1853 = vmul.f32 %v1725, 0.7978846
        %v1854 = vmul.f32 %v1726, 0.7978846
        %v1855 = vmul.f32 %v1727, 0.7978846
        %v1856 = vmul.f32 %v1728, 0.7978846
        %v1857 = vmul.f32 %v1729, 0.7978846
        %v1858 = vmul.f32 %v1730, 0.7978846
        %v1859 = vmul.f32 %v1731, 0.7978846
        %v1860 = vmul.f32 %v1732, 0.7978846
        %v1861 = vmul.f32 %v1733, 0.7978846
        %v1862 = vmul.f32 %v1734, 0.7978846
        %v1863 = vmul.f32 %v1735, 0.7978846
        %v1864 = vmul.f32 %v1736, 0.7978846
        %v1865 = vmul.f32 %v1737, 0.7978846
        %v1866 = vmul.f32 %v1738, 0.7978846
        %v1867 = vmul.f32 %v1739, 0.7978846
        %v1868 = vmul.f32 %v1740, 0.7978846
        %v1869 = vmul.f32 %v1741, 0.7978846
        %v1870 = vmul.f32 %v1742, 0.7978846
        %v1871 = vmul.f32 %v1743, 0.7978846
        %v1872 = vmul.f32 %v1744, 0.7978846
        %v1873 = vmul.f32 %v1745, 0.7978846
        %v1874 = vmul.f32 %v1746, 0.7978846
        %v1875 = vmul.f32 %v1747, 0.7978846
        %v1876 = vmul.f32 %v1748, 0.7978846
        %v1877 = vmul.f32 %v1749, 0.7978846
        %v1878 = vmul.f32 %v1750, 0.7978846
        %v1879 = vmul.f32 %v1751, 0.7978846
        %v1880 = vmul.f32 %v1752, 0.7978846
        %v1881 = vmul.f32 %v1753, 0.7978846
        %v1882 = vmul.f32 %v1754, 0.7978846
        %v1883 = vmul.f32 %v1755, 0.7978846
        %v1884 = vmul.f32 %v1756, 0.7978846
        %v1885 = vmul.f32 %v1757, 0.7978846
        %v1886 = vmul.f32 %v1758, 0.7978846
        %v1887 = vmul.f32 %v1759, 0.7978846
        %v1888 = vmul.f32 %v1760, 0.7978846
        %v1889 = vmul.f32 %v1761, 0.7978846
        %v1890 = vmul.f32 %v1762, 0.7978846
        %v1891 = vmul.f32 %v1763, 0.7978846
        %v1892 = vmul.f32 %v1764, 0.7978846
        %v1893 = vmul.f32 %v1765, 0.7978846
        %v1894 = vmul.f32 %v1766, 0.7978846
        %v1895 = vmul.f32 %v1767, 0.7978846
        %v1896 = vmul.f32 %v1768, 0.7978846
        %v1897 = vmul.f32 %v1769, 0.7978846
        %v1898 = vmul.f32 %v1770, 0.7978846
        %v1899 = vmul.f32 %v1771, 0.7978846
        %v1900 = vmul.f32 %v1772, 0.7978846
        %v1901 = vmul.f32 %v1773, 0.7978846
        %v1902 = vmul.f32 %v1774, 0.7978846
        %v1903 = vmul.f32 %v1775, 0.7978846
        %v1904 = vmul.f32 %v1776, 0.7978846
        %v1905 = vtanh.pop %v1777
        %v1906 = vtanh.pop %v1778
        %v1907 = vtanh.pop %v1779
        %v1908 = vtanh.pop %v1780
        %v1909 = vtanh.pop %v1781
        %v1910 = vtanh.pop %v1782
        %v1911 = vtanh.pop %v1783
        %v1912 = vtanh.pop %v1784
        %v1913 = vtanh.pop %v1785
        %v1914 = vtanh.pop %v1786
        %v1915 = vtanh.pop %v1787
        %v1916 = vtanh.pop %v1788
        %v1917 = vtanh.pop %v1789
        %v1918 = vtanh.pop %v1790
        %v1919 = vtanh.pop %v1791
        %v1920 = vtanh.pop %v1792
        %v1921 = vtanh.pop %v1793
        %v1922 = vtanh.pop %v1794
        %v1923 = vtanh.pop %v1795
        %v1924 = vtanh.pop %v1796
        %v1925 = vtanh.pop %v1797
        %v1926 = vtanh.pop %v1798
        %v1927 = vtanh.pop %v1799
        %v1928 = vtanh.pop %v1800
        %v1929 = vtanh.pop %v1801
        %v1930 = vtanh.pop %v1802
        %v1931 = vtanh.pop %v1803
        %v1932 = vtanh.pop %v1804
        %v1933 = vtanh.pop %v1805
        %v1934 = vtanh.pop %v1806
        %v1935 = vtanh.pop %v1807
        %v1936 = vtanh.pop %v1808
        %v1937 = vtanh.pop %v1809
        %v1938 = vtanh.pop %v1810
        %v1939 = vtanh.pop %v1811
        %v1940 = vtanh.pop %v1812
        %v1941 = vtanh.pop %v1813
        %v1942 = vtanh.pop %v1814
        %v1943 = vtanh.pop %v1815
        %v1944 = vtanh.pop %v1816
        %v1945 = vtanh.pop %v1817
        %v1946 = vtanh.pop %v1818
        %v1947 = vtanh.pop %v1819
        %v1948 = vtanh.pop %v1820
        %v1949 = vtanh.pop %v1821
        %v1950 = vtanh.pop %v1822
        %v1951 = vtanh.pop %v1823
        %v1952 = vtanh.pop %v1824
        %v1953 = vtanh.pop %v1825
        %v1954 = vtanh.pop %v1826
        %v1955 = vtanh.pop %v1827
        %v1956 = vtanh.pop %v1828
        %v1957 = vtanh.pop %v1829
        %v1958 = vtanh.pop %v1830
        %v1959 = vtanh.pop %v1831
        %v1960 = vtanh.pop %v1832
        %v1961 = vtanh.pop %v1833
        %v1962 = vtanh.pop %v1834
        %v1963 = vtanh.pop %v1835
        %v1964 = vtanh.pop %v1836
        %v1965 = vtanh.pop %v1837
        %v1966 = vtanh.pop %v1838
        %v1967 = vtanh.pop %v1839
        %v1968 = vtanh.pop %v1840
        %v1969 = vtanh.pop %v1841
        %v1970 = vtanh.pop %v1842
        %v1971 = vtanh.pop %v1843
        %v1972 = vtanh.pop %v1844
        %v1973 = vtanh.pop %v1845
        %v1974 = vtanh.pop %v1846
        %v1975 = vtanh.pop %v1847
        %v1976 = vtanh.pop %v1848
        %v1977 = vtanh.pop %v1849
        %v1978 = vtanh.pop %v1850
        %v1979 = vtanh.pop %v1851
        %v1980 = vtanh.pop %v1852
        %v1981 = vtanh.pop %v1853
        %v1982 = vtanh.pop %v1854
        %v1983 = vtanh.pop %v1855
        %v1984 = vtanh.pop %v1856
        %v1985 = vtanh.pop %v1857
        %v1986 = vtanh.pop %v1858
        %v1987 = vtanh.pop %v1859
        %v1988 = vtanh.pop %v1860
        %v1989 = vtanh.pop %v1861
        %v1990 = vtanh.pop %v1862
        %v1991 = vtanh.pop %v1863
        %v1992 = vtanh.pop %v1864
        %v1993 = vtanh.pop %v1865
        %v1994 = vtanh.pop %v1866
        %v1995 = vtanh.pop %v1867
        %v1996 = vtanh.pop %v1868
        %v1997 = vtanh.pop %v1869
        %v1998 = vtanh.pop %v1870
        %v1999 = vtanh.pop %v1871
        %v2000 = vtanh.pop %v1872
        %v2001 = vtanh.pop %v1873
        %v2002 = vtanh.pop %v1874
        %v2003 = vtanh.pop %v1875
        %v2004 = vtanh.pop %v1876
        %v2005 = vtanh.pop %v1877
        %v2006 = vtanh.pop %v1878
        %v2007 = vtanh.pop %v1879
        %v2008 = vtanh.pop %v1880
        %v2009 = vtanh.pop %v1881
        %v2010 = vtanh.pop %v1882
        %v2011 = vtanh.pop %v1883
        %v2012 = vtanh.pop %v1884
        %v2013 = vtanh.pop %v1885
        %v2014 = vtanh.pop %v1886
        %v2015 = vtanh.pop %v1887
        %v2016 = vtanh.pop %v1888
        %v2017 = vtanh.pop %v1889
        %v2018 = vtanh.pop %v1890
        %v2019 = vtanh.pop %v1891
        %v2020 = vtanh.pop %v1892
        %v2021 = vtanh.pop %v1893
        %v2022 = vtanh.pop %v1894
        %v2023 = vtanh.pop %v1895
        %v2024 = vtanh.pop %v1896
        %v2025 = vtanh.pop %v1897
        %v2026 = vtanh.pop %v1898
        %v2027 = vtanh.pop %v1899
        %v2028 = vtanh.pop %v1900
        %v2029 = vtanh.pop %v1901
        %v2030 = vtanh.pop %v1902
        %v2031 = vtanh.pop %v1903
        %v2032 = vtanh.pop %v1904
        %v2033 = vadd.f32 %v1905, 1.0
        %v2034 = vadd.f32 %v1906, 1.0
        %v2035 = vadd.f32 %v1907, 1.0
        %v2036 = vadd.f32 %v1908, 1.0
        %v2037 = vadd.f32 %v1909, 1.0
        %v2038 = vadd.f32 %v1910, 1.0
        %v2039 = vadd.f32 %v1911, 1.0
        %v2040 = vadd.f32 %v1912, 1.0
        %v2041 = vadd.f32 %v1913, 1.0
        %v2042 = vadd.f32 %v1914, 1.0
        %v2043 = vadd.f32 %v1915, 1.0
        %v2044 = vadd.f32 %v1916, 1.0
        %v2045 = vadd.f32 %v1917, 1.0
        %v2046 = vadd.f32 %v1918, 1.0
        %v2047 = vadd.f32 %v1919, 1.0
        %v2048 = vadd.f32 %v1920, 1.0
        %v2049 = vadd.f32 %v1921, 1.0
        %v2050 = vadd.f32 %v1922, 1.0
        %v2051 = vadd.f32 %v1923, 1.0
        %v2052 = vadd.f32 %v1924, 1.0
        %v2053 = vadd.f32 %v1925, 1.0
        %v2054 = vadd.f32 %v1926, 1.0
        %v2055 = vadd.f32 %v1927, 1.0
        %v2056 = vadd.f32 %v1928, 1.0
        %v2057 = vadd.f32 %v1929, 1.0
        %v2058 = vadd.f32 %v1930, 1.0
        %v2059 = vadd.f32 %v1931, 1.0
        %v2060 = vadd.f32 %v1932, 1.0
        %v2061 = vadd.f32 %v1933, 1.0
        %v2062 = vadd.f32 %v1934, 1.0
        %v2063 = vadd.f32 %v1935, 1.0
        %v2064 = vadd.f32 %v1936, 1.0
        %v2065 = vadd.f32 %v1937, 1.0
        %v2066 = vadd.f32 %v1938, 1.0
        %v2067 = vadd.f32 %v1939, 1.0
        %v2068 = vadd.f32 %v1940, 1.0
        %v2069 = vadd.f32 %v1941, 1.0
        %v2070 = vadd.f32 %v1942, 1.0
        %v2071 = vadd.f32 %v1943, 1.0
        %v2072 = vadd.f32 %v1944, 1.0
        %v2073 = vadd.f32 %v1945, 1.0
        %v2074 = vadd.f32 %v1946, 1.0
        %v2075 = vadd.f32 %v1947, 1.0
        %v2076 = vadd.f32 %v1948, 1.0
        %v2077 = vadd.f32 %v1949, 1.0
        %v2078 = vadd.f32 %v1950, 1.0
        %v2079 = vadd.f32 %v1951, 1.0
        %v2080 = vadd.f32 %v1952, 1.0
        %v2081 = vadd.f32 %v1953, 1.0
        %v2082 = vadd.f32 %v1954, 1.0
        %v2083 = vadd.f32 %v1955, 1.0
        %v2084 = vadd.f32 %v1956, 1.0
        %v2085 = vadd.f32 %v1957, 1.0
        %v2086 = vadd.f32 %v1958, 1.0
        %v2087 = vadd.f32 %v1959, 1.0
        %v2088 = vadd.f32 %v1960, 1.0
        %v2089 = vadd.f32 %v1961, 1.0
        %v2090 = vadd.f32 %v1962, 1.0
        %v2091 = vadd.f32 %v1963, 1.0
        %v2092 = vadd.f32 %v1964, 1.0
        %v2093 = vadd.f32 %v1965, 1.0
        %v2094 = vadd.f32 %v1966, 1.0
        %v2095 = vadd.f32 %v1967, 1.0
        %v2096 = vadd.f32 %v1968, 1.0
        %v2097 = vadd.f32 %v1969, 1.0
        %v2098 = vadd.f32 %v1970, 1.0
        %v2099 = vadd.f32 %v1971, 1.0
        %v2100 = vadd.f32 %v1972, 1.0
        %v2101 = vadd.f32 %v1973, 1.0
        %v2102 = vadd.f32 %v1974, 1.0
        %v2103 = vadd.f32 %v1975, 1.0
        %v2104 = vadd.f32 %v1976, 1.0
        %v2105 = vadd.f32 %v1977, 1.0
        %v2106 = vadd.f32 %v1978, 1.0
        %v2107 = vadd.f32 %v1979, 1.0
        %v2108 = vadd.f32 %v1980, 1.0
        %v2109 = vadd.f32 %v1981, 1.0
        %v2110 = vadd.f32 %v1982, 1.0
        %v2111 = vadd.f32 %v1983, 1.0
        %v2112 = vadd.f32 %v1984, 1.0
        %v2113 = vadd.f32 %v1985, 1.0
        %v2114 = vadd.f32 %v1986, 1.0
        %v2115 = vadd.f32 %v1987, 1.0
        %v2116 = vadd.f32 %v1988, 1.0
        %v2117 = vadd.f32 %v1989, 1.0
        %v2118 = vadd.f32 %v1990, 1.0
        %v2119 = vadd.f32 %v1991, 1.0
        %v2120 = vadd.f32 %v1992, 1.0
        %v2121 = vadd.f32 %v1993, 1.0
        %v2122 = vadd.f32 %v1994, 1.0
        %v2123 = vadd.f32 %v1995, 1.0
        %v2124 = vadd.f32 %v1996, 1.0
        %v2125 = vadd.f32 %v1997, 1.0
        %v2126 = vadd.f32 %v1998, 1.0
        %v2127 = vadd.f32 %v1999, 1.0
        %v2128 = vadd.f32 %v2000, 1.0
        %v2129 = vadd.f32 %v2001, 1.0
        %v2130 = vadd.f32 %v2002, 1.0
        %v2131 = vadd.f32 %v2003, 1.0
        %v2132 = vadd.f32 %v2004, 1.0
        %v2133 = vadd.f32 %v2005, 1.0
        %v2134 = vadd.f32 %v2006, 1.0
        %v2135 = vadd.f32 %v2007, 1.0
        %v2136 = vadd.f32 %v2008, 1.0
        %v2137 = vadd.f32 %v2009, 1.0
        %v2138 = vadd.f32 %v2010, 1.0
        %v2139 = vadd.f32 %v2011, 1.0
        %v2140 = vadd.f32 %v2012, 1.0
        %v2141 = vadd.f32 %v2013, 1.0
        %v2142 = vadd.f32 %v2014, 1.0
        %v2143 = vadd.f32 %v2015, 1.0
        %v2144 = vadd.f32 %v2016, 1.0
        %v2145 = vadd.f32 %v2017, 1.0
        %v2146 = vadd.f32 %v2018, 1.0
        %v2147 = vadd.f32 %v2019, 1.0
        %v2148 = vadd.f32 %v2020, 1.0
        %v2149 = vadd.f32 %v2021, 1.0
        %v2150 = vadd.f32 %v2022, 1.0
        %v2151 = vadd.f32 %v2023, 1.0
        %v2152 = vadd.f32 %v2024, 1.0
        %v2153 = vadd.f32 %v2025, 1.0
        %v2154 = vadd.f32 %v2026, 1.0
        %v2155 = vadd.f32 %v2027, 1.0
        %v2156 = vadd.f32 %v2028, 1.0
        %v2157 = vadd.f32 %v2029, 1.0
        %v2158 = vadd.f32 %v2030, 1.0
        %v2159 = vadd.f32 %v2031, 1.0
        %v2160 = vadd.f32 %v2032, 1.0
        %v2161 = vmul.f32 %v1137, %v2033
        %v2162 = vmul.f32 %v1138, %v2034
        %v2163 = vmul.f32 %v1139, %v2035
        %v2164 = vmul.f32 %v1140, %v2036
        %v2165 = vmul.f32 %v1141, %v2037
        %v2166 = vmul.f32 %v1142, %v2038
        %v2167 = vmul.f32 %v1143, %v2039
        %v2168 = vmul.f32 %v1144, %v2040
        %v2169 = vmul.f32 %v1145, %v2041
        %v2170 = vmul.f32 %v1146, %v2042
        %v2171 = vmul.f32 %v1147, %v2043
        %v2172 = vmul.f32 %v1148, %v2044
        %v2173 = vmul.f32 %v1149, %v2045
        %v2174 = vmul.f32 %v1150, %v2046
        %v2175 = vmul.f32 %v1151, %v2047
        %v2176 = vmul.f32 %v1152, %v2048
        %v2177 = vmul.f32 %v1153, %v2049
        %v2178 = vmul.f32 %v1154, %v2050
        %v2179 = vmul.f32 %v1155, %v2051
        %v2180 = vmul.f32 %v1156, %v2052
        %v2181 = vmul.f32 %v1157, %v2053
        %v2182 = vmul.f32 %v1158, %v2054
        %v2183 = vmul.f32 %v1159, %v2055
        %v2184 = vmul.f32 %v1160, %v2056
        %v2185 = vmul.f32 %v1161, %v2057
        %v2186 = vmul.f32 %v1162, %v2058
        %v2187 = vmul.f32 %v1163, %v2059
        %v2188 = vmul.f32 %v1164, %v2060
        %v2189 = vmul.f32 %v1165, %v2061
        %v2190 = vmul.f32 %v1166, %v2062
        %v2191 = vmul.f32 %v1167, %v2063
        %v2192 = vmul.f32 %v1168, %v2064
        %v2193 = vmul.f32 %v1169, %v2065
        %v2194 = vmul.f32 %v1170, %v2066
        %v2195 = vmul.f32 %v1171, %v2067
        %v2196 = vmul.f32 %v1172, %v2068
        %v2197 = vmul.f32 %v1173, %v2069
        %v2198 = vmul.f32 %v1174, %v2070
        %v2199 = vmul.f32 %v1175, %v2071
        %v2200 = vmul.f32 %v1176, %v2072
        %v2201 = vmul.f32 %v1177, %v2073
        %v2202 = vmul.f32 %v1178, %v2074
        %v2203 = vmul.f32 %v1179, %v2075
        %v2204 = vmul.f32 %v1180, %v2076
        %v2205 = vmul.f32 %v1181, %v2077
        %v2206 = vmul.f32 %v1182, %v2078
        %v2207 = vmul.f32 %v1183, %v2079
        %v2208 = vmul.f32 %v1184, %v2080
        %v2209 = vmul.f32 %v1185, %v2081
        %v2210 = vmul.f32 %v1186, %v2082
        %v2211 = vmul.f32 %v1187, %v2083
        %v2212 = vmul.f32 %v1188, %v2084
        %v2213 = vmul.f32 %v1189, %v2085
        %v2214 = vmul.f32 %v1190, %v2086
        %v2215 = vmul.f32 %v1191, %v2087
        %v2216 = vmul.f32 %v1192, %v2088
        %v2217 = vmul.f32 %v1193, %v2089
        %v2218 = vmul.f32 %v1194, %v2090
        %v2219 = vmul.f32 %v1195, %v2091
        %v2220 = vmul.f32 %v1196, %v2092
        %v2221 = vmul.f32 %v1197, %v2093
        %v2222 = vmul.f32 %v1198, %v2094
        %v2223 = vmul.f32 %v1199, %v2095
        %v2224 = vmul.f32 %v1200, %v2096
        %v2225 = vmul.f32 %v1201, %v2097
        %v2226 = vmul.f32 %v1202, %v2098
        %v2227 = vmul.f32 %v1203, %v2099
        %v2228 = vmul.f32 %v1204, %v2100
        %v2229 = vmul.f32 %v1205, %v2101
        %v2230 = vmul.f32 %v1206, %v2102
        %v2231 = vmul.f32 %v1207, %v2103
        %v2232 = vmul.f32 %v1208, %v2104
        %v2233 = vmul.f32 %v1209, %v2105
        %v2234 = vmul.f32 %v1210, %v2106
        %v2235 = vmul.f32 %v1211, %v2107
        %v2236 = vmul.f32 %v1212, %v2108
        %v2237 = vmul.f32 %v1213, %v2109
        %v2238 = vmul.f32 %v1214, %v2110
        %v2239 = vmul.f32 %v1215, %v2111
        %v2240 = vmul.f32 %v1216, %v2112
        %v2241 = vmul.f32 %v1217, %v2113
        %v2242 = vmul.f32 %v1218, %v2114
        %v2243 = vmul.f32 %v1219, %v2115
        %v2244 = vmul.f32 %v1220, %v2116
        %v2245 = vmul.f32 %v1221, %v2117
        %v2246 = vmul.f32 %v1222, %v2118
        %v2247 = vmul.f32 %v1223, %v2119
        %v2248 = vmul.f32 %v1224, %v2120
        %v2249 = vmul.f32 %v1225, %v2121
        %v2250 = vmul.f32 %v1226, %v2122
        %v2251 = vmul.f32 %v1227, %v2123
        %v2252 = vmul.f32 %v1228, %v2124
        %v2253 = vmul.f32 %v1229, %v2125
        %v2254 = vmul.f32 %v1230, %v2126
        %v2255 = vmul.f32 %v1231, %v2127
        %v2256 = vmul.f32 %v1232, %v2128
        %v2257 = vmul.f32 %v1233, %v2129
        %v2258 = vmul.f32 %v1234, %v2130
        %v2259 = vmul.f32 %v1235, %v2131
        %v2260 = vmul.f32 %v1236, %v2132
        %v2261 = vmul.f32 %v1237, %v2133
        %v2262 = vmul.f32 %v1238, %v2134
        %v2263 = vmul.f32 %v1239, %v2135
        %v2264 = vmul.f32 %v1240, %v2136
        %v2265 = vmul.f32 %v1241, %v2137
        %v2266 = vmul.f32 %v1242, %v2138
        %v2267 = vmul.f32 %v1243, %v2139
        %v2268 = vmul.f32 %v1244, %v2140
        %v2269 = vmul.f32 %v1245, %v2141
        %v2270 = vmul.f32 %v1246, %v2142
        %v2271 = vmul.f32 %v1247, %v2143
        %v2272 = vmul.f32 %v1248, %v2144
        %v2273 = vmul.f32 %v1249, %v2145
        %v2274 = vmul.f32 %v1250, %v2146
        %v2275 = vmul.f32 %v1251, %v2147
        %v2276 = vmul.f32 %v1252, %v2148
        %v2277 = vmul.f32 %v1253, %v2149
        %v2278 = vmul.f32 %v1254, %v2150
        %v2279 = vmul.f32 %v1255, %v2151
        %v2280 = vmul.f32 %v1256, %v2152
        %v2281 = vmul.f32 %v1257, %v2153
        %v2282 = vmul.f32 %v1258, %v2154
        %v2283 = vmul.f32 %v1259, %v2155
        %v2284 = vmul.f32 %v1260, %v2156
        %v2285 = vmul.f32 %v1261, %v2157
        %v2286 = vmul.f32 %v1262, %v2158
        %v2287 = vmul.f32 %v1263, %v2159
        %v2288 = vmul.f32 %v1264, %v2160
        %p2289 = scmp.eq.s32.totalorder %s17, 1
        // Predicated region
        $region33: #{tpu_custom_call.1} parent=31 // pred_check
          %p2290 = pneg %p2289
        $region34: #{tpu_custom_call.1} parent=31 // pred_check_branch
          %2292 = sbr.rel (%p2290) target = $region36
        $region35: #{tpu_custom_call.1} parent=31 // pred_region
          %v2293 = vlaneseq
          %v2294 = vshrl.u32 %v2293, 7
          %v2295 = vadd.s32 %v2294, 8
          %v2296 = vadd.s32 %v2294, 16
          %v2297 = vadd.s32 %v2294, 24
          %v2298 = vadd.s32 %v2294, 32
          %v2299 = vadd.s32 %v2294, 40
          %v2300 = vadd.s32 %v2294, 48
          %v2301 = vadd.s32 %v2294, 56
          %v2302 = vadd.s32 %v2294, 64
          %v2303 = vadd.s32 %v2294, 72
          %v2304 = vadd.s32 %v2294, 80
          %v2305 = vadd.s32 %v2294, 88
          %v2306 = vadd.s32 %v2294, 96
          %v2307 = vadd.s32 %v2294, 104
          %v2308 = vadd.s32 %v2294, 112
          %v2309 = vadd.s32 %v2294, 120
          %v2310 = vadd.s32 %v2294, 128
          %v2311 = vadd.s32 %v2294, 136
          %v2312 = vadd.s32 %v2294, 144
          %v2313 = vadd.s32 %v2294, 152
          %v2314 = vadd.s32 %v2294, 160
          %v2315 = vadd.s32 %v2294, 168
          %v2316 = vadd.s32 %v2294, 176
          %v2317 = vadd.s32 %v2294, 184
          %v2318 = vadd.s32 %v2294, 192
          %v2319 = vadd.s32 %v2294, 200
          %v2320 = vadd.s32 %v2294, 208
          %v2321 = vadd.s32 %v2294, 216
          %v2322 = vadd.s32 %v2294, 224
          %v2323 = vadd.s32 %v2294, 232
          %v2324 = vadd.s32 %v2294, 240
          %v2325 = vadd.s32 %v2294, 248
          %v2326 = vadd.s32 %v2294, 256
          %v2327 = vadd.s32 %v2294, 264
          %v2328 = vadd.s32 %v2294, 272
          %v2329 = vadd.s32 %v2294, 280
          %v2330 = vadd.s32 %v2294, 288
          %v2331 = vadd.s32 %v2294, 296
          %v2332 = vadd.s32 %v2294, 304
          %v2333 = vadd.s32 %v2294, 312
          %v2334 = vadd.s32 %v2294, 320
          %v2335 = vadd.s32 %v2294, 328
          %v2336 = vadd.s32 %v2294, 336
          %v2337 = vadd.s32 %v2294, 344
          %v2338 = vadd.s32 %v2294, 352
          %v2339 = vadd.s32 %v2294, 360
          %v2340 = vadd.s32 %v2294, 368
          %v2341 = vadd.s32 %v2294, 376
          %v2342 = vadd.s32 %v2294, 384
          %v2343 = vadd.s32 %v2294, 392
          %v2344 = vadd.s32 %v2294, 400
          %v2345 = vadd.s32 %v2294, 408
          %v2346 = vadd.s32 %v2294, 416
          %v2347 = vadd.s32 %v2294, 424
          %v2348 = vadd.s32 %v2294, 432
          %v2349 = vadd.s32 %v2294, 440
          %v2350 = vadd.s32 %v2294, 448
          %v2351 = vadd.s32 %v2294, 456
          %v2352 = vadd.s32 %v2294, 464
          %v2353 = vadd.s32 %v2294, 472
          %v2354 = vadd.s32 %v2294, 480
          %v2355 = vadd.s32 %v2294, 488
          %v2356 = vadd.s32 %v2294, 496
          %v2357 = vadd.s32 %v2294, 504
          %v2358 = vadd.s32 %v2294, 512
          %v2359 = vadd.s32 %v2294, 520
          %v2360 = vadd.s32 %v2294, 528
          %v2361 = vadd.s32 %v2294, 536
          %v2362 = vadd.s32 %v2294, 544
          %v2363 = vadd.s32 %v2294, 552
          %v2364 = vadd.s32 %v2294, 560
          %v2365 = vadd.s32 %v2294, 568
          %v2366 = vadd.s32 %v2294, 576
          %v2367 = vadd.s32 %v2294, 584
          %v2368 = vadd.s32 %v2294, 592
          %v2369 = vadd.s32 %v2294, 600
          %v2370 = vadd.s32 %v2294, 608
          %v2371 = vadd.s32 %v2294, 616
          %v2372 = vadd.s32 %v2294, 624
          %v2373 = vadd.s32 %v2294, 632
          %v2374 = vadd.s32 %v2294, 640
          %v2375 = vadd.s32 %v2294, 648
          %v2376 = vadd.s32 %v2294, 656
          %v2377 = vadd.s32 %v2294, 664
          %v2378 = vadd.s32 %v2294, 672
          %v2379 = vadd.s32 %v2294, 680
          %v2380 = vadd.s32 %v2294, 688
          %v2381 = vadd.s32 %v2294, 696
          %v2382 = vadd.s32 %v2294, 704
          %v2383 = vadd.s32 %v2294, 712
          %v2384 = vadd.s32 %v2294, 720
          %v2385 = vadd.s32 %v2294, 728
          %v2386 = vadd.s32 %v2294, 736
          %v2387 = vadd.s32 %v2294, 744
          %v2388 = vadd.s32 %v2294, 752
          %v2389 = vadd.s32 %v2294, 760
          %v2390 = vadd.s32 %v2294, 768
          %v2391 = vadd.s32 %v2294, 776
          %v2392 = vadd.s32 %v2294, 784
          %v2393 = vadd.s32 %v2294, 792
          %v2394 = vadd.s32 %v2294, 800
          %v2395 = vadd.s32 %v2294, 808
          %v2396 = vadd.s32 %v2294, 816
          %v2397 = vadd.s32 %v2294, 824
          %v2398 = vadd.s32 %v2294, 832
          %v2399 = vadd.s32 %v2294, 840
          %v2400 = vadd.s32 %v2294, 848
          %v2401 = vadd.s32 %v2294, 856
          %v2402 = vadd.s32 %v2294, 864
          %v2403 = vadd.s32 %v2294, 872
          %v2404 = vadd.s32 %v2294, 880
          %v2405 = vadd.s32 %v2294, 888
          %v2406 = vadd.s32 %v2294, 896
          %v2407 = vadd.s32 %v2294, 904
          %v2408 = vadd.s32 %v2294, 912
          %v2409 = vadd.s32 %v2294, 920
          %v2410 = vadd.s32 %v2294, 928
          %v2411 = vadd.s32 %v2294, 936
          %v2412 = vadd.s32 %v2294, 944
          %v2413 = vadd.s32 %v2294, 952
          %v2414 = vadd.s32 %v2294, 960
          %v2415 = vadd.s32 %v2294, 968
          %v2416 = vadd.s32 %v2294, 976
          %v2417 = vadd.s32 %v2294, 984
          %v2418 = vadd.s32 %v2294, 992
          %v2419 = vadd.s32 %v2294, 1000
          %v2420 = vadd.s32 %v2294, 1008
          %v2421 = vadd.s32 %v2294, 1016
          %vm2422 = vcmp.lt.s32.totalorder %v2294, 256
          %vm2423 = vcmp.lt.s32.totalorder %v2295, 256
          %vm2424 = vcmp.lt.s32.totalorder %v2296, 256
          %vm2425 = vcmp.lt.s32.totalorder %v2297, 256
          %vm2426 = vcmp.lt.s32.totalorder %v2298, 256
          %vm2427 = vcmp.lt.s32.totalorder %v2299, 256
          %vm2428 = vcmp.lt.s32.totalorder %v2300, 256
          %vm2429 = vcmp.lt.s32.totalorder %v2301, 256
          %vm2430 = vcmp.lt.s32.totalorder %v2302, 256
          %vm2431 = vcmp.lt.s32.totalorder %v2303, 256
          %vm2432 = vcmp.lt.s32.totalorder %v2304, 256
          %vm2433 = vcmp.lt.s32.totalorder %v2305, 256
          %vm2434 = vcmp.lt.s32.totalorder %v2306, 256
          %vm2435 = vcmp.lt.s32.totalorder %v2307, 256
          %vm2436 = vcmp.lt.s32.totalorder %v2308, 256
          %vm2437 = vcmp.lt.s32.totalorder %v2309, 256
          %vm2438 = vcmp.lt.s32.totalorder %v2310, 256
          %vm2439 = vcmp.lt.s32.totalorder %v2311, 256
          %vm2440 = vcmp.lt.s32.totalorder %v2312, 256
          %vm2441 = vcmp.lt.s32.totalorder %v2313, 256
          %vm2442 = vcmp.lt.s32.totalorder %v2314, 256
          %vm2443 = vcmp.lt.s32.totalorder %v2315, 256
          %vm2444 = vcmp.lt.s32.totalorder %v2316, 256
          %vm2445 = vcmp.lt.s32.totalorder %v2317, 256
          %vm2446 = vcmp.lt.s32.totalorder %v2318, 256
          %vm2447 = vcmp.lt.s32.totalorder %v2319, 256
          %vm2448 = vcmp.lt.s32.totalorder %v2320, 256
          %vm2449 = vcmp.lt.s32.totalorder %v2321, 256
          %vm2450 = vcmp.lt.s32.totalorder %v2322, 256
          %vm2451 = vcmp.lt.s32.totalorder %v2323, 256
          %vm2452 = vcmp.lt.s32.totalorder %v2324, 256
          %vm2453 = vcmp.lt.s32.totalorder %v2325, 256
          %vm2454 = vcmp.lt.s32.totalorder %v2326, 256
          %vm2455 = vcmp.lt.s32.totalorder %v2327, 256
          %vm2456 = vcmp.lt.s32.totalorder %v2328, 256
          %vm2457 = vcmp.lt.s32.totalorder %v2329, 256
          %vm2458 = vcmp.lt.s32.totalorder %v2330, 256
          %vm2459 = vcmp.lt.s32.totalorder %v2331, 256
          %vm2460 = vcmp.lt.s32.totalorder %v2332, 256
          %vm2461 = vcmp.lt.s32.totalorder %v2333, 256
          %vm2462 = vcmp.lt.s32.totalorder %v2334, 256
          %vm2463 = vcmp.lt.s32.totalorder %v2335, 256
          %vm2464 = vcmp.lt.s32.totalorder %v2336, 256
          %vm2465 = vcmp.lt.s32.totalorder %v2337, 256
          %vm2466 = vcmp.lt.s32.totalorder %v2338, 256
          %vm2467 = vcmp.lt.s32.totalorder %v2339, 256
          %vm2468 = vcmp.lt.s32.totalorder %v2340, 256
          %vm2469 = vcmp.lt.s32.totalorder %v2341, 256
          %vm2470 = vcmp.lt.s32.totalorder %v2342, 256
          %vm2471 = vcmp.lt.s32.totalorder %v2343, 256
          %vm2472 = vcmp.lt.s32.totalorder %v2344, 256
          %vm2473 = vcmp.lt.s32.totalorder %v2345, 256
          %vm2474 = vcmp.lt.s32.totalorder %v2346, 256
          %vm2475 = vcmp.lt.s32.totalorder %v2347, 256
          %vm2476 = vcmp.lt.s32.totalorder %v2348, 256
          %vm2477 = vcmp.lt.s32.totalorder %v2349, 256
          %vm2478 = vcmp.lt.s32.totalorder %v2350, 256
          %vm2479 = vcmp.lt.s32.totalorder %v2351, 256
          %vm2480 = vcmp.lt.s32.totalorder %v2352, 256
          %vm2481 = vcmp.lt.s32.totalorder %v2353, 256
          %vm2482 = vcmp.lt.s32.totalorder %v2354, 256
          %vm2483 = vcmp.lt.s32.totalorder %v2355, 256
          %vm2484 = vcmp.lt.s32.totalorder %v2356, 256
          %vm2485 = vcmp.lt.s32.totalorder %v2357, 256
          %vm2486 = vcmp.lt.s32.totalorder %v2358, 256
          %vm2487 = vcmp.lt.s32.totalorder %v2359, 256
          %vm2488 = vcmp.lt.s32.totalorder %v2360, 256
          %vm2489 = vcmp.lt.s32.totalorder %v2361, 256
          %vm2490 = vcmp.lt.s32.totalorder %v2362, 256
          %vm2491 = vcmp.lt.s32.totalorder %v2363, 256
          %vm2492 = vcmp.lt.s32.totalorder %v2364, 256
          %vm2493 = vcmp.lt.s32.totalorder %v2365, 256
          %vm2494 = vcmp.lt.s32.totalorder %v2366, 256
          %vm2495 = vcmp.lt.s32.totalorder %v2367, 256
          %vm2496 = vcmp.lt.s32.totalorder %v2368, 256
          %vm2497 = vcmp.lt.s32.totalorder %v2369, 256
          %vm2498 = vcmp.lt.s32.totalorder %v2370, 256
          %vm2499 = vcmp.lt.s32.totalorder %v2371, 256
          %vm2500 = vcmp.lt.s32.totalorder %v2372, 256
          %vm2501 = vcmp.lt.s32.totalorder %v2373, 256
          %vm2502 = vcmp.lt.s32.totalorder %v2374, 256
          %vm2503 = vcmp.lt.s32.totalorder %v2375, 256
          %vm2504 = vcmp.lt.s32.totalorder %v2376, 256
          %vm2505 = vcmp.lt.s32.totalorder %v2377, 256
          %vm2506 = vcmp.lt.s32.totalorder %v2378, 256
          %vm2507 = vcmp.lt.s32.totalorder %v2379, 256
          %vm2508 = vcmp.lt.s32.totalorder %v2380, 256
          %vm2509 = vcmp.lt.s32.totalorder %v2381, 256
          %vm2510 = vcmp.lt.s32.totalorder %v2382, 256
          %vm2511 = vcmp.lt.s32.totalorder %v2383, 256
          %vm2512 = vcmp.lt.s32.totalorder %v2384, 256
          %vm2513 = vcmp.lt.s32.totalorder %v2385, 256
          %vm2514 = vcmp.lt.s32.totalorder %v2386, 256
          %vm2515 = vcmp.lt.s32.totalorder %v2387, 256
          %vm2516 = vcmp.lt.s32.totalorder %v2388, 256
          %vm2517 = vcmp.lt.s32.totalorder %v2389, 256
          %vm2518 = vcmp.lt.s32.totalorder %v2390, 256
          %vm2519 = vcmp.lt.s32.totalorder %v2391, 256
          %vm2520 = vcmp.lt.s32.totalorder %v2392, 256
          %vm2521 = vcmp.lt.s32.totalorder %v2393, 256
          %vm2522 = vcmp.lt.s32.totalorder %v2394, 256
          %vm2523 = vcmp.lt.s32.totalorder %v2395, 256
          %vm2524 = vcmp.lt.s32.totalorder %v2396, 256
          %vm2525 = vcmp.lt.s32.totalorder %v2397, 256
          %vm2526 = vcmp.lt.s32.totalorder %v2398, 256
          %vm2527 = vcmp.lt.s32.totalorder %v2399, 256
          %vm2528 = vcmp.lt.s32.totalorder %v2400, 256
          %vm2529 = vcmp.lt.s32.totalorder %v2401, 256
          %vm2530 = vcmp.lt.s32.totalorder %v2402, 256
          %vm2531 = vcmp.lt.s32.totalorder %v2403, 256
          %vm2532 = vcmp.lt.s32.totalorder %v2404, 256
          %vm2533 = vcmp.lt.s32.totalorder %v2405, 256
          %vm2534 = vcmp.lt.s32.totalorder %v2406, 256
          %vm2535 = vcmp.lt.s32.totalorder %v2407, 256
          %vm2536 = vcmp.lt.s32.totalorder %v2408, 256
          %vm2537 = vcmp.lt.s32.totalorder %v2409, 256
          %vm2538 = vcmp.lt.s32.totalorder %v2410, 256
          %vm2539 = vcmp.lt.s32.totalorder %v2411, 256
          %vm2540 = vcmp.lt.s32.totalorder %v2412, 256
          %vm2541 = vcmp.lt.s32.totalorder %v2413, 256
          %vm2542 = vcmp.lt.s32.totalorder %v2414, 256
          %vm2543 = vcmp.lt.s32.totalorder %v2415, 256
          %vm2544 = vcmp.lt.s32.totalorder %v2416, 256
          %vm2545 = vcmp.lt.s32.totalorder %v2417, 256
          %vm2546 = vcmp.lt.s32.totalorder %v2418, 256
          %vm2547 = vcmp.lt.s32.totalorder %v2419, 256
          %vm2548 = vcmp.lt.s32.totalorder %v2420, 256
          %vm2549 = vcmp.lt.s32.totalorder %v2421, 256
          %v2550 = vsel %vm2422, %v2161, 0.0
          %v2551 = vsel %vm2423, %v2162, 0.0
          %v2552 = vsel %vm2424, %v2163, 0.0
          %v2553 = vsel %vm2425, %v2164, 0.0
          %v2554 = vsel %vm2426, %v2165, 0.0
          %v2555 = vsel %vm2427, %v2166, 0.0
          %v2556 = vsel %vm2428, %v2167, 0.0
          %v2557 = vsel %vm2429, %v2168, 0.0
          %v2558 = vsel %vm2430, %v2169, 0.0
          %v2559 = vsel %vm2431, %v2170, 0.0
          %v2560 = vsel %vm2432, %v2171, 0.0
          %v2561 = vsel %vm2433, %v2172, 0.0
          %v2562 = vsel %vm2434, %v2173, 0.0
          %v2563 = vsel %vm2435, %v2174, 0.0
          %v2564 = vsel %vm2436, %v2175, 0.0
          %v2565 = vsel %vm2437, %v2176, 0.0
          %v2566 = vsel %vm2438, %v2177, 0.0
          %v2567 = vsel %vm2439, %v2178, 0.0
          %v2568 = vsel %vm2440, %v2179, 0.0
          %v2569 = vsel %vm2441, %v2180, 0.0
          %v2570 = vsel %vm2442, %v2181, 0.0
          %v2571 = vsel %vm2443, %v2182, 0.0
          %v2572 = vsel %vm2444, %v2183, 0.0
          %v2573 = vsel %vm2445, %v2184, 0.0
          %v2574 = vsel %vm2446, %v2185, 0.0
          %v2575 = vsel %vm2447, %v2186, 0.0
          %v2576 = vsel %vm2448, %v2187, 0.0
          %v2577 = vsel %vm2449, %v2188, 0.0
          %v2578 = vsel %vm2450, %v2189, 0.0
          %v2579 = vsel %vm2451, %v2190, 0.0
          %v2580 = vsel %vm2452, %v2191, 0.0
          %v2581 = vsel %vm2453, %v2192, 0.0
          %v2582 = vsel %vm2454, %v2193, 0.0
          %v2583 = vsel %vm2455, %v2194, 0.0
          %v2584 = vsel %vm2456, %v2195, 0.0
          %v2585 = vsel %vm2457, %v2196, 0.0
          %v2586 = vsel %vm2458, %v2197, 0.0
          %v2587 = vsel %vm2459, %v2198, 0.0
          %v2588 = vsel %vm2460, %v2199, 0.0
          %v2589 = vsel %vm2461, %v2200, 0.0
          %v2590 = vsel %vm2462, %v2201, 0.0
          %v2591 = vsel %vm2463, %v2202, 0.0
          %v2592 = vsel %vm2464, %v2203, 0.0
          %v2593 = vsel %vm2465, %v2204, 0.0
          %v2594 = vsel %vm2466, %v2205, 0.0
          %v2595 = vsel %vm2467, %v2206, 0.0
          %v2596 = vsel %vm2468, %v2207, 0.0
          %v2597 = vsel %vm2469, %v2208, 0.0
          %v2598 = vsel %vm2470, %v2209, 0.0
          %v2599 = vsel %vm2471, %v2210, 0.0
          %v2600 = vsel %vm2472, %v2211, 0.0
          %v2601 = vsel %vm2473, %v2212, 0.0
          %v2602 = vsel %vm2474, %v2213, 0.0
          %v2603 = vsel %vm2475, %v2214, 0.0
          %v2604 = vsel %vm2476, %v2215, 0.0
          %v2605 = vsel %vm2477, %v2216, 0.0
          %v2606 = vsel %vm2478, %v2217, 0.0
          %v2607 = vsel %vm2479, %v2218, 0.0
          %v2608 = vsel %vm2480, %v2219, 0.0
          %v2609 = vsel %vm2481, %v2220, 0.0
          %v2610 = vsel %vm2482, %v2221, 0.0
          %v2611 = vsel %vm2483, %v2222, 0.0
          %v2612 = vsel %vm2484, %v2223, 0.0
          %v2613 = vsel %vm2485, %v2224, 0.0
          %v2614 = vsel %vm2486, %v2225, 0.0
          %v2615 = vsel %vm2487, %v2226, 0.0
          %v2616 = vsel %vm2488, %v2227, 0.0
          %v2617 = vsel %vm2489, %v2228, 0.0
          %v2618 = vsel %vm2490, %v2229, 0.0
          %v2619 = vsel %vm2491, %v2230, 0.0
          %v2620 = vsel %vm2492, %v2231, 0.0
          %v2621 = vsel %vm2493, %v2232, 0.0
          %v2622 = vsel %vm2494, %v2233, 0.0
          %v2623 = vsel %vm2495, %v2234, 0.0
          %v2624 = vsel %vm2496, %v2235, 0.0
          %v2625 = vsel %vm2497, %v2236, 0.0
          %v2626 = vsel %vm2498, %v2237, 0.0
          %v2627 = vsel %vm2499, %v2238, 0.0
          %v2628 = vsel %vm2500, %v2239, 0.0
          %v2629 = vsel %vm2501, %v2240, 0.0
          %v2630 = vsel %vm2502, %v2241, 0.0
          %v2631 = vsel %vm2503, %v2242, 0.0
          %v2632 = vsel %vm2504, %v2243, 0.0
          %v2633 = vsel %vm2505, %v2244, 0.0
          %v2634 = vsel %vm2506, %v2245, 0.0
          %v2635 = vsel %vm2507, %v2246, 0.0
          %v2636 = vsel %vm2508, %v2247, 0.0
          %v2637 = vsel %vm2509, %v2248, 0.0
          %v2638 = vsel %vm2510, %v2249, 0.0
          %v2639 = vsel %vm2511, %v2250, 0.0
          %v2640 = vsel %vm2512, %v2251, 0.0
          %v2641 = vsel %vm2513, %v2252, 0.0
          %v2642 = vsel %vm2514, %v2253, 0.0
          %v2643 = vsel %vm2515, %v2254, 0.0
          %v2644 = vsel %vm2516, %v2255, 0.0
          %v2645 = vsel %vm2517, %v2256, 0.0
          %v2646 = vsel %vm2518, %v2257, 0.0
          %v2647 = vsel %vm2519, %v2258, 0.0
          %v2648 = vsel %vm2520, %v2259, 0.0
          %v2649 = vsel %vm2521, %v2260, 0.0
          %v2650 = vsel %vm2522, %v2261, 0.0
          %v2651 = vsel %vm2523, %v2262, 0.0
          %v2652 = vsel %vm2524, %v2263, 0.0
          %v2653 = vsel %vm2525, %v2264, 0.0
          %v2654 = vsel %vm2526, %v2265, 0.0
          %v2655 = vsel %vm2527, %v2266, 0.0
          %v2656 = vsel %vm2528, %v2267, 0.0
          %v2657 = vsel %vm2529, %v2268, 0.0
          %v2658 = vsel %vm2530, %v2269, 0.0
          %v2659 = vsel %vm2531, %v2270, 0.0
          %v2660 = vsel %vm2532, %v2271, 0.0
          %v2661 = vsel %vm2533, %v2272, 0.0
          %v2662 = vsel %vm2534, %v2273, 0.0
          %v2663 = vsel %vm2535, %v2274, 0.0
          %v2664 = vsel %vm2536, %v2275, 0.0
          %v2665 = vsel %vm2537, %v2276, 0.0
          %v2666 = vsel %vm2538, %v2277, 0.0
          %v2667 = vsel %vm2539, %v2278, 0.0
          %v2668 = vsel %vm2540, %v2279, 0.0
          %v2669 = vsel %vm2541, %v2280, 0.0
          %v2670 = vsel %vm2542, %v2281, 0.0
          %v2671 = vsel %vm2543, %v2282, 0.0
          %v2672 = vsel %vm2544, %v2283, 0.0
          %v2673 = vsel %vm2545, %v2284, 0.0
          %v2674 = vsel %vm2546, %v2285, 0.0
          %v2675 = vsel %vm2547, %v2286, 0.0
          %v2676 = vsel %vm2548, %v2287, 0.0
          %v2677 = vsel %vm2549, %v2288, 0.0
          %v2678 = vadd.f32 %v2550, %v2551
          %v2679 = vadd.f32 %v2678, %v2552
          %v2680 = vadd.f32 %v2679, %v2553
          %v2681 = vadd.f32 %v2680, %v2554
          %v2682 = vadd.f32 %v2681, %v2555
          %v2683 = vadd.f32 %v2682, %v2556
          %v2684 = vadd.f32 %v2683, %v2557
          %v2685 = vadd.f32 %v2684, %v2558
          %v2686 = vadd.f32 %v2685, %v2559
          %v2687 = vadd.f32 %v2686, %v2560
          %v2688 = vadd.f32 %v2687, %v2561
          %v2689 = vadd.f32 %v2688, %v2562
          %v2690 = vadd.f32 %v2689, %v2563
          %v2691 = vadd.f32 %v2690, %v2564
          %v2692 = vadd.f32 %v2691, %v2565
          %v2693 = vadd.f32 %v2692, %v2566
          %v2694 = vadd.f32 %v2693, %v2567
          %v2695 = vadd.f32 %v2694, %v2568
          %v2696 = vadd.f32 %v2695, %v2569
          %v2697 = vadd.f32 %v2696, %v2570
          %v2698 = vadd.f32 %v2697, %v2571
          %v2699 = vadd.f32 %v2698, %v2572
          %v2700 = vadd.f32 %v2699, %v2573
          %v2701 = vadd.f32 %v2700, %v2574
          %v2702 = vadd.f32 %v2701, %v2575
          %v2703 = vadd.f32 %v2702, %v2576
          %v2704 = vadd.f32 %v2703, %v2577
          %v2705 = vadd.f32 %v2704, %v2578
          %v2706 = vadd.f32 %v2705, %v2579
          %v2707 = vadd.f32 %v2706, %v2580
          %v2708 = vadd.f32 %v2707, %v2581
          %v2709 = vadd.f32 %v2708, %v2582
          %v2710 = vadd.f32 %v2709, %v2583
          %v2711 = vadd.f32 %v2710, %v2584
          %v2712 = vadd.f32 %v2711, %v2585
          %v2713 = vadd.f32 %v2712, %v2586
          %v2714 = vadd.f32 %v2713, %v2587
          %v2715 = vadd.f32 %v2714, %v2588
          %v2716 = vadd.f32 %v2715, %v2589
          %v2717 = vadd.f32 %v2716, %v2590
          %v2718 = vadd.f32 %v2717, %v2591
          %v2719 = vadd.f32 %v2718, %v2592
          %v2720 = vadd.f32 %v2719, %v2593
          %v2721 = vadd.f32 %v2720, %v2594
          %v2722 = vadd.f32 %v2721, %v2595
          %v2723 = vadd.f32 %v2722, %v2596
          %v2724 = vadd.f32 %v2723, %v2597
          %v2725 = vadd.f32 %v2724, %v2598
          %v2726 = vadd.f32 %v2725, %v2599
          %v2727 = vadd.f32 %v2726, %v2600
          %v2728 = vadd.f32 %v2727, %v2601
          %v2729 = vadd.f32 %v2728, %v2602
          %v2730 = vadd.f32 %v2729, %v2603
          %v2731 = vadd.f32 %v2730, %v2604
          %v2732 = vadd.f32 %v2731, %v2605
          %v2733 = vadd.f32 %v2732, %v2606
          %v2734 = vadd.f32 %v2733, %v2607
          %v2735 = vadd.f32 %v2734, %v2608
          %v2736 = vadd.f32 %v2735, %v2609
          %v2737 = vadd.f32 %v2736, %v2610
          %v2738 = vadd.f32 %v2737, %v2611
          %v2739 = vadd.f32 %v2738, %v2612
          %v2740 = vadd.f32 %v2739, %v2613
          %v2741 = vadd.f32 %v2740, %v2614
          %v2742 = vadd.f32 %v2741, %v2615
          %v2743 = vadd.f32 %v2742, %v2616
          %v2744 = vadd.f32 %v2743, %v2617
          %v2745 = vadd.f32 %v2744, %v2618
          %v2746 = vadd.f32 %v2745, %v2619
          %v2747 = vadd.f32 %v2746, %v2620
          %v2748 = vadd.f32 %v2747, %v2621
          %v2749 = vadd.f32 %v2748, %v2622
          %v2750 = vadd.f32 %v2749, %v2623
          %v2751 = vadd.f32 %v2750, %v2624
          %v2752 = vadd.f32 %v2751, %v2625
          %v2753 = vadd.f32 %v2752, %v2626
          %v2754 = vadd.f32 %v2753, %v2627
          %v2755 = vadd.f32 %v2754, %v2628
          %v2756 = vadd.f32 %v2755, %v2629
          %v2757 = vadd.f32 %v2756, %v2630
          %v2758 = vadd.f32 %v2757, %v2631
          %v2759 = vadd.f32 %v2758, %v2632
          %v2760 = vadd.f32 %v2759, %v2633
          %v2761 = vadd.f32 %v2760, %v2634
          %v2762 = vadd.f32 %v2761, %v2635
          %v2763 = vadd.f32 %v2762, %v2636
          %v2764 = vadd.f32 %v2763, %v2637
          %v2765 = vadd.f32 %v2764, %v2638
          %v2766 = vadd.f32 %v2765, %v2639
          %v2767 = vadd.f32 %v2766, %v2640
          %v2768 = vadd.f32 %v2767, %v2641
          %v2769 = vadd.f32 %v2768, %v2642
          %v2770 = vadd.f32 %v2769, %v2643
          %v2771 = vadd.f32 %v2770, %v2644
          %v2772 = vadd.f32 %v2771, %v2645
          %v2773 = vadd.f32 %v2772, %v2646
          %v2774 = vadd.f32 %v2773, %v2647
          %v2775 = vadd.f32 %v2774, %v2648
          %v2776 = vadd.f32 %v2775, %v2649
          %v2777 = vadd.f32 %v2776, %v2650
          %v2778 = vadd.f32 %v2777, %v2651
          %v2779 = vadd.f32 %v2778, %v2652
          %v2780 = vadd.f32 %v2779, %v2653
          %v2781 = vadd.f32 %v2780, %v2654
          %v2782 = vadd.f32 %v2781, %v2655
          %v2783 = vadd.f32 %v2782, %v2656
          %v2784 = vadd.f32 %v2783, %v2657
          %v2785 = vadd.f32 %v2784, %v2658
          %v2786 = vadd.f32 %v2785, %v2659
          %v2787 = vadd.f32 %v2786, %v2660
          %v2788 = vadd.f32 %v2787, %v2661
          %v2789 = vadd.f32 %v2788, %v2662
          %v2790 = vadd.f32 %v2789, %v2663
          %v2791 = vadd.f32 %v2790, %v2664
          %v2792 = vadd.f32 %v2791, %v2665
          %v2793 = vadd.f32 %v2792, %v2666
          %v2794 = vadd.f32 %v2793, %v2667
          %v2795 = vadd.f32 %v2794, %v2668
          %v2796 = vadd.f32 %v2795, %v2669
          %v2797 = vadd.f32 %v2796, %v2670
          %v2798 = vadd.f32 %v2797, %v2671
          %v2799 = vadd.f32 %v2798, %v2672
          %v2800 = vadd.f32 %v2799, %v2673
          %v2801 = vadd.f32 %v2800, %v2674
          %v2802 = vadd.f32 %v2801, %v2675
          %v2803 = vadd.f32 %v2802, %v2676
          %v2804 = vadd.f32 %v2803, %v2677
          %v2805 = vrot.slane %v2804, 4
          %v2806 = vadd.f32 %v2804, %v2805
          %v2807 = vrot.slane %v2806, 2
          %v2808 = vadd.f32 %v2806, %v2807
          %v2809 = vrot.slane %v2808, 1
          %v2810 = vadd.f32 %v2808, %v2809
          %v2811 = vmul.f32 %v2550, %v2550
          %v2812 = vmul.f32 %v2551, %v2551
          %v2813 = vmul.f32 %v2552, %v2552
          %v2814 = vmul.f32 %v2553, %v2553
          %v2815 = vmul.f32 %v2554, %v2554
          %v2816 = vmul.f32 %v2555, %v2555
          %v2817 = vmul.f32 %v2556, %v2556
          %v2818 = vmul.f32 %v2557, %v2557
          %v2819 = vmul.f32 %v2558, %v2558
          %v2820 = vmul.f32 %v2559, %v2559
          %v2821 = vmul.f32 %v2560, %v2560
          %v2822 = vmul.f32 %v2561, %v2561
          %v2823 = vmul.f32 %v2562, %v2562
          %v2824 = vmul.f32 %v2563, %v2563
          %v2825 = vmul.f32 %v2564, %v2564
          %v2826 = vmul.f32 %v2565, %v2565
          %v2827 = vmul.f32 %v2566, %v2566
          %v2828 = vmul.f32 %v2567, %v2567
          %v2829 = vmul.f32 %v2568, %v2568
          %v2830 = vmul.f32 %v2569, %v2569
          %v2831 = vmul.f32 %v2570, %v2570
          %v2832 = vmul.f32 %v2571, %v2571
          %v2833 = vmul.f32 %v2572, %v2572
          %v2834 = vmul.f32 %v2573, %v2573
          %v2835 = vmul.f32 %v2574, %v2574
          %v2836 = vmul.f32 %v2575, %v2575
          %v2837 = vmul.f32 %v2576, %v2576
          %v2838 = vmul.f32 %v2577, %v2577
          %v2839 = vmul.f32 %v2578, %v2578
          %v2840 = vmul.f32 %v2579, %v2579
          %v2841 = vmul.f32 %v2580, %v2580
          %v2842 = vmul.f32 %v2581, %v2581
          %v2843 = vmul.f32 %v2582, %v2582
          %v2844 = vmul.f32 %v2583, %v2583
          %v2845 = vmul.f32 %v2584, %v2584
          %v2846 = vmul.f32 %v2585, %v2585
          %v2847 = vmul.f32 %v2586, %v2586
          %v2848 = vmul.f32 %v2587, %v2587
          %v2849 = vmul.f32 %v2588, %v2588
          %v2850 = vmul.f32 %v2589, %v2589
          %v2851 = vmul.f32 %v2590, %v2590
          %v2852 = vmul.f32 %v2591, %v2591
          %v2853 = vmul.f32 %v2592, %v2592
          %v2854 = vmul.f32 %v2593, %v2593
          %v2855 = vmul.f32 %v2594, %v2594
          %v2856 = vmul.f32 %v2595, %v2595
          %v2857 = vmul.f32 %v2596, %v2596
          %v2858 = vmul.f32 %v2597, %v2597
          %v2859 = vmul.f32 %v2598, %v2598
          %v2860 = vmul.f32 %v2599, %v2599
          %v2861 = vmul.f32 %v2600, %v2600
          %v2862 = vmul.f32 %v2601, %v2601
          %v2863 = vmul.f32 %v2602, %v2602
          %v2864 = vmul.f32 %v2603, %v2603
          %v2865 = vmul.f32 %v2604, %v2604
          %v2866 = vmul.f32 %v2605, %v2605
          %v2867 = vmul.f32 %v2606, %v2606
          %v2868 = vmul.f32 %v2607, %v2607
          %v2869 = vmul.f32 %v2608, %v2608
          %v2870 = vmul.f32 %v2609, %v2609
          %v2871 = vmul.f32 %v2610, %v2610
          %v2872 = vmul.f32 %v2611, %v2611
          %v2873 = vmul.f32 %v2612, %v2612
          %v2874 = vmul.f32 %v2613, %v2613
          %v2875 = vmul.f32 %v2614, %v2614
          %v2876 = vmul.f32 %v2615, %v2615
          %v2877 = vmul.f32 %v2616, %v2616
          %v2878 = vmul.f32 %v2617, %v2617
          %v2879 = vmul.f32 %v2618, %v2618
          %v2880 = vmul.f32 %v2619, %v2619
          %v2881 = vmul.f32 %v2620, %v2620
          %v2882 = vmul.f32 %v2621, %v2621
          %v2883 = vmul.f32 %v2622, %v2622
          %v2884 = vmul.f32 %v2623, %v2623
          %v2885 = vmul.f32 %v2624, %v2624
          %v2886 = vmul.f32 %v2625, %v2625
          %v2887 = vmul.f32 %v2626, %v2626
          %v2888 = vmul.f32 %v2627, %v2627
          %v2889 = vmul.f32 %v2628, %v2628
          %v2890 = vmul.f32 %v2629, %v2629
          %v2891 = vmul.f32 %v2630, %v2630
          %v2892 = vmul.f32 %v2631, %v2631
          %v2893 = vmul.f32 %v2632, %v2632
          %v2894 = vmul.f32 %v2633, %v2633
          %v2895 = vmul.f32 %v2634, %v2634
          %v2896 = vmul.f32 %v2635, %v2635
          %v2897 = vmul.f32 %v2636, %v2636
          %v2898 = vmul.f32 %v2637, %v2637
          %v2899 = vmul.f32 %v2638, %v2638
          %v2900 = vmul.f32 %v2639, %v2639
          %v2901 = vmul.f32 %v2640, %v2640
          %v2902 = vmul.f32 %v2641, %v2641
          %v2903 = vmul.f32 %v2642, %v2642
          %v2904 = vmul.f32 %v2643, %v2643
          %v2905 = vmul.f32 %v2644, %v2644
          %v2906 = vmul.f32 %v2645, %v2645
          %v2907 = vmul.f32 %v2646, %v2646
          %v2908 = vmul.f32 %v2647, %v2647
          %v2909 = vmul.f32 %v2648, %v2648
          %v2910 = vmul.f32 %v2649, %v2649
          %v2911 = vmul.f32 %v2650, %v2650
          %v2912 = vmul.f32 %v2651, %v2651
          %v2913 = vmul.f32 %v2652, %v2652
          %v2914 = vmul.f32 %v2653, %v2653
          %v2915 = vmul.f32 %v2654, %v2654
          %v2916 = vmul.f32 %v2655, %v2655
          %v2917 = vmul.f32 %v2656, %v2656
          %v2918 = vmul.f32 %v2657, %v2657
          %v2919 = vmul.f32 %v2658, %v2658
          %v2920 = vmul.f32 %v2659, %v2659
          %v2921 = vmul.f32 %v2660, %v2660
          %v2922 = vmul.f32 %v2661, %v2661
          %v2923 = vmul.f32 %v2662, %v2662
          %v2924 = vmul.f32 %v2663, %v2663
          %v2925 = vmul.f32 %v2664, %v2664
          %v2926 = vmul.f32 %v2665, %v2665
          %v2927 = vmul.f32 %v2666, %v2666
          %v2928 = vmul.f32 %v2667, %v2667
          %v2929 = vmul.f32 %v2668, %v2668
          %v2930 = vmul.f32 %v2669, %v2669
          %v2931 = vmul.f32 %v2670, %v2670
          %v2932 = vmul.f32 %v2671, %v2671
          %v2933 = vmul.f32 %v2672, %v2672
          %v2934 = vmul.f32 %v2673, %v2673
          %v2935 = vmul.f32 %v2674, %v2674
          %v2936 = vmul.f32 %v2675, %v2675
          %v2937 = vmul.f32 %v2676, %v2676
          %v2938 = vmul.f32 %v2677, %v2677
          %v2939 = vadd.f32 %v2811, %v2812
          %v2940 = vadd.f32 %v2939, %v2813
          %v2941 = vadd.f32 %v2940, %v2814
          %v2942 = vadd.f32 %v2941, %v2815
          %v2943 = vadd.f32 %v2942, %v2816
          %v2944 = vadd.f32 %v2943, %v2817
          %v2945 = vadd.f32 %v2944, %v2818
          %v2946 = vadd.f32 %v2945, %v2819
          %v2947 = vadd.f32 %v2946, %v2820
          %v2948 = vadd.f32 %v2947, %v2821
          %v2949 = vadd.f32 %v2948, %v2822
          %v2950 = vadd.f32 %v2949, %v2823
          %v2951 = vadd.f32 %v2950, %v2824
          %v2952 = vadd.f32 %v2951, %v2825
          %v2953 = vadd.f32 %v2952, %v2826
          %v2954 = vadd.f32 %v2953, %v2827
          %v2955 = vadd.f32 %v2954, %v2828
          %v2956 = vadd.f32 %v2955, %v2829
          %v2957 = vadd.f32 %v2956, %v2830
          %v2958 = vadd.f32 %v2957, %v2831
          %v2959 = vadd.f32 %v2958, %v2832
          %v2960 = vadd.f32 %v2959, %v2833
          %v2961 = vadd.f32 %v2960, %v2834
          %v2962 = vadd.f32 %v2961, %v2835
          %v2963 = vadd.f32 %v2962, %v2836
          %v2964 = vadd.f32 %v2963, %v2837
          %v2965 = vadd.f32 %v2964, %v2838
          %v2966 = vadd.f32 %v2965, %v2839
          %v2967 = vadd.f32 %v2966, %v2840
          %v2968 = vadd.f32 %v2967, %v2841
          %v2969 = vadd.f32 %v2968, %v2842
          %v2970 = vadd.f32 %v2969, %v2843
          %v2971 = vadd.f32 %v2970, %v2844
          %v2972 = vadd.f32 %v2971, %v2845
          %v2973 = vadd.f32 %v2972, %v2846
          %v2974 = vadd.f32 %v2973, %v2847
          %v2975 = vadd.f32 %v2974, %v2848
          %v2976 = vadd.f32 %v2975, %v2849
          %v2977 = vadd.f32 %v2976, %v2850
          %v2978 = vadd.f32 %v2977, %v2851
          %v2979 = vadd.f32 %v2978, %v2852
          %v2980 = vadd.f32 %v2979, %v2853
          %v2981 = vadd.f32 %v2980, %v2854
          %v2982 = vadd.f32 %v2981, %v2855
          %v2983 = vadd.f32 %v2982, %v2856
          %v2984 = vadd.f32 %v2983, %v2857
          %v2985 = vadd.f32 %v2984, %v2858
          %v2986 = vadd.f32 %v2985, %v2859
          %v2987 = vadd.f32 %v2986, %v2860
          %v2988 = vadd.f32 %v2987, %v2861
          %v2989 = vadd.f32 %v2988, %v2862
          %v2990 = vadd.f32 %v2989, %v2863
          %v2991 = vadd.f32 %v2990, %v2864
          %v2992 = vadd.f32 %v2991, %v2865
          %v2993 = vadd.f32 %v2992, %v2866
          %v2994 = vadd.f32 %v2993, %v2867
          %v2995 = vadd.f32 %v2994, %v2868
          %v2996 = vadd.f32 %v2995, %v2869
          %v2997 = vadd.f32 %v2996, %v2870
          %v2998 = vadd.f32 %v2997, %v2871
          %v2999 = vadd.f32 %v2998, %v2872
          %v3000 = vadd.f32 %v2999, %v2873
          %v3001 = vadd.f32 %v3000, %v2874
          %v3002 = vadd.f32 %v3001, %v2875
          %v3003 = vadd.f32 %v3002, %v2876
          %v3004 = vadd.f32 %v3003, %v2877
          %v3005 = vadd.f32 %v3004, %v2878
          %v3006 = vadd.f32 %v3005, %v2879
          %v3007 = vadd.f32 %v3006, %v2880
          %v3008 = vadd.f32 %v3007, %v2881
          %v3009 = vadd.f32 %v3008, %v2882
          %v3010 = vadd.f32 %v3009, %v2883
          %v3011 = vadd.f32 %v3010, %v2884
          %v3012 = vadd.f32 %v3011, %v2885
          %v3013 = vadd.f32 %v3012, %v2886
          %v3014 = vadd.f32 %v3013, %v2887
          %v3015 = vadd.f32 %v3014, %v2888
          %v3016 = vadd.f32 %v3015, %v2889
          %v3017 = vadd.f32 %v3016, %v2890
          %v3018 = vadd.f32 %v3017, %v2891
          %v3019 = vadd.f32 %v3018, %v2892
          %v3020 = vadd.f32 %v3019, %v2893
          %v3021 = vadd.f32 %v3020, %v2894
          %v3022 = vadd.f32 %v3021, %v2895
          %v3023 = vadd.f32 %v3022, %v2896
          %v3024 = vadd.f32 %v3023, %v2897
          %v3025 = vadd.f32 %v3024, %v2898
          %v3026 = vadd.f32 %v3025, %v2899
          %v3027 = vadd.f32 %v3026, %v2900
          %v3028 = vadd.f32 %v3027, %v2901
          %v3029 = vadd.f32 %v3028, %v2902
          %v3030 = vadd.f32 %v3029, %v2903
          %v3031 = vadd.f32 %v3030, %v2904
          %v3032 = vadd.f32 %v3031, %v2905
          %v3033 = vadd.f32 %v3032, %v2906
          %v3034 = vadd.f32 %v3033, %v2907
          %v3035 = vadd.f32 %v3034, %v2908
          %v3036 = vadd.f32 %v3035, %v2909
          %v3037 = vadd.f32 %v3036, %v2910
          %v3038 = vadd.f32 %v3037, %v2911
          %v3039 = vadd.f32 %v3038, %v2912
          %v3040 = vadd.f32 %v3039, %v2913
          %v3041 = vadd.f32 %v3040, %v2914
          %v3042 = vadd.f32 %v3041, %v2915
          %v3043 = vadd.f32 %v3042, %v2916
          %v3044 = vadd.f32 %v3043, %v2917
          %v3045 = vadd.f32 %v3044, %v2918
          %v3046 = vadd.f32 %v3045, %v2919
          %v3047 = vadd.f32 %v3046, %v2920
          %v3048 = vadd.f32 %v3047, %v2921
          %v3049 = vadd.f32 %v3048, %v2922
          %v3050 = vadd.f32 %v3049, %v2923
          %v3051 = vadd.f32 %v3050, %v2924
          %v3052 = vadd.f32 %v3051, %v2925
          %v3053 = vadd.f32 %v3052, %v2926
          %v3054 = vadd.f32 %v3053, %v2927
          %v3055 = vadd.f32 %v3054, %v2928
          %v3056 = vadd.f32 %v3055, %v2929
          %v3057 = vadd.f32 %v3056, %v2930
          %v3058 = vadd.f32 %v3057, %v2931
          %v3059 = vadd.f32 %v3058, %v2932
          %v3060 = vadd.f32 %v3059, %v2933
          %v3061 = vadd.f32 %v3060, %v2934
          %v3062 = vadd.f32 %v3061, %v2935
          %v3063 = vadd.f32 %v3062, %v2936
          %v3064 = vadd.f32 %v3063, %v2937
          %v3065 = vadd.f32 %v3064, %v2938
          %v3066 = vrot.slane %v3065, 4
          %v3067 = vadd.f32 %v3065, %v3066
          %v3068 = vrot.slane %v3067, 2
          %v3069 = vadd.f32 %v3067, %v3068
          %v3070 = vrot.slane %v3069, 1
          %v3071 = vadd.f32 %v3069, %v3070
          %vm3072 = vcmp.eq.s32.totalorder %v2294, 0
          %vm3073 = vcmp.eq.s32.totalorder %v2294, 1
          %v3074 = vsel %vm3073, %v3071, 0.0
          %v3075 = vsel %vm3072, %v2810, %v3074
          %3076 = vst [vmem:[%s176] sm:$0xff] %v3075
        $region36: #{tpu_custom_call.1} parent=31 // pred_fallthru
          _
        %p3077 = scmp.ne.s32.totalorder %s17, 1
        // Predicated region
        $region37: #{tpu_custom_call.1} parent=31 // pred_check
          %p3078 = pneg %p3077
        $region38: #{tpu_custom_call.1} parent=31 // pred_check_branch
          %3080 = sbr.rel (%p3078) target = $region40
        $region39: #{tpu_custom_call.1} parent=31 // pred_region
          %v3081 = vadd.f32 %v2161, %v2162
          %v3082 = vadd.f32 %v3081, %v2163
          %v3083 = vadd.f32 %v3082, %v2164
          %v3084 = vadd.f32 %v3083, %v2165
          %v3085 = vadd.f32 %v3084, %v2166
          %v3086 = vadd.f32 %v3085, %v2167
          %v3087 = vadd.f32 %v3086, %v2168
          %v3088 = vadd.f32 %v3087, %v2169
          %v3089 = vadd.f32 %v3088, %v2170
          %v3090 = vadd.f32 %v3089, %v2171
          %v3091 = vadd.f32 %v3090, %v2172
          %v3092 = vadd.f32 %v3091, %v2173
          %v3093 = vadd.f32 %v3092, %v2174
          %v3094 = vadd.f32 %v3093, %v2175
          %v3095 = vadd.f32 %v3094, %v2176
          %v3096 = vadd.f32 %v3095, %v2177
          %v3097 = vadd.f32 %v3096, %v2178
          %v3098 = vadd.f32 %v3097, %v2179
          %v3099 = vadd.f32 %v3098, %v2180
          %v3100 = vadd.f32 %v3099, %v2181
          %v3101 = vadd.f32 %v3100, %v2182
          %v3102 = vadd.f32 %v3101, %v2183
          %v3103 = vadd.f32 %v3102, %v2184
          %v3104 = vadd.f32 %v3103, %v2185
          %v3105 = vadd.f32 %v3104, %v2186
          %v3106 = vadd.f32 %v3105, %v2187
          %v3107 = vadd.f32 %v3106, %v2188
          %v3108 = vadd.f32 %v3107, %v2189
          %v3109 = vadd.f32 %v3108, %v2190
          %v3110 = vadd.f32 %v3109, %v2191
          %v3111 = vadd.f32 %v3110, %v2192
          %v3112 = vadd.f32 %v3111, %v2193
          %v3113 = vadd.f32 %v3112, %v2194
          %v3114 = vadd.f32 %v3113, %v2195
          %v3115 = vadd.f32 %v3114, %v2196
          %v3116 = vadd.f32 %v3115, %v2197
          %v3117 = vadd.f32 %v3116, %v2198
          %v3118 = vadd.f32 %v3117, %v2199
          %v3119 = vadd.f32 %v3118, %v2200
          %v3120 = vadd.f32 %v3119, %v2201
          %v3121 = vadd.f32 %v3120, %v2202
          %v3122 = vadd.f32 %v3121, %v2203
          %v3123 = vadd.f32 %v3122, %v2204
          %v3124 = vadd.f32 %v3123, %v2205
          %v3125 = vadd.f32 %v3124, %v2206
          %v3126 = vadd.f32 %v3125, %v2207
          %v3127 = vadd.f32 %v3126, %v2208
          %v3128 = vadd.f32 %v3127, %v2209
          %v3129 = vadd.f32 %v3128, %v2210
          %v3130 = vadd.f32 %v3129, %v2211
          %v3131 = vadd.f32 %v3130, %v2212
          %v3132 = vadd.f32 %v3131, %v2213
          %v3133 = vadd.f32 %v3132, %v2214
          %v3134 = vadd.f32 %v3133, %v2215
          %v3135 = vadd.f32 %v3134, %v2216
          %v3136 = vadd.f32 %v3135, %v2217
          %v3137 = vadd.f32 %v3136, %v2218
          %v3138 = vadd.f32 %v3137, %v2219
          %v3139 = vadd.f32 %v3138, %v2220
          %v3140 = vadd.f32 %v3139, %v2221
          %v3141 = vadd.f32 %v3140, %v2222
          %v3142 = vadd.f32 %v3141, %v2223
          %v3143 = vadd.f32 %v3142, %v2224
          %v3144 = vadd.f32 %v3143, %v2225
          %v3145 = vadd.f32 %v3144, %v2226
          %v3146 = vadd.f32 %v3145, %v2227
          %v3147 = vadd.f32 %v3146, %v2228
          %v3148 = vadd.f32 %v3147, %v2229
          %v3149 = vadd.f32 %v3148, %v2230
          %v3150 = vadd.f32 %v3149, %v2231
          %v3151 = vadd.f32 %v3150, %v2232
          %v3152 = vadd.f32 %v3151, %v2233
          %v3153 = vadd.f32 %v3152, %v2234
          %v3154 = vadd.f32 %v3153, %v2235
          %v3155 = vadd.f32 %v3154, %v2236
          %v3156 = vadd.f32 %v3155, %v2237
          %v3157 = vadd.f32 %v3156, %v2238
          %v3158 = vadd.f32 %v3157, %v2239
          %v3159 = vadd.f32 %v3158, %v2240
          %v3160 = vadd.f32 %v3159, %v2241
          %v3161 = vadd.f32 %v3160, %v2242
          %v3162 = vadd.f32 %v3161, %v2243
          %v3163 = vadd.f32 %v3162, %v2244
          %v3164 = vadd.f32 %v3163, %v2245
          %v3165 = vadd.f32 %v3164, %v2246
          %v3166 = vadd.f32 %v3165, %v2247
          %v3167 = vadd.f32 %v3166, %v2248
          %v3168 = vadd.f32 %v3167, %v2249
          %v3169 = vadd.f32 %v3168, %v2250
          %v3170 = vadd.f32 %v3169, %v2251
          %v3171 = vadd.f32 %v3170, %v2252
          %v3172 = vadd.f32 %v3171, %v2253
          %v3173 = vadd.f32 %v3172, %v2254
          %v3174 = vadd.f32 %v3173, %v2255
          %v3175 = vadd.f32 %v3174, %v2256
          %v3176 = vadd.f32 %v3175, %v2257
          %v3177 = vadd.f32 %v3176, %v2258
          %v3178 = vadd.f32 %v3177, %v2259
          %v3179 = vadd.f32 %v3178, %v2260
          %v3180 = vadd.f32 %v3179, %v2261
          %v3181 = vadd.f32 %v3180, %v2262
          %v3182 = vadd.f32 %v3181, %v2263
          %v3183 = vadd.f32 %v3182, %v2264
          %v3184 = vadd.f32 %v3183, %v2265
          %v3185 = vadd.f32 %v3184, %v2266
          %v3186 = vadd.f32 %v3185, %v2267
          %v3187 = vadd.f32 %v3186, %v2268
          %v3188 = vadd.f32 %v3187, %v2269
          %v3189 = vadd.f32 %v3188, %v2270
          %v3190 = vadd.f32 %v3189, %v2271
          %v3191 = vadd.f32 %v3190, %v2272
          %v3192 = vadd.f32 %v3191, %v2273
          %v3193 = vadd.f32 %v3192, %v2274
          %v3194 = vadd.f32 %v3193, %v2275
          %v3195 = vadd.f32 %v3194, %v2276
          %v3196 = vadd.f32 %v3195, %v2277
          %v3197 = vadd.f32 %v3196, %v2278
          %v3198 = vadd.f32 %v3197, %v2279
          %v3199 = vadd.f32 %v3198, %v2280
          %v3200 = vadd.f32 %v3199, %v2281
          %v3201 = vadd.f32 %v3200, %v2282
          %v3202 = vadd.f32 %v3201, %v2283
          %v3203 = vadd.f32 %v3202, %v2284
          %v3204 = vadd.f32 %v3203, %v2285
          %v3205 = vadd.f32 %v3204, %v2286
          %v3206 = vadd.f32 %v3205, %v2287
          %v3207 = vadd.f32 %v3206, %v2288
          %v3208 = vrot.slane %v3207, 4
          %v3209 = vadd.f32 %v3207, %v3208
          %v3210 = vrot.slane %v3209, 2
          %v3211 = vadd.f32 %v3209, %v3210
          %v3212 = vrot.slane %v3211, 1
          %v3213 = vadd.f32 %v3211, %v3212
          %v3214 = vmul.f32 %v2161, %v2161
          %v3215 = vmul.f32 %v2162, %v2162
          %v3216 = vmul.f32 %v2163, %v2163
          %v3217 = vmul.f32 %v2164, %v2164
          %v3218 = vmul.f32 %v2165, %v2165
          %v3219 = vmul.f32 %v2166, %v2166
          %v3220 = vmul.f32 %v2167, %v2167
          %v3221 = vmul.f32 %v2168, %v2168
          %v3222 = vmul.f32 %v2169, %v2169
          %v3223 = vmul.f32 %v2170, %v2170
          %v3224 = vmul.f32 %v2171, %v2171
          %v3225 = vmul.f32 %v2172, %v2172
          %v3226 = vmul.f32 %v2173, %v2173
          %v3227 = vmul.f32 %v2174, %v2174
          %v3228 = vmul.f32 %v2175, %v2175
          %v3229 = vmul.f32 %v2176, %v2176
          %v3230 = vmul.f32 %v2177, %v2177
          %v3231 = vmul.f32 %v2178, %v2178
          %v3232 = vmul.f32 %v2179, %v2179
          %v3233 = vmul.f32 %v2180, %v2180
          %v3234 = vmul.f32 %v2181, %v2181
          %v3235 = vmul.f32 %v2182, %v2182
          %v3236 = vmul.f32 %v2183, %v2183
          %v3237 = vmul.f32 %v2184, %v2184
          %v3238 = vmul.f32 %v2185, %v2185
          %v3239 = vmul.f32 %v2186, %v2186
          %v3240 = vmul.f32 %v2187, %v2187
          %v3241 = vmul.f32 %v2188, %v2188
          %v3242 = vmul.f32 %v2189, %v2189
          %v3243 = vmul.f32 %v2190, %v2190
          %v3244 = vmul.f32 %v2191, %v2191
          %v3245 = vmul.f32 %v2192, %v2192
          %v3246 = vmul.f32 %v2193, %v2193
          %v3247 = vmul.f32 %v2194, %v2194
          %v3248 = vmul.f32 %v2195, %v2195
          %v3249 = vmul.f32 %v2196, %v2196
          %v3250 = vmul.f32 %v2197, %v2197
          %v3251 = vmul.f32 %v2198, %v2198
          %v3252 = vmul.f32 %v2199, %v2199
          %v3253 = vmul.f32 %v2200, %v2200
          %v3254 = vmul.f32 %v2201, %v2201
          %v3255 = vmul.f32 %v2202, %v2202
          %v3256 = vmul.f32 %v2203, %v2203
          %v3257 = vmul.f32 %v2204, %v2204
          %v3258 = vmul.f32 %v2205, %v2205
          %v3259 = vmul.f32 %v2206, %v2206
          %v3260 = vmul.f32 %v2207, %v2207
          %v3261 = vmul.f32 %v2208, %v2208
          %v3262 = vmul.f32 %v2209, %v2209
          %v3263 = vmul.f32 %v2210, %v2210
          %v3264 = vmul.f32 %v2211, %v2211
          %v3265 = vmul.f32 %v2212, %v2212
          %v3266 = vmul.f32 %v2213, %v2213
          %v3267 = vmul.f32 %v2214, %v2214
          %v3268 = vmul.f32 %v2215, %v2215
          %v3269 = vmul.f32 %v2216, %v2216
          %v3270 = vmul.f32 %v2217, %v2217
          %v3271 = vmul.f32 %v2218, %v2218
          %v3272 = vmul.f32 %v2219, %v2219
          %v3273 = vmul.f32 %v2220, %v2220
          %v3274 = vmul.f32 %v2221, %v2221
          %v3275 = vmul.f32 %v2222, %v2222
          %v3276 = vmul.f32 %v2223, %v2223
          %v3277 = vmul.f32 %v2224, %v2224
          %v3278 = vmul.f32 %v2225, %v2225
          %v3279 = vmul.f32 %v2226, %v2226
          %v3280 = vmul.f32 %v2227, %v2227
          %v3281 = vmul.f32 %v2228, %v2228
          %v3282 = vmul.f32 %v2229, %v2229
          %v3283 = vmul.f32 %v2230, %v2230
          %v3284 = vmul.f32 %v2231, %v2231
          %v3285 = vmul.f32 %v2232, %v2232
          %v3286 = vmul.f32 %v2233, %v2233
          %v3287 = vmul.f32 %v2234, %v2234
          %v3288 = vmul.f32 %v2235, %v2235
          %v3289 = vmul.f32 %v2236, %v2236
          %v3290 = vmul.f32 %v2237, %v2237
          %v3291 = vmul.f32 %v2238, %v2238
          %v3292 = vmul.f32 %v2239, %v2239
          %v3293 = vmul.f32 %v2240, %v2240
          %v3294 = vmul.f32 %v2241, %v2241
          %v3295 = vmul.f32 %v2242, %v2242
          %v3296 = vmul.f32 %v2243, %v2243
          %v3297 = vmul.f32 %v2244, %v2244
          %v3298 = vmul.f32 %v2245, %v2245
          %v3299 = vmul.f32 %v2246, %v2246
          %v3300 = vmul.f32 %v2247, %v2247
          %v3301 = vmul.f32 %v2248, %v2248
          %v3302 = vmul.f32 %v2249, %v2249
          %v3303 = vmul.f32 %v2250, %v2250
          %v3304 = vmul.f32 %v2251, %v2251
          %v3305 = vmul.f32 %v2252, %v2252
          %v3306 = vmul.f32 %v2253, %v2253
          %v3307 = vmul.f32 %v2254, %v2254
          %v3308 = vmul.f32 %v2255, %v2255
          %v3309 = vmul.f32 %v2256, %v2256
          %v3310 = vmul.f32 %v2257, %v2257
          %v3311 = vmul.f32 %v2258, %v2258
          %v3312 = vmul.f32 %v2259, %v2259
          %v3313 = vmul.f32 %v2260, %v2260
          %v3314 = vmul.f32 %v2261, %v2261
          %v3315 = vmul.f32 %v2262, %v2262
          %v3316 = vmul.f32 %v2263, %v2263
          %v3317 = vmul.f32 %v2264, %v2264
          %v3318 = vmul.f32 %v2265, %v2265
          %v3319 = vmul.f32 %v2266, %v2266
          %v3320 = vmul.f32 %v2267, %v2267
          %v3321 = vmul.f32 %v2268, %v2268
          %v3322 = vmul.f32 %v2269, %v2269
          %v3323 = vmul.f32 %v2270, %v2270
          %v3324 = vmul.f32 %v2271, %v2271
          %v3325 = vmul.f32 %v2272, %v2272
          %v3326 = vmul.f32 %v2273, %v2273
          %v3327 = vmul.f32 %v2274, %v2274
          %v3328 = vmul.f32 %v2275, %v2275
          %v3329 = vmul.f32 %v2276, %v2276
          %v3330 = vmul.f32 %v2277, %v2277
          %v3331 = vmul.f32 %v2278, %v2278
          %v3332 = vmul.f32 %v2279, %v2279
          %v3333 = vmul.f32 %v2280, %v2280
          %v3334 = vmul.f32 %v2281, %v2281
          %v3335 = vmul.f32 %v2282, %v2282
          %v3336 = vmul.f32 %v2283, %v2283
          %v3337 = vmul.f32 %v2284, %v2284
          %v3338 = vmul.f32 %v2285, %v2285
          %v3339 = vmul.f32 %v2286, %v2286
          %v3340 = vmul.f32 %v2287, %v2287
          %v3341 = vmul.f32 %v2288, %v2288
          %v3342 = vadd.f32 %v3214, %v3215
          %v3343 = vadd.f32 %v3342, %v3216
          %v3344 = vadd.f32 %v3343, %v3217
          %v3345 = vadd.f32 %v3344, %v3218
          %v3346 = vadd.f32 %v3345, %v3219
          %v3347 = vadd.f32 %v3346, %v3220
          %v3348 = vadd.f32 %v3347, %v3221
          %v3349 = vadd.f32 %v3348, %v3222
          %v3350 = vadd.f32 %v3349, %v3223
          %v3351 = vadd.f32 %v3350, %v3224
          %v3352 = vadd.f32 %v3351, %v3225
          %v3353 = vadd.f32 %v3352, %v3226
          %v3354 = vadd.f32 %v3353, %v3227
          %v3355 = vadd.f32 %v3354, %v3228
          %v3356 = vadd.f32 %v3355, %v3229
          %v3357 = vadd.f32 %v3356, %v3230
          %v3358 = vadd.f32 %v3357, %v3231
          %v3359 = vadd.f32 %v3358, %v3232
          %v3360 = vadd.f32 %v3359, %v3233
          %v3361 = vadd.f32 %v3360, %v3234
          %v3362 = vadd.f32 %v3361, %v3235
          %v3363 = vadd.f32 %v3362, %v3236
          %v3364 = vadd.f32 %v3363, %v3237
          %v3365 = vadd.f32 %v3364, %v3238
          %v3366 = vadd.f32 %v3365, %v3239
          %v3367 = vadd.f32 %v3366, %v3240
          %v3368 = vadd.f32 %v3367, %v3241
          %v3369 = vadd.f32 %v3368, %v3242
          %v3370 = vadd.f32 %v3369, %v3243
          %v3371 = vadd.f32 %v3370, %v3244
          %v3372 = vadd.f32 %v3371, %v3245
          %v3373 = vadd.f32 %v3372, %v3246
          %v3374 = vadd.f32 %v3373, %v3247
          %v3375 = vadd.f32 %v3374, %v3248
          %v3376 = vadd.f32 %v3375, %v3249
          %v3377 = vadd.f32 %v3376, %v3250
          %v3378 = vadd.f32 %v3377, %v3251
          %v3379 = vadd.f32 %v3378, %v3252
          %v3380 = vadd.f32 %v3379, %v3253
          %v3381 = vadd.f32 %v3380, %v3254
          %v3382 = vadd.f32 %v3381, %v3255
          %v3383 = vadd.f32 %v3382, %v3256
          %v3384 = vadd.f32 %v3383, %v3257
          %v3385 = vadd.f32 %v3384, %v3258
          %v3386 = vadd.f32 %v3385, %v3259
          %v3387 = vadd.f32 %v3386, %v3260
          %v3388 = vadd.f32 %v3387, %v3261
          %v3389 = vadd.f32 %v3388, %v3262
          %v3390 = vadd.f32 %v3389, %v3263
          %v3391 = vadd.f32 %v3390, %v3264
          %v3392 = vadd.f32 %v3391, %v3265
          %v3393 = vadd.f32 %v3392, %v3266
          %v3394 = vadd.f32 %v3393, %v3267
          %v3395 = vadd.f32 %v3394, %v3268
          %v3396 = vadd.f32 %v3395, %v3269
          %v3397 = vadd.f32 %v3396, %v3270
          %v3398 = vadd.f32 %v3397, %v3271
          %v3399 = vadd.f32 %v3398, %v3272
          %v3400 = vadd.f32 %v3399, %v3273
          %v3401 = vadd.f32 %v3400, %v3274
          %v3402 = vadd.f32 %v3401, %v3275
          %v3403 = vadd.f32 %v3402, %v3276
          %v3404 = vadd.f32 %v3403, %v3277
          %v3405 = vadd.f32 %v3404, %v3278
          %v3406 = vadd.f32 %v3405, %v3279
          %v3407 = vadd.f32 %v3406, %v3280
          %v3408 = vadd.f32 %v3407, %v3281
          %v3409 = vadd.f32 %v3408, %v3282
          %v3410 = vadd.f32 %v3409, %v3283
          %v3411 = vadd.f32 %v3410, %v3284
          %v3412 = vadd.f32 %v3411, %v3285
          %v3413 = vadd.f32 %v3412, %v3286
          %v3414 = vadd.f32 %v3413, %v3287
          %v3415 = vadd.f32 %v3414, %v3288
          %v3416 = vadd.f32 %v3415, %v3289
          %v3417 = vadd.f32 %v3416, %v3290
          %v3418 = vadd.f32 %v3417, %v3291
          %v3419 = vadd.f32 %v3418, %v3292
          %v3420 = vadd.f32 %v3419, %v3293
          %v3421 = vadd.f32 %v3420, %v3294
          %v3422 = vadd.f32 %v3421, %v3295
          %v3423 = vadd.f32 %v3422, %v3296
          %v3424 = vadd.f32 %v3423, %v3297
          %v3425 = vadd.f32 %v3424, %v3298
          %v3426 = vadd.f32 %v3425, %v3299
          %v3427 = vadd.f32 %v3426, %v3300
          %v3428 = vadd.f32 %v3427, %v3301
          %v3429 = vadd.f32 %v3428, %v3302
          %v3430 = vadd.f32 %v3429, %v3303
          %v3431 = vadd.f32 %v3430, %v3304
          %v3432 = vadd.f32 %v3431, %v3305
          %v3433 = vadd.f32 %v3432, %v3306
          %v3434 = vadd.f32 %v3433, %v3307
          %v3435 = vadd.f32 %v3434, %v3308
          %v3436 = vadd.f32 %v3435, %v3309
          %v3437 = vadd.f32 %v3436, %v3310
          %v3438 = vadd.f32 %v3437, %v3311
          %v3439 = vadd.f32 %v3438, %v3312
          %v3440 = vadd.f32 %v3439, %v3313
          %v3441 = vadd.f32 %v3440, %v3314
          %v3442 = vadd.f32 %v3441, %v3315
          %v3443 = vadd.f32 %v3442, %v3316
          %v3444 = vadd.f32 %v3443, %v3317
          %v3445 = vadd.f32 %v3444, %v3318
          %v3446 = vadd.f32 %v3445, %v3319
          %v3447 = vadd.f32 %v3446, %v3320
          %v3448 = vadd.f32 %v3447, %v3321
          %v3449 = vadd.f32 %v3448, %v3322
          %v3450 = vadd.f32 %v3449, %v3323
          %v3451 = vadd.f32 %v3450, %v3324
          %v3452 = vadd.f32 %v3451, %v3325
          %v3453 = vadd.f32 %v3452, %v3326
          %v3454 = vadd.f32 %v3453, %v3327
          %v3455 = vadd.f32 %v3454, %v3328
          %v3456 = vadd.f32 %v3455, %v3329
          %v3457 = vadd.f32 %v3456, %v3330
          %v3458 = vadd.f32 %v3457, %v3331
          %v3459 = vadd.f32 %v3458, %v3332
          %v3460 = vadd.f32 %v3459, %v3333
          %v3461 = vadd.f32 %v3460, %v3334
          %v3462 = vadd.f32 %v3461, %v3335
          %v3463 = vadd.f32 %v3462, %v3336
          %v3464 = vadd.f32 %v3463, %v3337
          %v3465 = vadd.f32 %v3464, %v3338
          %v3466 = vadd.f32 %v3465, %v3339
          %v3467 = vadd.f32 %v3466, %v3340
          %v3468 = vadd.f32 %v3467, %v3341
          %v3469 = vrot.slane %v3468, 4
          %v3470 = vadd.f32 %v3468, %v3469
          %v3471 = vrot.slane %v3470, 2
          %v3472 = vadd.f32 %v3470, %v3471
          %v3473 = vrot.slane %v3472, 1
          %v3474 = vadd.f32 %v3472, %v3473
          %v3475 = vlaneseq
          %v3476 = vshrl.u32 %v3475, 7
          %vm3477 = vcmp.eq.s32.totalorder %v3476, 0
          %vm3478 = vcmp.eq.s32.totalorder %v3476, 1
          %v3479 = vsel %vm3478, %v3474, 0.0
          %v3480 = vsel %vm3477, %v3213, %v3479
          %3481 = vst [vmem:[%s176] sm:$0xff] %v3480
        $region40: #{tpu_custom_call.1} parent=31 // pred_fallthru
          _
        %s3482 = sand.u32 %s93, 1
        %s3483 = scalar_lea.sflag [#allocation3], %s3482
        %s3484 = sand.u32 %s93, 1
        %s3485 = smul.addr %s3484, 8
        %s3486 = scalar_lea.vmem [#allocation2], %s3485
        // Predicated region
        $region41: #{tpu_custom_call.1} parent=31 // pred_check
          %p3487 = pneg %p103
        $region42: #{tpu_custom_call.1} parent=31 // pred_check_branch
          %3489 = sbr.rel (%p3487) target = $region44
        $region43: #{tpu_custom_call.1} parent=31 // pred_region
          %s3491 = ssub.s32 128, 128
          %3492 = vsyncadd %s3483, %s3491
          %s3493 = smul.addr %s17, 128
          %s3494 = scalar_lea.hbm %s3, %s3493
          %s3496 = sshll.u32 %s3486, 4
          %s3497 = int_to_ptr.vmem [resolvable:$true] %s3496
          %3499 = dma.vmem_to_hbm [thread:$0]  %s3497, 128, %s3494, %s3483
        $region44: #{tpu_custom_call.1} parent=31 // pred_fallthru
          _
      $region32: #{tpu_custom_call.1} parent=5 // pred_fallthru
        _
      %p3500 = scmp.le.s32.totalorder 2, %s12
      // Predicated region
      $region45: #{tpu_custom_call.1} parent=5 // pred_check
        %p3501 = pneg %p3500
      $region46: #{tpu_custom_call.1} parent=5 // pred_check_branch
        %3503 = sbr.rel (%p3501) target = $region48
      $region47: #{tpu_custom_call.1} parent=5 // pred_region
        %s3504 = ssub.s32 %s12, 2
        // Predicated region
        $region49: #{tpu_custom_call.1} parent=47 // pred_check
          %p3505 = pneg %p109
        $region50: #{tpu_custom_call.1} parent=47 // pred_check_branch
          %3507 = sbr.rel (%p3505) target = $region52
        $region51: #{tpu_custom_call.1} parent=47 // pred_region
          %s3508 = sand.u32 %s94, 1
          %s3509 = scalar_lea.sflag [#allocation3], %s3508
          %s3510 = sand.u32 %s94, 1
          %s3511 = smul.addr %s3510, 8
          %s3512 = scalar_lea.vmem [#allocation2], %s3511
          %3513 = dma.done %s3509, 128
        $region52: #{tpu_custom_call.1} parent=47 // pred_fallthru
          _
      $region48: #{tpu_custom_call.1} parent=5 // pred_fallthru
        _
    $region6: #{tpu_custom_call.1} parent=1 // loop_footer
      %s16 = sadd.s32 1, %s12
    $region7: #{tpu_custom_call.1} parent=1 // loop_footer_branch
      %11 = sbr.rel target = $region3
    $region8: #{tpu_custom_call.1} parent=1 // loop_exit
      _
    %3514 = vsyncpa [#allocation3], 1
    %s3515 = scalar_lea.sflag [#allocation3], 1
    %3516 = vsyncpa %s3515, 1

</llo_original>
